<compile_context>
chip_gen: v7x
topology: tpu7x:2x2x1
jax: 0.10.0
libtpu: 0.0.40
codegen_flags: <defaults>
</compile_context>

<pallas_src>
import functools
import numpy as np
import jax
import jax.numpy as jnp
from jax import lax
from jax.experimental import pallas as pl
from jax.experimental.pallas import tpu as pltpu

PAD_ID = 0
MAXLEN = 100
NEG_INF = -1e30   # finite "-inf" so an all-padding row cannot produce NaN in softmax
R_PAD = 128       # lane-dense padding for the logits store


# ---------------------------------------------------------------------------
# Kernel 1: fused (input projection + 2-layer LSTM recurrence), time-chunked,
#           state in VMEM scratch, batch-tile-parallel grid axis.
# ---------------------------------------------------------------------------
def fused_lstm_kernel(lens_ref, x_ref, wih1_ref, b1_ref, whh1_ref, wl2_ref, b2_ref,
                      out_ref, hn_ref,
                      xp_sc, h1_sc, c1_sc, h2_sc, c2_sc,
                      *, hidden, t_chunk, b_tile):
    s = pl.program_id(1)                      # time-chunk index (inner, "arbitrary")
    nt = pl.num_programs(1)
    H = hidden
    G = 4 * hidden

    # Fused layer-1 input projection for the whole chunk: one lane-dense MXU matmul,
    # result stays in VMEM scratch (never written to HBM).
    x2d = x_ref[...].reshape(t_chunk * b_tile, x_ref.shape[-1]).astype(jnp.bfloat16)
    xp = (jnp.dot(x2d, wih1_ref[...], preferred_element_type=jnp.float32)
          + b1_ref[...])
    xp_sc[...] = xp.reshape(t_chunk, b_tile, G)

    @pl.when(s == 0)
    def _():
        for sc in (h1_sc, c1_sc, h2_sc, c2_sc):
            sc[...] = jnp.zeros_like(sc)

    lens = lens_ref[...]                      # (b_tile, 1) int32, loaded once per batch tile

    def cell(pre, h, c, valid):
        # PyTorch gate order: i, f, g, o
        # TODO(synk): at production H (multiple of 128) these gate slices are lane-dense;
        # at toy H=32 they are sub-vreg slices. Also: compute the nonlinearities in bf16
        # on v6e/v7x (bf16 EUP), keep f32 on v5e.
        i = jax.nn.sigmoid(pre[:, 0:H])
        f = jax.nn.sigmoid(pre[:, H:2 * H])
        g = jnp.tanh(pre[:, 2 * H:3 * H])
        o = jax.nn.sigmoid(pre[:, 3 * H:4 * H])
        c_new = f * c + i * g
        h_new = o * jnp.tanh(c_new)
        # pack_padded_sequence semantics: padded steps keep state, emit zeros.
        return (jnp.where(valid, h_new, h),
                jnp.where(valid, c_new, c),
                jnp.where(valid, h_new, 0.0))

    def body(t, carry):
        h1, c1, h2, c2 = carry
        valid = (s * t_chunk + t) < lens      # (b_tile, 1) bool, one VPU compare
        # layer 1: x-projection was hoisted above; only the recurrent matmul is serial.
        # TODO(synk): verify in the bundle dump that W_hh1/W_l2 are not re-pushed to the
        # MXU every timestep; explicit matmul_push_rhs/acc_lhs could pin them per chunk.
        pre1 = xp_sc[t] + jnp.dot(h1.astype(jnp.bfloat16), whh1_ref[...],
                                  preferred_element_type=jnp.float32)
        h1, c1, o1 = cell(pre1, h1, c1, valid)
        # layer 2: single merged matmul [o1, h2] @ [W_ih2; W_hh2]  (never leaves VMEM).
        x2 = jnp.concatenate([o1, h2], axis=-1).astype(jnp.bfloat16)   # (b_tile, 2H)
        pre2 = (jnp.dot(x2, wl2_ref[...], preferred_element_type=jnp.float32)
                + b2_ref[...])
        h2, c2, o2 = cell(pre2, h2, c2, valid)
        out_ref[t] = o2.astype(out_ref.dtype)
        return h1, c1, h2, c2

    carry = (h1_sc[...], c1_sc[...], h2_sc[...], c2_sc[...])
    # TODO(synk): at production H sweep unroll in {2,4,8} vs full unroll to avoid vreg spill.
    h1, c1, h2, c2 = lax.fori_loop(0, t_chunk, body, carry, unroll=True)
    h1_sc[...] = h1
    c1_sc[...] = c1
    h2_sc[...] = h2
    c2_sc[...] = c2

    @pl.when(s == nt - 1)
    def _():
        hn_ref[...] = h2_sc[...].astype(hn_ref.dtype)


def fused_lstm_forward(x_tm, lens, w_ih1, b1, w_hh1, w_l2, b2, hidden,
                       t_chunk=None, b_tile=None):
    """x_tm: (L, B, IS) f32 time-major input, lens: (B, 1) int32 sequence lengths.
    Returns (out_tm (L, B, H) f32, hn (B, H) f32) for the LAST layer."""
    L, B, IS = x_tm.shape
    G = 4 * hidden
    if t_chunk is None:
        t_chunk = min(L, 16)
    if b_tile is None:
        b_tile = B
    assert L % t_chunk == 0 and B % b_tile == 0
    nb, nt = B // b_tile, L // t_chunk
    gs = pltpu.PrefetchScalarGridSpec(
        num_scalar_prefetch=0,
        grid=(nb, nt),
        in_specs=[
            pl.BlockSpec((b_tile, 1), lambda i, s: (i, 0)),          # lens (loaded once)
            pl.BlockSpec((t_chunk, b_tile, IS), lambda i, s: (s, i, 0)),
            pl.BlockSpec((IS, G), lambda i, s: (0, 0)),
            pl.BlockSpec((1, G), lambda i, s: (0, 0)),
            pl.BlockSpec((hidden, G), lambda i, s: (0, 0)),
            pl.BlockSpec((2 * hidden, G), lambda i, s: (0, 0)),
            pl.BlockSpec((1, G), lambda i, s: (0, 0)),
        ],
        out_specs=[
            pl.BlockSpec((t_chunk, b_tile, hidden), lambda i, s: (s, i, 0)),
            pl.BlockSpec((b_tile, hidden), lambda i, s: (i, 0)),     # resident over time
        ],
        scratch_shapes=[
            pltpu.VMEM((t_chunk, b_tile, G), jnp.float32),           # projected chunk
            pltpu.VMEM((b_tile, hidden), jnp.float32),               # h1
            pltpu.VMEM((b_tile, hidden), jnp.float32),               # c1
            pltpu.VMEM((b_tile, hidden), jnp.float32),               # h2
            pltpu.VMEM((b_tile, hidden), jnp.float32),               # c2
        ])
    return pl.pallas_call(
        functools.partial(fused_lstm_kernel, hidden=hidden,
                          t_chunk=t_chunk, b_tile=b_tile),
        out_shape=(jax.ShapeDtypeStruct((L, B, hidden), jnp.float32),
                   jax.ShapeDtypeStruct((B, hidden), jnp.float32)),
        grid_spec=gs,
        compiler_params=pltpu.CompilerParams(
            dimension_semantics=("parallel", "arbitrary"),
            vmem_limit_bytes=32 * 1024 * 1024),
    )(lens, x_tm, w_ih1, b1, w_hh1, w_l2, b2)


# ---------------------------------------------------------------------------
# Kernel 2: position-aware attention + final linear, time-major, batch-tiled,
#           lane-dense (b_tile, 128) logits store.
# ---------------------------------------------------------------------------
def attn_kernel(out_ref, hn_ref, pe_ref, nmask_ref,
                wout_ref, wfin_ref, wpe_ref, v_ref, wf_ref, bf_ref,
                logits_ref, *, seqlen, b_tile):
    out = out_ref[...]                                          # (L, b, H) f32, zeros at pads
    H = out.shape[-1]
    out2d = out.reshape(seqlen * b_tile, H)
    pe2d = pe_ref[...].reshape(seqlen * b_tile, pe_ref.shape[-1])

    # wlinear, decomposed: batched matmul over all L*b rows; hn term computed once per row.
    u = (jnp.dot(out2d.astype(jnp.bfloat16), wout_ref[...], preferred_element_type=jnp.float32)
         + jnp.dot(pe2d.astype(jnp.bfloat16), wpe_ref[...], preferred_element_type=jnp.float32))
    uf = jnp.dot(hn_ref[...].astype(jnp.bfloat16), wfin_ref[...],
                 preferred_element_type=jnp.float32)            # (b, A)
    a = jnp.tanh(u.reshape(seqlen, b_tile, -1) + uf[None, :, :])

    # vlinear -> masked softmax over L (axis 0; additive finite -inf mask)
    s = jnp.sum(a * v_ref[...][None], axis=-1) + nmask_ref[...]     # (L, b)
    mx = jnp.max(s, axis=0, keepdims=True)
    e = jnp.exp(s - mx)
    wgt = e * pl.reciprocal(jnp.sum(e, axis=0, keepdims=True), approx=True)

    # weighted sum over L, then flinear -> single lane-dense (b, 128) store
    z = jnp.sum(wgt[:, :, None] * out, axis=0)                      # (b, H)
    logits_ref[...] = (jnp.dot(z.astype(jnp.bfloat16), wf_ref[...],
                               preferred_element_type=jnp.float32)
                       + bf_ref[...]).astype(logits_ref.dtype)


def attention_head(out_tm, hn, pe_tm, nmask_tm, w_out, w_fin, w_pe, v_attn,
                   w_f_pad, b_f_pad, b_tile=None):
    L, B, H = out_tm.shape
    P2 = pe_tm.shape[-1]
    A = w_out.shape[-1]
    RP = w_f_pad.shape[-1]
    if b_tile is None:
        b_tile = B
    assert B % b_tile == 0
    gs = pltpu.PrefetchScalarGridSpec(
        num_scalar_prefetch=0,
        grid=(B // b_tile,),
        in_specs=[
            pl.BlockSpec((L, b_tile, H), lambda i: (0, i, 0)),
            pl.BlockSpec((b_tile, H), lambda i: (i, 0)),
            pl.BlockSpec((L, b_tile, P2), lambda i: (0, i, 0)),
            pl.BlockSpec((L, b_tile), lambda i: (0, i)),
            pl.BlockSpec((H, A), lambda i: (0, 0)),
            pl.BlockSpec((H, A), lambda i: (0, 0)),
            pl.BlockSpec((P2, A), lambda i: (0, 0)),
            pl.BlockSpec((1, A), lambda i: (0, 0)),
            pl.BlockSpec((H, RP), lambda i: (0, 0)),
            pl.BlockSpec((1, RP), lambda i: (0, 0)),
        ],
        out_specs=pl.BlockSpec((b_tile, RP), lambda i: (i, 0)),
    )
    return pl.pallas_call(
        functools.partial(attn_kernel, seqlen=L, b_tile=b_tile),
        out_shape=jax.ShapeDtypeStruct((B, RP), jnp.float32),
        grid_spec=gs,
        compiler_params=pltpu.CompilerParams(
            dimension_semantics=("parallel",),
            vmem_limit_bytes=32 * 1024 * 1024),
    )(out_tm, hn, pe_tm, nmask_tm, w_out, w_fin, w_pe, v_attn, w_f_pad, b_f_pad)


# ---------------------------------------------------------------------------
# Pure-JAX reference (same bf16 weights for the matmuls, f32 accumulation)
# ---------------------------------------------------------------------------
def lstm_layer_ref(x_tm, valid_tm, w_ih, w_hh, b, H):
    B = x_tm.shape[1]

    def step(carry, inp):
        h, c = carry
        x_t, m_t = inp
        pre = (jnp.dot(x_t.astype(jnp.bfloat16), w_ih, preferred_element_type=jnp.float32)
               + jnp.dot(h.astype(jnp.bfloat16), w_hh, preferred_element_type=jnp.float32)
               + b)
        i = jax.nn.sigmoid(pre[:, :H])
        f = jax.nn.sigmoid(pre[:, H:2 * H])
        g = jnp.tanh(pre[:, 2 * H:3 * H])
        o = jax.nn.sigmoid(pre[:, 3 * H:])
        c_new = f * c + i * g
        h_new = o * jnp.tanh(c_new)
        valid = m_t > 0.5
        return ((jnp.where(valid, h_new, h), jnp.where(valid, c_new, c)),
                jnp.where(valid, h_new, 0.0))

    init = (jnp.zeros((B, H), jnp.float32), jnp.zeros((B, H), jnp.float32))
    (h, _), outs = lax.scan(step, init, (x_tm, valid_tm))
    return outs, h


def reference_forward(x_tm, valid_tm, lstm_params, hidden,
                      pe, neg_mask, w_attn_bf, v_attn, w_f_bf, b_f):
    cur = x_tm
    hn = None
    for (w_ih, w_hh, b) in lstm_params:
        cur, hn = lstm_layer_ref(cur, valid_tm, w_ih, w_hh, b, hidden)
    out = jnp.transpose(cur, (1, 0, 2))                              # (B, L, H)
    B, L, _ = out.shape
    final = jnp.broadcast_to(hn[:, None, :], (B, L, hidden))
    ai = jnp.concatenate([out, final, pe], axis=2)                   # (B, L, feat_dim)
    a = jnp.tanh(jnp.einsum('blf,fa->bla', ai.astype(jnp.bfloat16), w_attn_bf,
                            preferred_element_type=jnp.float32))
    s = jnp.sum(a * v_attn[None, :, :], axis=-1) + neg_mask          # (B, L)
    w = jax.nn.softmax(s, axis=1)
    z = jnp.einsum('bl,blh->bh', w, out)
    return (jnp.dot(z.astype(jnp.bfloat16), w_f_bf, preferred_element_type=jnp.float32)
            + b_f)


# ---------------------------------------------------------------------------
# main
# ---------------------------------------------------------------------------
if __name__ == "__main__":
    # Small synthetic hyper-parameters implied by the module
    B, L = 2, 8
    vocab_size, n_pos_tags, n_ner_tags = 50, 10, 10
    emb_dim, pos_dim, ner_dim, position_dim = 16, 8, 8, 8
    hidden, attn_dim, num_layers, num_rel = 32, 32, 2, 5
    input_size = emb_dim + pos_dim + ner_dim                 # 32
    feat_dim = hidden * 2 + position_dim * 2                 # 80

    key = jax.random.PRNGKey(0)
    ks = list(jax.random.split(key, 24))

    # ---- parameters (shapes per the module's __init__) ----
    word_emb = jax.random.uniform(ks[0], (vocab_size, emb_dim), minval=-1.0, maxval=1.0)
    word_emb = word_emb.at[PAD_ID].set(0.0)
    pos_emb = jax.random.uniform(ks[1], (n_pos_tags, pos_dim), minval=-1.0, maxval=1.0)
    pos_emb = pos_emb.at[PAD_ID].set(0.0)
    ner_emb = jax.random.uniform(ks[2], (n_ner_tags, ner_dim), minval=-1.0, maxval=1.0)
    ner_emb = ner_emb.at[PAD_ID].set(0.0)
    position_emb = jax.random.uniform(ks[3], (2 * MAXLEN, position_dim), minval=-1.0, maxval=1.0)

    bound = 1.0 / np.sqrt(hidden)
    # layer 1 (input_size -> hidden), layer 2 (hidden -> hidden); biases combined (b_ih+b_hh)
    w_ih1 = jax.random.uniform(ks[4], (input_size, 4 * hidden), minval=-bound, maxval=bound)
    w_hh1 = jax.random.uniform(ks[5], (hidden, 4 * hidden), minval=-bound, maxval=bound)
    b1 = (jax.random.uniform(ks[6], (4 * hidden,), minval=-bound, maxval=bound)
          + jax.random.uniform(ks[7], (4 * hidden,), minval=-bound, maxval=bound))[None, :]
    w_ih2 = jax.random.uniform(ks[8], (hidden, 4 * hidden), minval=-bound, maxval=bound)
    w_hh2 = jax.random.uniform(ks[9], (hidden, 4 * hidden), minval=-bound, maxval=bound)
    b2 = (jax.random.uniform(ks[10], (4 * hidden,), minval=-bound, maxval=bound)
          + jax.random.uniform(ks[11], (4 * hidden,), minval=-bound, maxval=bound))[None, :]

    # wlinear (no bias), vlinear (no bias; nonzero here so the test exercises the softmax),
    # flinear (single head; dual/multitask heads would be additional W_f columns/calls)
    w_attn = 0.1 * jax.random.normal(ks[14], (feat_dim, attn_dim))
    v_attn = 0.1 * jax.random.normal(ks[15], (1, attn_dim))
    w_f = 0.1 * jax.random.normal(ks[16], (hidden, num_rel))
    b_f = 0.1 * jax.random.normal(ks[17], (1, num_rel))

    # bf16 copies for everything that feeds the MXU (f32 accumulation everywhere)
    w_ih1_bf = w_ih1.astype(jnp.bfloat16)
    w_hh1_bf = w_hh1.astype(jnp.bfloat16)
    w_l2_bf = jnp.concatenate([w_ih2, w_hh2], axis=0).astype(jnp.bfloat16)   # (2H, 4H)
    w_attn_bf = w_attn.astype(jnp.bfloat16)
    w_out_bf = w_attn_bf[:hidden]                 # multiplies lstm output
    w_fin_bf = w_attn_bf[hidden:2 * hidden]       # multiplies hn (broadcast over L)
    w_pe_bf = w_attn_bf[2 * hidden:]              # multiplies [subj_pe, obj_pe]
    w_f_bf = w_f.astype(jnp.bfloat16)
    # zero-padded to 128 columns for a lane-dense logits store
    w_f_pad = jnp.zeros((hidden, R_PAD), jnp.bfloat16).at[:, :num_rel].set(w_f_bf)
    b_f_pad = jnp.zeros((1, R_PAD), jnp.float32).at[:, :num_rel].set(b_f)

    # ---- inputs: words, pos, ner, subj_pos, obj_pos (B, L) ints ----
    words = jax.random.randint(ks[18], (B, L), 1, vocab_size).astype(jnp.int32)
    words = words.at[1, 6:].set(PAD_ID)                              # seq lens [8, 6]
    pos = jax.random.randint(ks[19], (B, L), 1, n_pos_tags).astype(jnp.int32)
    ner = jax.random.randint(ks[20], (B, L), 1, n_ner_tags).astype(jnp.int32)
    pos = jnp.where(words == PAD_ID, PAD_ID, pos)
    ner = jnp.where(words == PAD_ID, PAD_ID, ner)
    subj_pos = jax.random.randint(ks[21], (B, L), -5, 6).astype(jnp.int32)
    obj_pos = jax.random.randint(ks[22], (B, L), -5, 6).astype(jnp.int32)

    # ---- glue: embedding lookups with transposed indices -> time-major activations ----
    words_tm = words.T                                               # (L, B)
    ew = jnp.take(word_emb, words_tm, axis=0)
    ep = jnp.take(pos_emb, pos.T, axis=0)
    en = jnp.take(ner_emb, ner.T, axis=0)
    x_tm = jnp.concatenate([ew, ep, en], axis=2).astype(jnp.float32)  # (L, B, input_size)

    lens = jnp.sum((words != PAD_ID).astype(jnp.int32), axis=1).reshape(B, 1)   # (B, 1)
    nmask_tm = jnp.where(words_tm == PAD_ID, NEG_INF, 0.0).astype(jnp.float32)  # (L, B)

    emb_subj = jnp.take(position_emb, subj_pos.T + MAXLEN, axis=0)   # (L, B, P)
    emb_obj = jnp.take(position_emb, obj_pos.T + MAXLEN, axis=0)
    pe_tm = jnp.concatenate([emb_subj, emb_obj], axis=2).astype(jnp.float32)    # (L, B, 2P)

    # ---- Pallas forward ----
    # 1) fused (input projection + 2-layer LSTM) recurrence; dropout is identity in eval.
    # TODO(synk): nn.Dropout (between LSTM layers and after the LSTM) is identity in eval mode.
    out_tm, hn = fused_lstm_forward(x_tm, lens, w_ih1_bf, b1, w_hh1_bf, w_l2_bf, b2, hidden)
    # 2) attention + flinear head, time-major input, lane-dense padded logits slab
    logits_pad = attention_head(out_tm, hn, pe_tm, nmask_tm,
                                w_out_bf, w_fin_bf, w_pe_bf, v_attn, w_f_pad, b_f_pad)
    logits = logits_pad[:, :num_rel]
    logits = jax.block_until_ready(logits)

    # ---- pure-JAX reference check ----
    valid_tm = (words_tm != PAD_ID).astype(jnp.float32)[:, :, None]  # (L, B, 1)
    lstm_params_bf = [(w_ih1_bf, w_hh1_bf, b1),
                      (w_ih2.astype(jnp.bfloat16), w_hh2.astype(jnp.bfloat16), b2)]
    ref_logits = reference_forward(x_tm, valid_tm, lstm_params_bf, hidden,
                                   jnp.transpose(pe_tm, (1, 0, 2)), nmask_tm.T,
                                   w_attn_bf, v_attn, w_f_bf, b_f)
    np.testing.assert_allclose(np.asarray(logits), np.asarray(ref_logits),
                               rtol=1e-2, atol=2e-3)

    print("KERNEL_OK")
</pallas_src>

<mosaic_0001>
module attributes {stable_mosaic.version = 11 : i64} {
  func.func @fused_lstm_kernel(%arg0: i32, %arg1: i32, %arg2: memref<2x1xi32, #tpu.memory_space<vmem>>, %arg3: memref<8x2x32xf32, #tpu.memory_space<vmem>>, %arg4: memref<32x128xbf16, #tpu.memory_space<vmem>>, %arg5: memref<1x128xf32, #tpu.memory_space<vmem>>, %arg6: memref<32x128xbf16, #tpu.memory_space<vmem>>, %arg7: memref<64x128xbf16, #tpu.memory_space<vmem>>, %arg8: memref<1x128xf32, #tpu.memory_space<vmem>>, %arg9: memref<8x2x32xf32, #tpu.memory_space<vmem>>, %arg10: memref<2x32xf32, #tpu.memory_space<vmem>>, %arg11: memref<8x2x128xf32, #tpu.memory_space<vmem>>, %arg12: memref<2x32xf32, #tpu.memory_space<vmem>>, %arg13: memref<2x32xf32, #tpu.memory_space<vmem>>, %arg14: memref<2x32xf32, #tpu.memory_space<vmem>>, %arg15: memref<2x32xf32, #tpu.memory_space<vmem>>) attributes {dimension_semantics = [#tpu.dimension_semantics<parallel>, #tpu.dimension_semantics<arbitrary>], iteration_bounds = array<i64: 1, 1>, scalar_prefetch = 0 : i64, scratch_operands = 5 : i64, tpu.core_type = #tpu.core_type<tc>, window_params = [{transform_indices = @transform_0, window_bounds = array<i64: 2, 1>}, {transform_indices = @transform_1, window_bounds = array<i64: 8, 2, 32>}, {pipeline_mode = #tpu.pipeline_mode<synchronous>, transform_indices = @transform_2, window_bounds = array<i64: 32, 128>}, {pipeline_mode = #tpu.pipeline_mode<synchronous>, transform_indices = @transform_3, window_bounds = array<i64: 1, 128>}, {pipeline_mode = #tpu.pipeline_mode<synchronous>, transform_indices = @transform_4, window_bounds = array<i64: 32, 128>}, {pipeline_mode = #tpu.pipeline_mode<synchronous>, transform_indices = @transform_5, window_bounds = array<i64: 64, 128>}, {pipeline_mode = #tpu.pipeline_mode<synchronous>, transform_indices = @transform_6, window_bounds = array<i64: 1, 128>}, {transform_indices = @transform_7, window_bounds = array<i64: 8, 2, 32>}, {transform_indices = @transform_8, window_bounds = array<i64: 2, 32>}]} {
    %c0 = arith.constant 0 : index
    %c0_0 = arith.constant 0 : index
    %c0_1 = arith.constant 0 : index
    %0 = vector.load %arg3[%c0, %c0_0, %c0_1] : memref<8x2x32xf32, #tpu.memory_space<vmem>>, vector<8x2x32xf32>
    %1 = vector.shape_cast %0 : vector<8x2x32xf32> to vector<16x32xf32>
    %2 = arith.truncf %1 : vector<16x32xf32> to vector<16x32xbf16>
    %c0_2 = arith.constant 0 : index
    %c0_3 = arith.constant 0 : index
    %3 = vector.load %arg4[%c0_2, %c0_3] : memref<32x128xbf16, #tpu.memory_space<vmem>>, vector<32x128xbf16>
    %cst = arith.constant dense<0.000000e+00> : vector<16x128xf32>
    %4 = tpu.matmul %2, %3, %cst {dimension_numbers = #tpu.dot_dimension_numbers<[1], [0], [0], [1], [0, 0, 1, 1], [], []>} : vector<16x32xbf16>, vector<32x128xbf16>, vector<16x128xf32> -> vector<16x128xf32>
    %c0_4 = arith.constant 0 : index
    %c0_5 = arith.constant 0 : index
    %5 = vector.load %arg5[%c0_4, %c0_5] : memref<1x128xf32, #tpu.memory_space<vmem>>, vector<1x128xf32>
    %6 = vector.broadcast %5 : vector<1x128xf32> to vector<16x128xf32>
    %7 = arith.addf %4, %6 : vector<16x128xf32>
    %8 = vector.shape_cast %7 : vector<16x128xf32> to vector<8x2x128xf32>
    %c0_6 = arith.constant 0 : index
    %c0_7 = arith.constant 0 : index
    %c0_8 = arith.constant 0 : index
    %9 = vector.load %arg11[%c0_6, %c0_7, %c0_8] : memref<8x2x128xf32, #tpu.memory_space<vmem>>, vector<8x2x128xf32>
    tpu.vector_store %arg11[%c0_6, %c0_7, %c0_8], %8 {strides = array<i32>} : memref<8x2x128xf32, #tpu.memory_space<vmem>>, vector<8x2x128xf32>,
    %c0_i32 = arith.constant 0 : i32
    %10 = arith.cmpi eq, %arg1, %c0_i32 : i32
    %11 = arith.extui %10 : i1 to i32
    %c0_i32_9 = arith.constant 0 : i32
    %12 = arith.cmpi ne, %11, %c0_i32_9 : i32
    scf.if %12 {
      %cst_199 = arith.constant 0.000000e+00 : f32
      %761 = vector.broadcast %cst_199 : f32 to vector<2x32xf32>
      %c0_200 = arith.constant 0 : index
      %c0_201 = arith.constant 0 : index
      %762 = vector.load %arg12[%c0_200, %c0_201] : memref<2x32xf32, #tpu.memory_space<vmem>>, vector<2x32xf32>
      tpu.vector_store %arg12[%c0_200, %c0_201], %761 {strides = array<i32>} : memref<2x32xf32, #tpu.memory_space<vmem>>, vector<2x32xf32>,
      %cst_202 = arith.constant 0.000000e+00 : f32
      %763 = vector.broadcast %cst_202 : f32 to vector<2x32xf32>
      %c0_203 = arith.constant 0 : index
      %c0_204 = arith.constant 0 : index
      %764 = vector.load %arg13[%c0_203, %c0_204] : memref<2x32xf32, #tpu.memory_space<vmem>>, vector<2x32xf32>
      tpu.vector_store %arg13[%c0_203, %c0_204], %763 {strides = array<i32>} : memref<2x32xf32, #tpu.memory_space<vmem>>, vector<2x32xf32>,
      %cst_205 = arith.constant 0.000000e+00 : f32
      %765 = vector.broadcast %cst_205 : f32 to vector<2x32xf32>
      %c0_206 = arith.constant 0 : index
      %c0_207 = arith.constant 0 : index
      %766 = vector.load %arg14[%c0_206, %c0_207] : memref<2x32xf32, #tpu.memory_space<vmem>>, vector<2x32xf32>
      tpu.vector_store %arg14[%c0_206, %c0_207], %765 {strides = array<i32>} : memref<2x32xf32, #tpu.memory_space<vmem>>, vector<2x32xf32>,
      %cst_208 = arith.constant 0.000000e+00 : f32
      %767 = vector.broadcast %cst_208 : f32 to vector<2x32xf32>
      %c0_209 = arith.constant 0 : index
      %c0_210 = arith.constant 0 : index
      %768 = vector.load %arg15[%c0_209, %c0_210] : memref<2x32xf32, #tpu.memory_space<vmem>>, vector<2x32xf32>
      tpu.vector_store %arg15[%c0_209, %c0_210], %767 {strides = array<i32>} : memref<2x32xf32, #tpu.memory_space<vmem>>, vector<2x32xf32>,
    } else {
    }
    %c0_10 = arith.constant 0 : index
    %c0_11 = arith.constant 0 : index
    %13 = vector.load %arg2[%c0_10, %c0_11] : memref<2x1xi32, #tpu.memory_space<vmem>>, vector<2x1xi32>
    %c0_12 = arith.constant 0 : index
    %c0_13 = arith.constant 0 : index
    %14 = vector.load %arg12[%c0_12, %c0_13] : memref<2x32xf32, #tpu.memory_space<vmem>>, vector<2x32xf32>
    %c0_14 = arith.constant 0 : index
    %c0_15 = arith.constant 0 : index
    %15 = vector.load %arg13[%c0_14, %c0_15] : memref<2x32xf32, #tpu.memory_space<vmem>>, vector<2x32xf32>
    %c0_16 = arith.constant 0 : index
    %c0_17 = arith.constant 0 : index
    %16 = vector.load %arg14[%c0_16, %c0_17] : memref<2x32xf32, #tpu.memory_space<vmem>>, vector<2x32xf32>
    %c0_18 = arith.constant 0 : index
    %c0_19 = arith.constant 0 : index
    %17 = vector.load %arg15[%c0_18, %c0_19] : memref<2x32xf32, #tpu.memory_space<vmem>>, vector<2x32xf32>
    %c0_i32_20 = arith.constant 0 : i32
    %c8_i32 = arith.constant 8 : i32
    %18 = arith.muli %arg1, %c8_i32 : i32
    %19 = arith.addi %18, %c0_i32_20 : i32
    %20 = vector.broadcast %19 : i32 to vector<2x1xi32>
    %21 = arith.cmpi slt, %20, %13 : vector<2x1xi32>
    %22 = arith.index_cast %c0_i32_20 : i32 to index
    %c0_21 = arith.constant 0 : index
    %c0_22 = arith.constant 0 : index
    %23 = vector.load %arg11[%22, %c0_21, %c0_22] : memref<8x2x128xf32, #tpu.memory_space<vmem>>, vector<1x2x128xf32>
    %24 = vector.shape_cast %23 : vector<1x2x128xf32> to vector<2x128xf32>
    %25 = arith.truncf %14 : vector<2x32xf32> to vector<2x32xbf16>
    %c0_23 = arith.constant 0 : index
    %c0_24 = arith.constant 0 : index
    %26 = vector.load %arg6[%c0_23, %c0_24] : memref<32x128xbf16, #tpu.memory_space<vmem>>, vector<32x128xbf16>
    %cst_25 = arith.constant dense<0.000000e+00> : vector<2x128xf32>
    %27 = tpu.matmul %25, %26, %cst_25 {dimension_numbers = #tpu.dot_dimension_numbers<[1], [0], [0], [1], [0, 0, 1, 1], [], []>} : vector<2x32xbf16>, vector<32x128xbf16>, vector<2x128xf32> -> vector<2x128xf32>
    %28 = arith.addf %24, %27 : vector<2x128xf32>
    %29 = vector.extract_strided_slice %28 {offsets = [0, 0], sizes = [2, 32], strides = [1, 1]} : vector<2x128xf32> to vector<2x32xf32>
    %30 = arith.negf %29 : vector<2x32xf32>
    %31 = math.exp %30 : vector<2x32xf32>
    %cst_26 = arith.constant 1.000000e+00 : f32
    %32 = vector.broadcast %cst_26 : f32 to vector<2x32xf32>
    %33 = arith.addf %32, %31 : vector<2x32xf32>
    %34 = arith.divf %32, %33 : vector<2x32xf32>
    %35 = vector.extract_strided_slice %28 {offsets = [0, 32], sizes = [2, 32], strides = [1, 1]} : vector<2x128xf32> to vector<2x32xf32>
    %36 = arith.negf %35 : vector<2x32xf32>
    %37 = math.exp %36 : vector<2x32xf32>
    %cst_27 = arith.constant 1.000000e+00 : f32
    %38 = vector.broadcast %cst_27 : f32 to vector<2x32xf32>
    %39 = arith.addf %38, %37 : vector<2x32xf32>
    %40 = arith.divf %38, %39 : vector<2x32xf32>
    %41 = vector.extract_strided_slice %28 {offsets = [0, 64], sizes = [2, 32], strides = [1, 1]} : vector<2x128xf32> to vector<2x32xf32>
    %42 = math.tanh %41 : vector<2x32xf32>
    %43 = vector.extract_strided_slice %28 {offsets = [0, 96], sizes = [2, 32], strides = [1, 1]} : vector<2x128xf32> to vector<2x32xf32>
    %44 = arith.negf %43 : vector<2x32xf32>
    %45 = math.exp %44 : vector<2x32xf32>
    %cst_28 = arith.constant 1.000000e+00 : f32
    %46 = vector.broadcast %cst_28 : f32 to vector<2x32xf32>
    %47 = arith.addf %46, %45 : vector<2x32xf32>
    %48 = arith.divf %46, %47 : vector<2x32xf32>
    %49 = arith.mulf %40, %15 : vector<2x32xf32>
    %50 = arith.mulf %34, %42 : vector<2x32xf32>
    %51 = arith.addf %49, %50 : vector<2x32xf32>
    %52 = math.tanh %51 : vector<2x32xf32>
    %53 = arith.mulf %48, %52 : vector<2x32xf32>
    %54 = vector.shape_cast %21 : vector<2x1xi1> to vector<2x1xi1>
    %55 = vector.broadcast %54 : vector<2x1xi1> to vector<2x32xi1>
    %56 = arith.select %55, %53, %14 : vector<2x32xi1>, vector<2x32xf32>
    %57 = vector.shape_cast %21 : vector<2x1xi1> to vector<2x1xi1>
    %58 = vector.broadcast %57 : vector<2x1xi1> to vector<2x32xi1>
    %59 = arith.select %58, %51, %15 : vector<2x32xi1>, vector<2x32xf32>
    %cst_29 = arith.constant 0.000000e+00 : f32
    %60 = vector.shape_cast %21 : vector<2x1xi1> to vector<2x1xi1>
    %61 = vector.broadcast %60 : vector<2x1xi1> to vector<2x32xi1>
    %62 = vector.broadcast %cst_29 : f32 to vector<2x32xf32>
    %63 = arith.select %61, %53, %62 : vector<2x32xi1>, vector<2x32xf32>
    %64 = tpu.concatenate %63, %16 in 1 : vector<2x32xf32>, vector<2x32xf32> -> vector<2x64xf32>
    %65 = arith.truncf %64 : vector<2x64xf32> to vector<2x64xbf16>
    %c0_30 = arith.constant 0 : index
    %c0_31 = arith.constant 0 : index
    %66 = vector.load %arg7[%c0_30, %c0_31] : memref<64x128xbf16, #tpu.memory_space<vmem>>, vector<64x128xbf16>
    %cst_32 = arith.constant dense<0.000000e+00> : vector<2x128xf32>
    %67 = tpu.matmul %65, %66, %cst_32 {dimension_numbers = #tpu.dot_dimension_numbers<[1], [0], [0], [1], [0, 0, 1, 1], [], []>} : vector<2x64xbf16>, vector<64x128xbf16>, vector<2x128xf32> -> vector<2x128xf32>
    %c0_33 = arith.constant 0 : index
    %c0_34 = arith.constant 0 : index
    %68 = vector.load %arg8[%c0_33, %c0_34] : memref<1x128xf32, #tpu.memory_space<vmem>>, vector<1x128xf32>
    %69 = vector.broadcast %68 : vector<1x128xf32> to vector<2x128xf32>
    %70 = arith.addf %67, %69 : vector<2x128xf32>
    %71 = vector.extract_strided_slice %70 {offsets = [0, 0], sizes = [2, 32], strides = [1, 1]} : vector<2x128xf32> to vector<2x32xf32>
    %72 = arith.negf %71 : vector<2x32xf32>
    %73 = math.exp %72 : vector<2x32xf32>
    %cst_35 = arith.constant 1.000000e+00 : f32
    %74 = vector.broadcast %cst_35 : f32 to vector<2x32xf32>
    %75 = arith.addf %74, %73 : vector<2x32xf32>
    %76 = arith.divf %74, %75 : vector<2x32xf32>
    %77 = vector.extract_strided_slice %70 {offsets = [0, 32], sizes = [2, 32], strides = [1, 1]} : vector<2x128xf32> to vector<2x32xf32>
    %78 = arith.negf %77 : vector<2x32xf32>
    %79 = math.exp %78 : vector<2x32xf32>
    %cst_36 = arith.constant 1.000000e+00 : f32
    %80 = vector.broadcast %cst_36 : f32 to vector<2x32xf32>
    %81 = arith.addf %80, %79 : vector<2x32xf32>
    %82 = arith.divf %80, %81 : vector<2x32xf32>
    %83 = vector.extract_strided_slice %70 {offsets = [0, 64], sizes = [2, 32], strides = [1, 1]} : vector<2x128xf32> to vector<2x32xf32>
    %84 = math.tanh %83 : vector<2x32xf32>
    %85 = vector.extract_strided_slice %70 {offsets = [0, 96], sizes = [2, 32], strides = [1, 1]} : vector<2x128xf32> to vector<2x32xf32>
    %86 = arith.negf %85 : vector<2x32xf32>
    %87 = math.exp %86 : vector<2x32xf32>
    %cst_37 = arith.constant 1.000000e+00 : f32
    %88 = vector.broadcast %cst_37 : f32 to vector<2x32xf32>
    %89 = arith.addf %88, %87 : vector<2x32xf32>
    %90 = arith.divf %88, %89 : vector<2x32xf32>
    %91 = arith.mulf %82, %17 : vector<2x32xf32>
    %92 = arith.mulf %76, %84 : vector<2x32xf32>
    %93 = arith.addf %91, %92 : vector<2x32xf32>
    %94 = math.tanh %93 : vector<2x32xf32>
    %95 = arith.mulf %90, %94 : vector<2x32xf32>
    %96 = vector.shape_cast %21 : vector<2x1xi1> to vector<2x1xi1>
    %97 = vector.broadcast %96 : vector<2x1xi1> to vector<2x32xi1>
    %98 = arith.select %97, %95, %16 : vector<2x32xi1>, vector<2x32xf32>
    %99 = vector.shape_cast %21 : vector<2x1xi1> to vector<2x1xi1>
    %100 = vector.broadcast %99 : vector<2x1xi1> to vector<2x32xi1>
    %101 = arith.select %100, %93, %17 : vector<2x32xi1>, vector<2x32xf32>
    %cst_38 = arith.constant 0.000000e+00 : f32
    %102 = vector.shape_cast %21 : vector<2x1xi1> to vector<2x1xi1>
    %103 = vector.broadcast %102 : vector<2x1xi1> to vector<2x32xi1>
    %104 = vector.broadcast %cst_38 : f32 to vector<2x32xf32>
    %105 = arith.select %103, %95, %104 : vector<2x32xi1>, vector<2x32xf32>
    %106 = arith.index_cast %c0_i32_20 : i32 to index
    %c0_39 = arith.constant 0 : index
    %c0_40 = arith.constant 0 : index
    %107 = vector.load %arg9[%106, %c0_39, %c0_40] : memref<8x2x32xf32, #tpu.memory_space<vmem>>, vector<1x2x32xf32>
    %108 = vector.shape_cast %107 : vector<1x2x32xf32> to vector<2x32xf32>
    %109 = vector.shape_cast %105 : vector<2x32xf32> to vector<1x2x32xf32>
    tpu.vector_store %arg9[%106, %c0_39, %c0_40], %109 {strides = array<i32>} : memref<8x2x32xf32, #tpu.memory_space<vmem>>, vector<1x2x32xf32>,
    %c1_i32 = arith.constant 1 : i32
    %c8_i32_41 = arith.constant 8 : i32
    %110 = arith.muli %arg1, %c8_i32_41 : i32
    %111 = arith.addi %110, %c1_i32 : i32
    %112 = vector.broadcast %111 : i32 to vector<2x1xi32>
    %113 = arith.cmpi slt, %112, %13 : vector<2x1xi32>
    %114 = arith.index_cast %c1_i32 : i32 to index
    %c0_42 = arith.constant 0 : index
    %c0_43 = arith.constant 0 : index
    %115 = vector.load %arg11[%114, %c0_42, %c0_43] : memref<8x2x128xf32, #tpu.memory_space<vmem>>, vector<1x2x128xf32>
    %116 = vector.shape_cast %115 : vector<1x2x128xf32> to vector<2x128xf32>
    %117 = arith.truncf %56 : vector<2x32xf32> to vector<2x32xbf16>
    %c0_44 = arith.constant 0 : index
    %c0_45 = arith.constant 0 : index
    %118 = vector.load %arg6[%c0_44, %c0_45] : memref<32x128xbf16, #tpu.memory_space<vmem>>, vector<32x128xbf16>
    %cst_46 = arith.constant dense<0.000000e+00> : vector<2x128xf32>
    %119 = tpu.matmul %117, %118, %cst_46 {dimension_numbers = #tpu.dot_dimension_numbers<[1], [0], [0], [1], [0, 0, 1, 1], [], []>} : vector<2x32xbf16>, vector<32x128xbf16>, vector<2x128xf32> -> vector<2x128xf32>
    %120 = arith.addf %116, %119 : vector<2x128xf32>
    %121 = vector.extract_strided_slice %120 {offsets = [0, 0], sizes = [2, 32], strides = [1, 1]} : vector<2x128xf32> to vector<2x32xf32>
    %122 = arith.negf %121 : vector<2x32xf32>
    %123 = math.exp %122 : vector<2x32xf32>
    %cst_47 = arith.constant 1.000000e+00 : f32
    %124 = vector.broadcast %cst_47 : f32 to vector<2x32xf32>
    %125 = arith.addf %124, %123 : vector<2x32xf32>
    %126 = arith.divf %124, %125 : vector<2x32xf32>
    %127 = vector.extract_strided_slice %120 {offsets = [0, 32], sizes = [2, 32], strides = [1, 1]} : vector<2x128xf32> to vector<2x32xf32>
    %128 = arith.negf %127 : vector<2x32xf32>
    %129 = math.exp %128 : vector<2x32xf32>
    %cst_48 = arith.constant 1.000000e+00 : f32
    %130 = vector.broadcast %cst_48 : f32 to vector<2x32xf32>
    %131 = arith.addf %130, %129 : vector<2x32xf32>
    %132 = arith.divf %130, %131 : vector<2x32xf32>
    %133 = vector.extract_strided_slice %120 {offsets = [0, 64], sizes = [2, 32], strides = [1, 1]} : vector<2x128xf32> to vector<2x32xf32>
    %134 = math.tanh %133 : vector<2x32xf32>
    %135 = vector.extract_strided_slice %120 {offsets = [0, 96], sizes = [2, 32], strides = [1, 1]} : vector<2x128xf32> to vector<2x32xf32>
    %136 = arith.negf %135 : vector<2x32xf32>
    %137 = math.exp %136 : vector<2x32xf32>
    %cst_49 = arith.constant 1.000000e+00 : f32
    %138 = vector.broadcast %cst_49 : f32 to vector<2x32xf32>
    %139 = arith.addf %138, %137 : vector<2x32xf32>
    %140 = arith.divf %138, %139 : vector<2x32xf32>
    %141 = arith.mulf %132, %59 : vector<2x32xf32>
    %142 = arith.mulf %126, %134 : vector<2x32xf32>
    %143 = arith.addf %141, %142 : vector<2x32xf32>
    %144 = math.tanh %143 : vector<2x32xf32>
    %145 = arith.mulf %140, %144 : vector<2x32xf32>
    %146 = vector.shape_cast %113 : vector<2x1xi1> to vector<2x1xi1>
    %147 = vector.broadcast %146 : vector<2x1xi1> to vector<2x32xi1>
    %148 = arith.select %147, %145, %56 : vector<2x32xi1>, vector<2x32xf32>
    %149 = vector.shape_cast %113 : vector<2x1xi1> to vector<2x1xi1>
    %150 = vector.broadcast %149 : vector<2x1xi1> to vector<2x32xi1>
    %151 = arith.select %150, %143, %59 : vector<2x32xi1>, vector<2x32xf32>
    %cst_50 = arith.constant 0.000000e+00 : f32
    %152 = vector.shape_cast %113 : vector<2x1xi1> to vector<2x1xi1>
    %153 = vector.broadcast %152 : vector<2x1xi1> to vector<2x32xi1>
    %154 = vector.broadcast %cst_50 : f32 to vector<2x32xf32>
    %155 = arith.select %153, %145, %154 : vector<2x32xi1>, vector<2x32xf32>
    %156 = tpu.concatenate %155, %98 in 1 : vector<2x32xf32>, vector<2x32xf32> -> vector<2x64xf32>
    %157 = arith.truncf %156 : vector<2x64xf32> to vector<2x64xbf16>
    %c0_51 = arith.constant 0 : index
    %c0_52 = arith.constant 0 : index
    %158 = vector.load %arg7[%c0_51, %c0_52] : memref<64x128xbf16, #tpu.memory_space<vmem>>, vector<64x128xbf16>
    %cst_53 = arith.constant dense<0.000000e+00> : vector<2x128xf32>
    %159 = tpu.matmul %157, %158, %cst_53 {dimension_numbers = #tpu.dot_dimension_numbers<[1], [0], [0], [1], [0, 0, 1, 1], [], []>} : vector<2x64xbf16>, vector<64x128xbf16>, vector<2x128xf32> -> vector<2x128xf32>
    %c0_54 = arith.constant 0 : index
    %c0_55 = arith.constant 0 : index
    %160 = vector.load %arg8[%c0_54, %c0_55] : memref<1x128xf32, #tpu.memory_space<vmem>>, vector<1x128xf32>
    %161 = vector.broadcast %160 : vector<1x128xf32> to vector<2x128xf32>
    %162 = arith.addf %159, %161 : vector<2x128xf32>
    %163 = vector.extract_strided_slice %162 {offsets = [0, 0], sizes = [2, 32], strides = [1, 1]} : vector<2x128xf32> to vector<2x32xf32>
    %164 = arith.negf %163 : vector<2x32xf32>
    %165 = math.exp %164 : vector<2x32xf32>
    %cst_56 = arith.constant 1.000000e+00 : f32
    %166 = vector.broadcast %cst_56 : f32 to vector<2x32xf32>
    %167 = arith.addf %166, %165 : vector<2x32xf32>
    %168 = arith.divf %166, %167 : vector<2x32xf32>
    %169 = vector.extract_strided_slice %162 {offsets = [0, 32], sizes = [2, 32], strides = [1, 1]} : vector<2x128xf32> to vector<2x32xf32>
    %170 = arith.negf %169 : vector<2x32xf32>
    %171 = math.exp %170 : vector<2x32xf32>
    %cst_57 = arith.constant 1.000000e+00 : f32
    %172 = vector.broadcast %cst_57 : f32 to vector<2x32xf32>
    %173 = arith.addf %172, %171 : vector<2x32xf32>
    %174 = arith.divf %172, %173 : vector<2x32xf32>
    %175 = vector.extract_strided_slice %162 {offsets = [0, 64], sizes = [2, 32], strides = [1, 1]} : vector<2x128xf32> to vector<2x32xf32>
    %176 = math.tanh %175 : vector<2x32xf32>
    %177 = vector.extract_strided_slice %162 {offsets = [0, 96], sizes = [2, 32], strides = [1, 1]} : vector<2x128xf32> to vector<2x32xf32>
    %178 = arith.negf %177 : vector<2x32xf32>
    %179 = math.exp %178 : vector<2x32xf32>
    %cst_58 = arith.constant 1.000000e+00 : f32
    %180 = vector.broadcast %cst_58 : f32 to vector<2x32xf32>
    %181 = arith.addf %180, %179 : vector<2x32xf32>
    %182 = arith.divf %180, %181 : vector<2x32xf32>
    %183 = arith.mulf %174, %101 : vector<2x32xf32>
    %184 = arith.mulf %168, %176 : vector<2x32xf32>
    %185 = arith.addf %183, %184 : vector<2x32xf32>
    %186 = math.tanh %185 : vector<2x32xf32>
    %187 = arith.mulf %182, %186 : vector<2x32xf32>
    %188 = vector.shape_cast %113 : vector<2x1xi1> to vector<2x1xi1>
    %189 = vector.broadcast %188 : vector<2x1xi1> to vector<2x32xi1>
    %190 = arith.select %189, %187, %98 : vector<2x32xi1>, vector<2x32xf32>
    %191 = vector.shape_cast %113 : vector<2x1xi1> to vector<2x1xi1>
    %192 = vector.broadcast %191 : vector<2x1xi1> to vector<2x32xi1>
    %193 = arith.select %192, %185, %101 : vector<2x32xi1>, vector<2x32xf32>
    %cst_59 = arith.constant 0.000000e+00 : f32
    %194 = vector.shape_cast %113 : vector<2x1xi1> to vector<2x1xi1>
    %195 = vector.broadcast %194 : vector<2x1xi1> to vector<2x32xi1>
    %196 = vector.broadcast %cst_59 : f32 to vector<2x32xf32>
    %197 = arith.select %195, %187, %196 : vector<2x32xi1>, vector<2x32xf32>
    %198 = arith.index_cast %c1_i32 : i32 to index
    %c0_60 = arith.constant 0 : index
    %c0_61 = arith.constant 0 : index
    %199 = vector.load %arg9[%198, %c0_60, %c0_61] : memref<8x2x32xf32, #tpu.memory_space<vmem>>, vector<1x2x32xf32>
    %200 = vector.shape_cast %199 : vector<1x2x32xf32> to vector<2x32xf32>
    %201 = vector.shape_cast %197 : vector<2x32xf32> to vector<1x2x32xf32>
    tpu.vector_store %arg9[%198, %c0_60, %c0_61], %201 {strides = array<i32>} : memref<8x2x32xf32, #tpu.memory_space<vmem>>, vector<1x2x32xf32>,
    %c2_i32 = arith.constant 2 : i32
    %c8_i32_62 = arith.constant 8 : i32
    %202 = arith.muli %arg1, %c8_i32_62 : i32
    %203 = arith.addi %202, %c2_i32 : i32
    %204 = vector.broadcast %203 : i32 to vector<2x1xi32>
    %205 = arith.cmpi slt, %204, %13 : vector<2x1xi32>
    %206 = arith.index_cast %c2_i32 : i32 to index
    %c0_63 = arith.constant 0 : index
    %c0_64 = arith.constant 0 : index
    %207 = vector.load %arg11[%206, %c0_63, %c0_64] : memref<8x2x128xf32, #tpu.memory_space<vmem>>, vector<1x2x128xf32>
    %208 = vector.shape_cast %207 : vector<1x2x128xf32> to vector<2x128xf32>
    %209 = arith.truncf %148 : vector<2x32xf32> to vector<2x32xbf16>
    %c0_65 = arith.constant 0 : index
    %c0_66 = arith.constant 0 : index
    %210 = vector.load %arg6[%c0_65, %c0_66] : memref<32x128xbf16, #tpu.memory_space<vmem>>, vector<32x128xbf16>
    %cst_67 = arith.constant dense<0.000000e+00> : vector<2x128xf32>
    %211 = tpu.matmul %209, %210, %cst_67 {dimension_numbers = #tpu.dot_dimension_numbers<[1], [0], [0], [1], [0, 0, 1, 1], [], []>} : vector<2x32xbf16>, vector<32x128xbf16>, vector<2x128xf32> -> vector<2x128xf32>
    %212 = arith.addf %208, %211 : vector<2x128xf32>
    %213 = vector.extract_strided_slice %212 {offsets = [0, 0], sizes = [2, 32], strides = [1, 1]} : vector<2x128xf32> to vector<2x32xf32>
    %214 = arith.negf %213 : vector<2x32xf32>
    %215 = math.exp %214 : vector<2x32xf32>
    %cst_68 = arith.constant 1.000000e+00 : f32
    %216 = vector.broadcast %cst_68 : f32 to vector<2x32xf32>
    %217 = arith.addf %216, %215 : vector<2x32xf32>
    %218 = arith.divf %216, %217 : vector<2x32xf32>
    %219 = vector.extract_strided_slice %212 {offsets = [0, 32], sizes = [2, 32], strides = [1, 1]} : vector<2x128xf32> to vector<2x32xf32>
    %220 = arith.negf %219 : vector<2x32xf32>
    %221 = math.exp %220 : vector<2x32xf32>
    %cst_69 = arith.constant 1.000000e+00 : f32
    %222 = vector.broadcast %cst_69 : f32 to vector<2x32xf32>
    %223 = arith.addf %222, %221 : vector<2x32xf32>
    %224 = arith.divf %222, %223 : vector<2x32xf32>
    %225 = vector.extract_strided_slice %212 {offsets = [0, 64], sizes = [2, 32], strides = [1, 1]} : vector<2x128xf32> to vector<2x32xf32>
    %226 = math.tanh %225 : vector<2x32xf32>
    %227 = vector.extract_strided_slice %212 {offsets = [0, 96], sizes = [2, 32], strides = [1, 1]} : vector<2x128xf32> to vector<2x32xf32>
    %228 = arith.negf %227 : vector<2x32xf32>
    %229 = math.exp %228 : vector<2x32xf32>
    %cst_70 = arith.constant 1.000000e+00 : f32
    %230 = vector.broadcast %cst_70 : f32 to vector<2x32xf32>
    %231 = arith.addf %230, %229 : vector<2x32xf32>
    %232 = arith.divf %230, %231 : vector<2x32xf32>
    %233 = arith.mulf %224, %151 : vector<2x32xf32>
    %234 = arith.mulf %218, %226 : vector<2x32xf32>
    %235 = arith.addf %233, %234 : vector<2x32xf32>
    %236 = math.tanh %235 : vector<2x32xf32>
    %237 = arith.mulf %232, %236 : vector<2x32xf32>
    %238 = vector.shape_cast %205 : vector<2x1xi1> to vector<2x1xi1>
    %239 = vector.broadcast %238 : vector<2x1xi1> to vector<2x32xi1>
    %240 = arith.select %239, %237, %148 : vector<2x32xi1>, vector<2x32xf32>
    %241 = vector.shape_cast %205 : vector<2x1xi1> to vector<2x1xi1>
    %242 = vector.broadcast %241 : vector<2x1xi1> to vector<2x32xi1>
    %243 = arith.select %242, %235, %151 : vector<2x32xi1>, vector<2x32xf32>
    %cst_71 = arith.constant 0.000000e+00 : f32
    %244 = vector.shape_cast %205 : vector<2x1xi1> to vector<2x1xi1>
    %245 = vector.broadcast %244 : vector<2x1xi1> to vector<2x32xi1>
    %246 = vector.broadcast %cst_71 : f32 to vector<2x32xf32>
    %247 = arith.select %245, %237, %246 : vector<2x32xi1>, vector<2x32xf32>
    %248 = tpu.concatenate %247, %190 in 1 : vector<2x32xf32>, vector<2x32xf32> -> vector<2x64xf32>
    %249 = arith.truncf %248 : vector<2x64xf32> to vector<2x64xbf16>
    %c0_72 = arith.constant 0 : index
    %c0_73 = arith.constant 0 : index
    %250 = vector.load %arg7[%c0_72, %c0_73] : memref<64x128xbf16, #tpu.memory_space<vmem>>, vector<64x128xbf16>
    %cst_74 = arith.constant dense<0.000000e+00> : vector<2x128xf32>
    %251 = tpu.matmul %249, %250, %cst_74 {dimension_numbers = #tpu.dot_dimension_numbers<[1], [0], [0], [1], [0, 0, 1, 1], [], []>} : vector<2x64xbf16>, vector<64x128xbf16>, vector<2x128xf32> -> vector<2x128xf32>
    %c0_75 = arith.constant 0 : index
    %c0_76 = arith.constant 0 : index
    %252 = vector.load %arg8[%c0_75, %c0_76] : memref<1x128xf32, #tpu.memory_space<vmem>>, vector<1x128xf32>
    %253 = vector.broadcast %252 : vector<1x128xf32> to vector<2x128xf32>
    %254 = arith.addf %251, %253 : vector<2x128xf32>
    %255 = vector.extract_strided_slice %254 {offsets = [0, 0], sizes = [2, 32], strides = [1, 1]} : vector<2x128xf32> to vector<2x32xf32>
    %256 = arith.negf %255 : vector<2x32xf32>
    %257 = math.exp %256 : vector<2x32xf32>
    %cst_77 = arith.constant 1.000000e+00 : f32
    %258 = vector.broadcast %cst_77 : f32 to vector<2x32xf32>
    %259 = arith.addf %258, %257 : vector<2x32xf32>
    %260 = arith.divf %258, %259 : vector<2x32xf32>
    %261 = vector.extract_strided_slice %254 {offsets = [0, 32], sizes = [2, 32], strides = [1, 1]} : vector<2x128xf32> to vector<2x32xf32>
    %262 = arith.negf %261 : vector<2x32xf32>
    %263 = math.exp %262 : vector<2x32xf32>
    %cst_78 = arith.constant 1.000000e+00 : f32
    %264 = vector.broadcast %cst_78 : f32 to vector<2x32xf32>
    %265 = arith.addf %264, %263 : vector<2x32xf32>
    %266 = arith.divf %264, %265 : vector<2x32xf32>
    %267 = vector.extract_strided_slice %254 {offsets = [0, 64], sizes = [2, 32], strides = [1, 1]} : vector<2x128xf32> to vector<2x32xf32>
    %268 = math.tanh %267 : vector<2x32xf32>
    %269 = vector.extract_strided_slice %254 {offsets = [0, 96], sizes = [2, 32], strides = [1, 1]} : vector<2x128xf32> to vector<2x32xf32>
    %270 = arith.negf %269 : vector<2x32xf32>
    %271 = math.exp %270 : vector<2x32xf32>
    %cst_79 = arith.constant 1.000000e+00 : f32
    %272 = vector.broadcast %cst_79 : f32 to vector<2x32xf32>
    %273 = arith.addf %272, %271 : vector<2x32xf32>
    %274 = arith.divf %272, %273 : vector<2x32xf32>
    %275 = arith.mulf %266, %193 : vector<2x32xf32>
    %276 = arith.mulf %260, %268 : vector<2x32xf32>
    %277 = arith.addf %275, %276 : vector<2x32xf32>
    %278 = math.tanh %277 : vector<2x32xf32>
    %279 = arith.mulf %274, %278 : vector<2x32xf32>
    %280 = vector.shape_cast %205 : vector<2x1xi1> to vector<2x1xi1>
    %281 = vector.broadcast %280 : vector<2x1xi1> to vector<2x32xi1>
    %282 = arith.select %281, %279, %190 : vector<2x32xi1>, vector<2x32xf32>
    %283 = vector.shape_cast %205 : vector<2x1xi1> to vector<2x1xi1>
    %284 = vector.broadcast %283 : vector<2x1xi1> to vector<2x32xi1>
    %285 = arith.select %284, %277, %193 : vector<2x32xi1>, vector<2x32xf32>
    %cst_80 = arith.constant 0.000000e+00 : f32
    %286 = vector.shape_cast %205 : vector<2x1xi1> to vector<2x1xi1>
    %287 = vector.broadcast %286 : vector<2x1xi1> to vector<2x32xi1>
    %288 = vector.broadcast %cst_80 : f32 to vector<2x32xf32>
    %289 = arith.select %287, %279, %288 : vector<2x32xi1>, vector<2x32xf32>
    %290 = arith.index_cast %c2_i32 : i32 to index
    %c0_81 = arith.constant 0 : index
    %c0_82 = arith.constant 0 : index
    %291 = vector.load %arg9[%290, %c0_81, %c0_82] : memref<8x2x32xf32, #tpu.memory_space<vmem>>, vector<1x2x32xf32>
    %292 = vector.shape_cast %291 : vector<1x2x32xf32> to vector<2x32xf32>
    %293 = vector.shape_cast %289 : vector<2x32xf32> to vector<1x2x32xf32>
    tpu.vector_store %arg9[%290, %c0_81, %c0_82], %293 {strides = array<i32>} : memref<8x2x32xf32, #tpu.memory_space<vmem>>, vector<1x2x32xf32>,
    %c3_i32 = arith.constant 3 : i32
    %c8_i32_83 = arith.constant 8 : i32
    %294 = arith.muli %arg1, %c8_i32_83 : i32
    %295 = arith.addi %294, %c3_i32 : i32
    %296 = vector.broadcast %295 : i32 to vector<2x1xi32>
    %297 = arith.cmpi slt, %296, %13 : vector<2x1xi32>
    %298 = arith.index_cast %c3_i32 : i32 to index
    %c0_84 = arith.constant 0 : index
    %c0_85 = arith.constant 0 : index
    %299 = vector.load %arg11[%298, %c0_84, %c0_85] : memref<8x2x128xf32, #tpu.memory_space<vmem>>, vector<1x2x128xf32>
    %300 = vector.shape_cast %299 : vector<1x2x128xf32> to vector<2x128xf32>
    %301 = arith.truncf %240 : vector<2x32xf32> to vector<2x32xbf16>
    %c0_86 = arith.constant 0 : index
    %c0_87 = arith.constant 0 : index
    %302 = vector.load %arg6[%c0_86, %c0_87] : memref<32x128xbf16, #tpu.memory_space<vmem>>, vector<32x128xbf16>
    %cst_88 = arith.constant dense<0.000000e+00> : vector<2x128xf32>
    %303 = tpu.matmul %301, %302, %cst_88 {dimension_numbers = #tpu.dot_dimension_numbers<[1], [0], [0], [1], [0, 0, 1, 1], [], []>} : vector<2x32xbf16>, vector<32x128xbf16>, vector<2x128xf32> -> vector<2x128xf32>
    %304 = arith.addf %300, %303 : vector<2x128xf32>
    %305 = vector.extract_strided_slice %304 {offsets = [0, 0], sizes = [2, 32], strides = [1, 1]} : vector<2x128xf32> to vector<2x32xf32>
    %306 = arith.negf %305 : vector<2x32xf32>
    %307 = math.exp %306 : vector<2x32xf32>
    %cst_89 = arith.constant 1.000000e+00 : f32
    %308 = vector.broadcast %cst_89 : f32 to vector<2x32xf32>
    %309 = arith.addf %308, %307 : vector<2x32xf32>
    %310 = arith.divf %308, %309 : vector<2x32xf32>
    %311 = vector.extract_strided_slice %304 {offsets = [0, 32], sizes = [2, 32], strides = [1, 1]} : vector<2x128xf32> to vector<2x32xf32>
    %312 = arith.negf %311 : vector<2x32xf32>
    %313 = math.exp %312 : vector<2x32xf32>
    %cst_90 = arith.constant 1.000000e+00 : f32
    %314 = vector.broadcast %cst_90 : f32 to vector<2x32xf32>
    %315 = arith.addf %314, %313 : vector<2x32xf32>
    %316 = arith.divf %314, %315 : vector<2x32xf32>
    %317 = vector.extract_strided_slice %304 {offsets = [0, 64], sizes = [2, 32], strides = [1, 1]} : vector<2x128xf32> to vector<2x32xf32>
    %318 = math.tanh %317 : vector<2x32xf32>
    %319 = vector.extract_strided_slice %304 {offsets = [0, 96], sizes = [2, 32], strides = [1, 1]} : vector<2x128xf32> to vector<2x32xf32>
    %320 = arith.negf %319 : vector<2x32xf32>
    %321 = math.exp %320 : vector<2x32xf32>
    %cst_91 = arith.constant 1.000000e+00 : f32
    %322 = vector.broadcast %cst_91 : f32 to vector<2x32xf32>
    %323 = arith.addf %322, %321 : vector<2x32xf32>
    %324 = arith.divf %322, %323 : vector<2x32xf32>
    %325 = arith.mulf %316, %243 : vector<2x32xf32>
    %326 = arith.mulf %310, %318 : vector<2x32xf32>
    %327 = arith.addf %325, %326 : vector<2x32xf32>
    %328 = math.tanh %327 : vector<2x32xf32>
    %329 = arith.mulf %324, %328 : vector<2x32xf32>
    %330 = vector.shape_cast %297 : vector<2x1xi1> to vector<2x1xi1>
    %331 = vector.broadcast %330 : vector<2x1xi1> to vector<2x32xi1>
    %332 = arith.select %331, %329, %240 : vector<2x32xi1>, vector<2x32xf32>
    %333 = vector.shape_cast %297 : vector<2x1xi1> to vector<2x1xi1>
    %334 = vector.broadcast %333 : vector<2x1xi1> to vector<2x32xi1>
    %335 = arith.select %334, %327, %243 : vector<2x32xi1>, vector<2x32xf32>
    %cst_92 = arith.constant 0.000000e+00 : f32
    %336 = vector.shape_cast %297 : vector<2x1xi1> to vector<2x1xi1>
    %337 = vector.broadcast %336 : vector<2x1xi1> to vector<2x32xi1>
    %338 = vector.broadcast %cst_92 : f32 to vector<2x32xf32>
    %339 = arith.select %337, %329, %338 : vector<2x32xi1>, vector<2x32xf32>
    %340 = tpu.concatenate %339, %282 in 1 : vector<2x32xf32>, vector<2x32xf32> -> vector<2x64xf32>
    %341 = arith.truncf %340 : vector<2x64xf32> to vector<2x64xbf16>
    %c0_93 = arith.constant 0 : index
    %c0_94 = arith.constant 0 : index
    %342 = vector.load %arg7[%c0_93, %c0_94] : memref<64x128xbf16, #tpu.memory_space<vmem>>, vector<64x128xbf16>
    %cst_95 = arith.constant dense<0.000000e+00> : vector<2x128xf32>
    %343 = tpu.matmul %341, %342, %cst_95 {dimension_numbers = #tpu.dot_dimension_numbers<[1], [0], [0], [1], [0, 0, 1, 1], [], []>} : vector<2x64xbf16>, vector<64x128xbf16>, vector<2x128xf32> -> vector<2x128xf32>
    %c0_96 = arith.constant 0 : index
    %c0_97 = arith.constant 0 : index
    %344 = vector.load %arg8[%c0_96, %c0_97] : memref<1x128xf32, #tpu.memory_space<vmem>>, vector<1x128xf32>
    %345 = vector.broadcast %344 : vector<1x128xf32> to vector<2x128xf32>
    %346 = arith.addf %343, %345 : vector<2x128xf32>
    %347 = vector.extract_strided_slice %346 {offsets = [0, 0], sizes = [2, 32], strides = [1, 1]} : vector<2x128xf32> to vector<2x32xf32>
    %348 = arith.negf %347 : vector<2x32xf32>
    %349 = math.exp %348 : vector<2x32xf32>
    %cst_98 = arith.constant 1.000000e+00 : f32
    %350 = vector.broadcast %cst_98 : f32 to vector<2x32xf32>
    %351 = arith.addf %350, %349 : vector<2x32xf32>
    %352 = arith.divf %350, %351 : vector<2x32xf32>
    %353 = vector.extract_strided_slice %346 {offsets = [0, 32], sizes = [2, 32], strides = [1, 1]} : vector<2x128xf32> to vector<2x32xf32>
    %354 = arith.negf %353 : vector<2x32xf32>
    %355 = math.exp %354 : vector<2x32xf32>
    %cst_99 = arith.constant 1.000000e+00 : f32
    %356 = vector.broadcast %cst_99 : f32 to vector<2x32xf32>
    %357 = arith.addf %356, %355 : vector<2x32xf32>
    %358 = arith.divf %356, %357 : vector<2x32xf32>
    %359 = vector.extract_strided_slice %346 {offsets = [0, 64], sizes = [2, 32], strides = [1, 1]} : vector<2x128xf32> to vector<2x32xf32>
    %360 = math.tanh %359 : vector<2x32xf32>
    %361 = vector.extract_strided_slice %346 {offsets = [0, 96], sizes = [2, 32], strides = [1, 1]} : vector<2x128xf32> to vector<2x32xf32>
    %362 = arith.negf %361 : vector<2x32xf32>
    %363 = math.exp %362 : vector<2x32xf32>
    %cst_100 = arith.constant 1.000000e+00 : f32
    %364 = vector.broadcast %cst_100 : f32 to vector<2x32xf32>
    %365 = arith.addf %364, %363 : vector<2x32xf32>
    %366 = arith.divf %364, %365 : vector<2x32xf32>
    %367 = arith.mulf %358, %285 : vector<2x32xf32>
    %368 = arith.mulf %352, %360 : vector<2x32xf32>
    %369 = arith.addf %367, %368 : vector<2x32xf32>
    %370 = math.tanh %369 : vector<2x32xf32>
    %371 = arith.mulf %366, %370 : vector<2x32xf32>
    %372 = vector.shape_cast %297 : vector<2x1xi1> to vector<2x1xi1>
    %373 = vector.broadcast %372 : vector<2x1xi1> to vector<2x32xi1>
    %374 = arith.select %373, %371, %282 : vector<2x32xi1>, vector<2x32xf32>
    %375 = vector.shape_cast %297 : vector<2x1xi1> to vector<2x1xi1>
    %376 = vector.broadcast %375 : vector<2x1xi1> to vector<2x32xi1>
    %377 = arith.select %376, %369, %285 : vector<2x32xi1>, vector<2x32xf32>
    %cst_101 = arith.constant 0.000000e+00 : f32
    %378 = vector.shape_cast %297 : vector<2x1xi1> to vector<2x1xi1>
    %379 = vector.broadcast %378 : vector<2x1xi1> to vector<2x32xi1>
    %380 = vector.broadcast %cst_101 : f32 to vector<2x32xf32>
    %381 = arith.select %379, %371, %380 : vector<2x32xi1>, vector<2x32xf32>
    %382 = arith.index_cast %c3_i32 : i32 to index
    %c0_102 = arith.constant 0 : index
    %c0_103 = arith.constant 0 : index
    %383 = vector.load %arg9[%382, %c0_102, %c0_103] : memref<8x2x32xf32, #tpu.memory_space<vmem>>, vector<1x2x32xf32>
    %384 = vector.shape_cast %383 : vector<1x2x32xf32> to vector<2x32xf32>
    %385 = vector.shape_cast %381 : vector<2x32xf32> to vector<1x2x32xf32>
    tpu.vector_store %arg9[%382, %c0_102, %c0_103], %385 {strides = array<i32>} : memref<8x2x32xf32, #tpu.memory_space<vmem>>, vector<1x2x32xf32>,
    %c4_i32 = arith.constant 4 : i32
    %c8_i32_104 = arith.constant 8 : i32
    %386 = arith.muli %arg1, %c8_i32_104 : i32
    %387 = arith.addi %386, %c4_i32 : i32
    %388 = vector.broadcast %387 : i32 to vector<2x1xi32>
    %389 = arith.cmpi slt, %388, %13 : vector<2x1xi32>
    %390 = arith.index_cast %c4_i32 : i32 to index
    %c0_105 = arith.constant 0 : index
    %c0_106 = arith.constant 0 : index
    %391 = vector.load %arg11[%390, %c0_105, %c0_106] : memref<8x2x128xf32, #tpu.memory_space<vmem>>, vector<1x2x128xf32>
    %392 = vector.shape_cast %391 : vector<1x2x128xf32> to vector<2x128xf32>
    %393 = arith.truncf %332 : vector<2x32xf32> to vector<2x32xbf16>
    %c0_107 = arith.constant 0 : index
    %c0_108 = arith.constant 0 : index
    %394 = vector.load %arg6[%c0_107, %c0_108] : memref<32x128xbf16, #tpu.memory_space<vmem>>, vector<32x128xbf16>
    %cst_109 = arith.constant dense<0.000000e+00> : vector<2x128xf32>
    %395 = tpu.matmul %393, %394, %cst_109 {dimension_numbers = #tpu.dot_dimension_numbers<[1], [0], [0], [1], [0, 0, 1, 1], [], []>} : vector<2x32xbf16>, vector<32x128xbf16>, vector<2x128xf32> -> vector<2x128xf32>
    %396 = arith.addf %392, %395 : vector<2x128xf32>
    %397 = vector.extract_strided_slice %396 {offsets = [0, 0], sizes = [2, 32], strides = [1, 1]} : vector<2x128xf32> to vector<2x32xf32>
    %398 = arith.negf %397 : vector<2x32xf32>
    %399 = math.exp %398 : vector<2x32xf32>
    %cst_110 = arith.constant 1.000000e+00 : f32
    %400 = vector.broadcast %cst_110 : f32 to vector<2x32xf32>
    %401 = arith.addf %400, %399 : vector<2x32xf32>
    %402 = arith.divf %400, %401 : vector<2x32xf32>
    %403 = vector.extract_strided_slice %396 {offsets = [0, 32], sizes = [2, 32], strides = [1, 1]} : vector<2x128xf32> to vector<2x32xf32>
    %404 = arith.negf %403 : vector<2x32xf32>
    %405 = math.exp %404 : vector<2x32xf32>
    %cst_111 = arith.constant 1.000000e+00 : f32
    %406 = vector.broadcast %cst_111 : f32 to vector<2x32xf32>
    %407 = arith.addf %406, %405 : vector<2x32xf32>
    %408 = arith.divf %406, %407 : vector<2x32xf32>
    %409 = vector.extract_strided_slice %396 {offsets = [0, 64], sizes = [2, 32], strides = [1, 1]} : vector<2x128xf32> to vector<2x32xf32>
    %410 = math.tanh %409 : vector<2x32xf32>
    %411 = vector.extract_strided_slice %396 {offsets = [0, 96], sizes = [2, 32], strides = [1, 1]} : vector<2x128xf32> to vector<2x32xf32>
    %412 = arith.negf %411 : vector<2x32xf32>
    %413 = math.exp %412 : vector<2x32xf32>
    %cst_112 = arith.constant 1.000000e+00 : f32
    %414 = vector.broadcast %cst_112 : f32 to vector<2x32xf32>
    %415 = arith.addf %414, %413 : vector<2x32xf32>
    %416 = arith.divf %414, %415 : vector<2x32xf32>
    %417 = arith.mulf %408, %335 : vector<2x32xf32>
    %418 = arith.mulf %402, %410 : vector<2x32xf32>
    %419 = arith.addf %417, %418 : vector<2x32xf32>
    %420 = math.tanh %419 : vector<2x32xf32>
    %421 = arith.mulf %416, %420 : vector<2x32xf32>
    %422 = vector.shape_cast %389 : vector<2x1xi1> to vector<2x1xi1>
    %423 = vector.broadcast %422 : vector<2x1xi1> to vector<2x32xi1>
    %424 = arith.select %423, %421, %332 : vector<2x32xi1>, vector<2x32xf32>
    %425 = vector.shape_cast %389 : vector<2x1xi1> to vector<2x1xi1>
    %426 = vector.broadcast %425 : vector<2x1xi1> to vector<2x32xi1>
    %427 = arith.select %426, %419, %335 : vector<2x32xi1>, vector<2x32xf32>
    %cst_113 = arith.constant 0.000000e+00 : f32
    %428 = vector.shape_cast %389 : vector<2x1xi1> to vector<2x1xi1>
    %429 = vector.broadcast %428 : vector<2x1xi1> to vector<2x32xi1>
    %430 = vector.broadcast %cst_113 : f32 to vector<2x32xf32>
    %431 = arith.select %429, %421, %430 : vector<2x32xi1>, vector<2x32xf32>
    %432 = tpu.concatenate %431, %374 in 1 : vector<2x32xf32>, vector<2x32xf32> -> vector<2x64xf32>
    %433 = arith.truncf %432 : vector<2x64xf32> to vector<2x64xbf16>
    %c0_114 = arith.constant 0 : index
    %c0_115 = arith.constant 0 : index
    %434 = vector.load %arg7[%c0_114, %c0_115] : memref<64x128xbf16, #tpu.memory_space<vmem>>, vector<64x128xbf16>
    %cst_116 = arith.constant dense<0.000000e+00> : vector<2x128xf32>
    %435 = tpu.matmul %433, %434, %cst_116 {dimension_numbers = #tpu.dot_dimension_numbers<[1], [0], [0], [1], [0, 0, 1, 1], [], []>} : vector<2x64xbf16>, vector<64x128xbf16>, vector<2x128xf32> -> vector<2x128xf32>
    %c0_117 = arith.constant 0 : index
    %c0_118 = arith.constant 0 : index
    %436 = vector.load %arg8[%c0_117, %c0_118] : memref<1x128xf32, #tpu.memory_space<vmem>>, vector<1x128xf32>
    %437 = vector.broadcast %436 : vector<1x128xf32> to vector<2x128xf32>
    %438 = arith.addf %435, %437 : vector<2x128xf32>
    %439 = vector.extract_strided_slice %438 {offsets = [0, 0], sizes = [2, 32], strides = [1, 1]} : vector<2x128xf32> to vector<2x32xf32>
    %440 = arith.negf %439 : vector<2x32xf32>
    %441 = math.exp %440 : vector<2x32xf32>
    %cst_119 = arith.constant 1.000000e+00 : f32
    %442 = vector.broadcast %cst_119 : f32 to vector<2x32xf32>
    %443 = arith.addf %442, %441 : vector<2x32xf32>
    %444 = arith.divf %442, %443 : vector<2x32xf32>
    %445 = vector.extract_strided_slice %438 {offsets = [0, 32], sizes = [2, 32], strides = [1, 1]} : vector<2x128xf32> to vector<2x32xf32>
    %446 = arith.negf %445 : vector<2x32xf32>
    %447 = math.exp %446 : vector<2x32xf32>
    %cst_120 = arith.constant 1.000000e+00 : f32
    %448 = vector.broadcast %cst_120 : f32 to vector<2x32xf32>
    %449 = arith.addf %448, %447 : vector<2x32xf32>
    %450 = arith.divf %448, %449 : vector<2x32xf32>
    %451 = vector.extract_strided_slice %438 {offsets = [0, 64], sizes = [2, 32], strides = [1, 1]} : vector<2x128xf32> to vector<2x32xf32>
    %452 = math.tanh %451 : vector<2x32xf32>
    %453 = vector.extract_strided_slice %438 {offsets = [0, 96], sizes = [2, 32], strides = [1, 1]} : vector<2x128xf32> to vector<2x32xf32>
    %454 = arith.negf %453 : vector<2x32xf32>
    %455 = math.exp %454 : vector<2x32xf32>
    %cst_121 = arith.constant 1.000000e+00 : f32
    %456 = vector.broadcast %cst_121 : f32 to vector<2x32xf32>
    %457 = arith.addf %456, %455 : vector<2x32xf32>
    %458 = arith.divf %456, %457 : vector<2x32xf32>
    %459 = arith.mulf %450, %377 : vector<2x32xf32>
    %460 = arith.mulf %444, %452 : vector<2x32xf32>
    %461 = arith.addf %459, %460 : vector<2x32xf32>
    %462 = math.tanh %461 : vector<2x32xf32>
    %463 = arith.mulf %458, %462 : vector<2x32xf32>
    %464 = vector.shape_cast %389 : vector<2x1xi1> to vector<2x1xi1>
    %465 = vector.broadcast %464 : vector<2x1xi1> to vector<2x32xi1>
    %466 = arith.select %465, %463, %374 : vector<2x32xi1>, vector<2x32xf32>
    %467 = vector.shape_cast %389 : vector<2x1xi1> to vector<2x1xi1>
    %468 = vector.broadcast %467 : vector<2x1xi1> to vector<2x32xi1>
    %469 = arith.select %468, %461, %377 : vector<2x32xi1>, vector<2x32xf32>
    %cst_122 = arith.constant 0.000000e+00 : f32
    %470 = vector.shape_cast %389 : vector<2x1xi1> to vector<2x1xi1>
    %471 = vector.broadcast %470 : vector<2x1xi1> to vector<2x32xi1>
    %472 = vector.broadcast %cst_122 : f32 to vector<2x32xf32>
    %473 = arith.select %471, %463, %472 : vector<2x32xi1>, vector<2x32xf32>
    %474 = arith.index_cast %c4_i32 : i32 to index
    %c0_123 = arith.constant 0 : index
    %c0_124 = arith.constant 0 : index
    %475 = vector.load %arg9[%474, %c0_123, %c0_124] : memref<8x2x32xf32, #tpu.memory_space<vmem>>, vector<1x2x32xf32>
    %476 = vector.shape_cast %475 : vector<1x2x32xf32> to vector<2x32xf32>
    %477 = vector.shape_cast %473 : vector<2x32xf32> to vector<1x2x32xf32>
    tpu.vector_store %arg9[%474, %c0_123, %c0_124], %477 {strides = array<i32>} : memref<8x2x32xf32, #tpu.memory_space<vmem>>, vector<1x2x32xf32>,
    %c5_i32 = arith.constant 5 : i32
    %c8_i32_125 = arith.constant 8 : i32
    %478 = arith.muli %arg1, %c8_i32_125 : i32
    %479 = arith.addi %478, %c5_i32 : i32
    %480 = vector.broadcast %479 : i32 to vector<2x1xi32>
    %481 = arith.cmpi slt, %480, %13 : vector<2x1xi32>
    %482 = arith.index_cast %c5_i32 : i32 to index
    %c0_126 = arith.constant 0 : index
    %c0_127 = arith.constant 0 : index
    %483 = vector.load %arg11[%482, %c0_126, %c0_127] : memref<8x2x128xf32, #tpu.memory_space<vmem>>, vector<1x2x128xf32>
    %484 = vector.shape_cast %483 : vector<1x2x128xf32> to vector<2x128xf32>
    %485 = arith.truncf %424 : vector<2x32xf32> to vector<2x32xbf16>
    %c0_128 = arith.constant 0 : index
    %c0_129 = arith.constant 0 : index
    %486 = vector.load %arg6[%c0_128, %c0_129] : memref<32x128xbf16, #tpu.memory_space<vmem>>, vector<32x128xbf16>
    %cst_130 = arith.constant dense<0.000000e+00> : vector<2x128xf32>
    %487 = tpu.matmul %485, %486, %cst_130 {dimension_numbers = #tpu.dot_dimension_numbers<[1], [0], [0], [1], [0, 0, 1, 1], [], []>} : vector<2x32xbf16>, vector<32x128xbf16>, vector<2x128xf32> -> vector<2x128xf32>
    %488 = arith.addf %484, %487 : vector<2x128xf32>
    %489 = vector.extract_strided_slice %488 {offsets = [0, 0], sizes = [2, 32], strides = [1, 1]} : vector<2x128xf32> to vector<2x32xf32>
    %490 = arith.negf %489 : vector<2x32xf32>
    %491 = math.exp %490 : vector<2x32xf32>
    %cst_131 = arith.constant 1.000000e+00 : f32
    %492 = vector.broadcast %cst_131 : f32 to vector<2x32xf32>
    %493 = arith.addf %492, %491 : vector<2x32xf32>
    %494 = arith.divf %492, %493 : vector<2x32xf32>
    %495 = vector.extract_strided_slice %488 {offsets = [0, 32], sizes = [2, 32], strides = [1, 1]} : vector<2x128xf32> to vector<2x32xf32>
    %496 = arith.negf %495 : vector<2x32xf32>
    %497 = math.exp %496 : vector<2x32xf32>
    %cst_132 = arith.constant 1.000000e+00 : f32
    %498 = vector.broadcast %cst_132 : f32 to vector<2x32xf32>
    %499 = arith.addf %498, %497 : vector<2x32xf32>
    %500 = arith.divf %498, %499 : vector<2x32xf32>
    %501 = vector.extract_strided_slice %488 {offsets = [0, 64], sizes = [2, 32], strides = [1, 1]} : vector<2x128xf32> to vector<2x32xf32>
    %502 = math.tanh %501 : vector<2x32xf32>
    %503 = vector.extract_strided_slice %488 {offsets = [0, 96], sizes = [2, 32], strides = [1, 1]} : vector<2x128xf32> to vector<2x32xf32>
    %504 = arith.negf %503 : vector<2x32xf32>
    %505 = math.exp %504 : vector<2x32xf32>
    %cst_133 = arith.constant 1.000000e+00 : f32
    %506 = vector.broadcast %cst_133 : f32 to vector<2x32xf32>
    %507 = arith.addf %506, %505 : vector<2x32xf32>
    %508 = arith.divf %506, %507 : vector<2x32xf32>
    %509 = arith.mulf %500, %427 : vector<2x32xf32>
    %510 = arith.mulf %494, %502 : vector<2x32xf32>
    %511 = arith.addf %509, %510 : vector<2x32xf32>
    %512 = math.tanh %511 : vector<2x32xf32>
    %513 = arith.mulf %508, %512 : vector<2x32xf32>
    %514 = vector.shape_cast %481 : vector<2x1xi1> to vector<2x1xi1>
    %515 = vector.broadcast %514 : vector<2x1xi1> to vector<2x32xi1>
    %516 = arith.select %515, %513, %424 : vector<2x32xi1>, vector<2x32xf32>
    %517 = vector.shape_cast %481 : vector<2x1xi1> to vector<2x1xi1>
    %518 = vector.broadcast %517 : vector<2x1xi1> to vector<2x32xi1>
    %519 = arith.select %518, %511, %427 : vector<2x32xi1>, vector<2x32xf32>
    %cst_134 = arith.constant 0.000000e+00 : f32
    %520 = vector.shape_cast %481 : vector<2x1xi1> to vector<2x1xi1>
    %521 = vector.broadcast %520 : vector<2x1xi1> to vector<2x32xi1>
    %522 = vector.broadcast %cst_134 : f32 to vector<2x32xf32>
    %523 = arith.select %521, %513, %522 : vector<2x32xi1>, vector<2x32xf32>
    %524 = tpu.concatenate %523, %466 in 1 : vector<2x32xf32>, vector<2x32xf32> -> vector<2x64xf32>
    %525 = arith.truncf %524 : vector<2x64xf32> to vector<2x64xbf16>
    %c0_135 = arith.constant 0 : index
    %c0_136 = arith.constant 0 : index
    %526 = vector.load %arg7[%c0_135, %c0_136] : memref<64x128xbf16, #tpu.memory_space<vmem>>, vector<64x128xbf16>
    %cst_137 = arith.constant dense<0.000000e+00> : vector<2x128xf32>
    %527 = tpu.matmul %525, %526, %cst_137 {dimension_numbers = #tpu.dot_dimension_numbers<[1], [0], [0], [1], [0, 0, 1, 1], [], []>} : vector<2x64xbf16>, vector<64x128xbf16>, vector<2x128xf32> -> vector<2x128xf32>
    %c0_138 = arith.constant 0 : index
    %c0_139 = arith.constant 0 : index
    %528 = vector.load %arg8[%c0_138, %c0_139] : memref<1x128xf32, #tpu.memory_space<vmem>>, vector<1x128xf32>
    %529 = vector.broadcast %528 : vector<1x128xf32> to vector<2x128xf32>
    %530 = arith.addf %527, %529 : vector<2x128xf32>
    %531 = vector.extract_strided_slice %530 {offsets = [0, 0], sizes = [2, 32], strides = [1, 1]} : vector<2x128xf32> to vector<2x32xf32>
    %532 = arith.negf %531 : vector<2x32xf32>
    %533 = math.exp %532 : vector<2x32xf32>
    %cst_140 = arith.constant 1.000000e+00 : f32
    %534 = vector.broadcast %cst_140 : f32 to vector<2x32xf32>
    %535 = arith.addf %534, %533 : vector<2x32xf32>
    %536 = arith.divf %534, %535 : vector<2x32xf32>
    %537 = vector.extract_strided_slice %530 {offsets = [0, 32], sizes = [2, 32], strides = [1, 1]} : vector<2x128xf32> to vector<2x32xf32>
    %538 = arith.negf %537 : vector<2x32xf32>
    %539 = math.exp %538 : vector<2x32xf32>
    %cst_141 = arith.constant 1.000000e+00 : f32
    %540 = vector.broadcast %cst_141 : f32 to vector<2x32xf32>
    %541 = arith.addf %540, %539 : vector<2x32xf32>
    %542 = arith.divf %540, %541 : vector<2x32xf32>
    %543 = vector.extract_strided_slice %530 {offsets = [0, 64], sizes = [2, 32], strides = [1, 1]} : vector<2x128xf32> to vector<2x32xf32>
    %544 = math.tanh %543 : vector<2x32xf32>
    %545 = vector.extract_strided_slice %530 {offsets = [0, 96], sizes = [2, 32], strides = [1, 1]} : vector<2x128xf32> to vector<2x32xf32>
    %546 = arith.negf %545 : vector<2x32xf32>
    %547 = math.exp %546 : vector<2x32xf32>
    %cst_142 = arith.constant 1.000000e+00 : f32
    %548 = vector.broadcast %cst_142 : f32 to vector<2x32xf32>
    %549 = arith.addf %548, %547 : vector<2x32xf32>
    %550 = arith.divf %548, %549 : vector<2x32xf32>
    %551 = arith.mulf %542, %469 : vector<2x32xf32>
    %552 = arith.mulf %536, %544 : vector<2x32xf32>
    %553 = arith.addf %551, %552 : vector<2x32xf32>
    %554 = math.tanh %553 : vector<2x32xf32>
    %555 = arith.mulf %550, %554 : vector<2x32xf32>
    %556 = vector.shape_cast %481 : vector<2x1xi1> to vector<2x1xi1>
    %557 = vector.broadcast %556 : vector<2x1xi1> to vector<2x32xi1>
    %558 = arith.select %557, %555, %466 : vector<2x32xi1>, vector<2x32xf32>
    %559 = vector.shape_cast %481 : vector<2x1xi1> to vector<2x1xi1>
    %560 = vector.broadcast %559 : vector<2x1xi1> to vector<2x32xi1>
    %561 = arith.select %560, %553, %469 : vector<2x32xi1>, vector<2x32xf32>
    %cst_143 = arith.constant 0.000000e+00 : f32
    %562 = vector.shape_cast %481 : vector<2x1xi1> to vector<2x1xi1>
    %563 = vector.broadcast %562 : vector<2x1xi1> to vector<2x32xi1>
    %564 = vector.broadcast %cst_143 : f32 to vector<2x32xf32>
    %565 = arith.select %563, %555, %564 : vector<2x32xi1>, vector<2x32xf32>
    %566 = arith.index_cast %c5_i32 : i32 to index
    %c0_144 = arith.constant 0 : index
    %c0_145 = arith.constant 0 : index
    %567 = vector.load %arg9[%566, %c0_144, %c0_145] : memref<8x2x32xf32, #tpu.memory_space<vmem>>, vector<1x2x32xf32>
    %568 = vector.shape_cast %567 : vector<1x2x32xf32> to vector<2x32xf32>
    %569 = vector.shape_cast %565 : vector<2x32xf32> to vector<1x2x32xf32>
    tpu.vector_store %arg9[%566, %c0_144, %c0_145], %569 {strides = array<i32>} : memref<8x2x32xf32, #tpu.memory_space<vmem>>, vector<1x2x32xf32>,
    %c6_i32 = arith.constant 6 : i32
    %c8_i32_146 = arith.constant 8 : i32
    %570 = arith.muli %arg1, %c8_i32_146 : i32
    %571 = arith.addi %570, %c6_i32 : i32
    %572 = vector.broadcast %571 : i32 to vector<2x1xi32>
    %573 = arith.cmpi slt, %572, %13 : vector<2x1xi32>
    %574 = arith.index_cast %c6_i32 : i32 to index
    %c0_147 = arith.constant 0 : index
    %c0_148 = arith.constant 0 : index
    %575 = vector.load %arg11[%574, %c0_147, %c0_148] : memref<8x2x128xf32, #tpu.memory_space<vmem>>, vector<1x2x128xf32>
    %576 = vector.shape_cast %575 : vector<1x2x128xf32> to vector<2x128xf32>
    %577 = arith.truncf %516 : vector<2x32xf32> to vector<2x32xbf16>
    %c0_149 = arith.constant 0 : index
    %c0_150 = arith.constant 0 : index
    %578 = vector.load %arg6[%c0_149, %c0_150] : memref<32x128xbf16, #tpu.memory_space<vmem>>, vector<32x128xbf16>
    %cst_151 = arith.constant dense<0.000000e+00> : vector<2x128xf32>
    %579 = tpu.matmul %577, %578, %cst_151 {dimension_numbers = #tpu.dot_dimension_numbers<[1], [0], [0], [1], [0, 0, 1, 1], [], []>} : vector<2x32xbf16>, vector<32x128xbf16>, vector<2x128xf32> -> vector<2x128xf32>
    %580 = arith.addf %576, %579 : vector<2x128xf32>
    %581 = vector.extract_strided_slice %580 {offsets = [0, 0], sizes = [2, 32], strides = [1, 1]} : vector<2x128xf32> to vector<2x32xf32>
    %582 = arith.negf %581 : vector<2x32xf32>
    %583 = math.exp %582 : vector<2x32xf32>
    %cst_152 = arith.constant 1.000000e+00 : f32
    %584 = vector.broadcast %cst_152 : f32 to vector<2x32xf32>
    %585 = arith.addf %584, %583 : vector<2x32xf32>
    %586 = arith.divf %584, %585 : vector<2x32xf32>
    %587 = vector.extract_strided_slice %580 {offsets = [0, 32], sizes = [2, 32], strides = [1, 1]} : vector<2x128xf32> to vector<2x32xf32>
    %588 = arith.negf %587 : vector<2x32xf32>
    %589 = math.exp %588 : vector<2x32xf32>
    %cst_153 = arith.constant 1.000000e+00 : f32
    %590 = vector.broadcast %cst_153 : f32 to vector<2x32xf32>
    %591 = arith.addf %590, %589 : vector<2x32xf32>
    %592 = arith.divf %590, %591 : vector<2x32xf32>
    %593 = vector.extract_strided_slice %580 {offsets = [0, 64], sizes = [2, 32], strides = [1, 1]} : vector<2x128xf32> to vector<2x32xf32>
    %594 = math.tanh %593 : vector<2x32xf32>
    %595 = vector.extract_strided_slice %580 {offsets = [0, 96], sizes = [2, 32], strides = [1, 1]} : vector<2x128xf32> to vector<2x32xf32>
    %596 = arith.negf %595 : vector<2x32xf32>
    %597 = math.exp %596 : vector<2x32xf32>
    %cst_154 = arith.constant 1.000000e+00 : f32
    %598 = vector.broadcast %cst_154 : f32 to vector<2x32xf32>
    %599 = arith.addf %598, %597 : vector<2x32xf32>
    %600 = arith.divf %598, %599 : vector<2x32xf32>
    %601 = arith.mulf %592, %519 : vector<2x32xf32>
    %602 = arith.mulf %586, %594 : vector<2x32xf32>
    %603 = arith.addf %601, %602 : vector<2x32xf32>
    %604 = math.tanh %603 : vector<2x32xf32>
    %605 = arith.mulf %600, %604 : vector<2x32xf32>
    %606 = vector.shape_cast %573 : vector<2x1xi1> to vector<2x1xi1>
    %607 = vector.broadcast %606 : vector<2x1xi1> to vector<2x32xi1>
    %608 = arith.select %607, %605, %516 : vector<2x32xi1>, vector<2x32xf32>
    %609 = vector.shape_cast %573 : vector<2x1xi1> to vector<2x1xi1>
    %610 = vector.broadcast %609 : vector<2x1xi1> to vector<2x32xi1>
    %611 = arith.select %610, %603, %519 : vector<2x32xi1>, vector<2x32xf32>
    %cst_155 = arith.constant 0.000000e+00 : f32
    %612 = vector.shape_cast %573 : vector<2x1xi1> to vector<2x1xi1>
    %613 = vector.broadcast %612 : vector<2x1xi1> to vector<2x32xi1>
    %614 = vector.broadcast %cst_155 : f32 to vector<2x32xf32>
    %615 = arith.select %613, %605, %614 : vector<2x32xi1>, vector<2x32xf32>
    %616 = tpu.concatenate %615, %558 in 1 : vector<2x32xf32>, vector<2x32xf32> -> vector<2x64xf32>
    %617 = arith.truncf %616 : vector<2x64xf32> to vector<2x64xbf16>
    %c0_156 = arith.constant 0 : index
    %c0_157 = arith.constant 0 : index
    %618 = vector.load %arg7[%c0_156, %c0_157] : memref<64x128xbf16, #tpu.memory_space<vmem>>, vector<64x128xbf16>
    %cst_158 = arith.constant dense<0.000000e+00> : vector<2x128xf32>
    %619 = tpu.matmul %617, %618, %cst_158 {dimension_numbers = #tpu.dot_dimension_numbers<[1], [0], [0], [1], [0, 0, 1, 1], [], []>} : vector<2x64xbf16>, vector<64x128xbf16>, vector<2x128xf32> -> vector<2x128xf32>
    %c0_159 = arith.constant 0 : index
    %c0_160 = arith.constant 0 : index
    %620 = vector.load %arg8[%c0_159, %c0_160] : memref<1x128xf32, #tpu.memory_space<vmem>>, vector<1x128xf32>
    %621 = vector.broadcast %620 : vector<1x128xf32> to vector<2x128xf32>
    %622 = arith.addf %619, %621 : vector<2x128xf32>
    %623 = vector.extract_strided_slice %622 {offsets = [0, 0], sizes = [2, 32], strides = [1, 1]} : vector<2x128xf32> to vector<2x32xf32>
    %624 = arith.negf %623 : vector<2x32xf32>
    %625 = math.exp %624 : vector<2x32xf32>
    %cst_161 = arith.constant 1.000000e+00 : f32
    %626 = vector.broadcast %cst_161 : f32 to vector<2x32xf32>
    %627 = arith.addf %626, %625 : vector<2x32xf32>
    %628 = arith.divf %626, %627 : vector<2x32xf32>
    %629 = vector.extract_strided_slice %622 {offsets = [0, 32], sizes = [2, 32], strides = [1, 1]} : vector<2x128xf32> to vector<2x32xf32>
    %630 = arith.negf %629 : vector<2x32xf32>
    %631 = math.exp %630 : vector<2x32xf32>
    %cst_162 = arith.constant 1.000000e+00 : f32
    %632 = vector.broadcast %cst_162 : f32 to vector<2x32xf32>
    %633 = arith.addf %632, %631 : vector<2x32xf32>
    %634 = arith.divf %632, %633 : vector<2x32xf32>
    %635 = vector.extract_strided_slice %622 {offsets = [0, 64], sizes = [2, 32], strides = [1, 1]} : vector<2x128xf32> to vector<2x32xf32>
    %636 = math.tanh %635 : vector<2x32xf32>
    %637 = vector.extract_strided_slice %622 {offsets = [0, 96], sizes = [2, 32], strides = [1, 1]} : vector<2x128xf32> to vector<2x32xf32>
    %638 = arith.negf %637 : vector<2x32xf32>
    %639 = math.exp %638 : vector<2x32xf32>
    %cst_163 = arith.constant 1.000000e+00 : f32
    %640 = vector.broadcast %cst_163 : f32 to vector<2x32xf32>
    %641 = arith.addf %640, %639 : vector<2x32xf32>
    %642 = arith.divf %640, %641 : vector<2x32xf32>
    %643 = arith.mulf %634, %561 : vector<2x32xf32>
    %644 = arith.mulf %628, %636 : vector<2x32xf32>
    %645 = arith.addf %643, %644 : vector<2x32xf32>
    %646 = math.tanh %645 : vector<2x32xf32>
    %647 = arith.mulf %642, %646 : vector<2x32xf32>
    %648 = vector.shape_cast %573 : vector<2x1xi1> to vector<2x1xi1>
    %649 = vector.broadcast %648 : vector<2x1xi1> to vector<2x32xi1>
    %650 = arith.select %649, %647, %558 : vector<2x32xi1>, vector<2x32xf32>
    %651 = vector.shape_cast %573 : vector<2x1xi1> to vector<2x1xi1>
    %652 = vector.broadcast %651 : vector<2x1xi1> to vector<2x32xi1>
    %653 = arith.select %652, %645, %561 : vector<2x32xi1>, vector<2x32xf32>
    %cst_164 = arith.constant 0.000000e+00 : f32
    %654 = vector.shape_cast %573 : vector<2x1xi1> to vector<2x1xi1>
    %655 = vector.broadcast %654 : vector<2x1xi1> to vector<2x32xi1>
    %656 = vector.broadcast %cst_164 : f32 to vector<2x32xf32>
    %657 = arith.select %655, %647, %656 : vector<2x32xi1>, vector<2x32xf32>
    %658 = arith.index_cast %c6_i32 : i32 to index
    %c0_165 = arith.constant 0 : index
    %c0_166 = arith.constant 0 : index
    %659 = vector.load %arg9[%658, %c0_165, %c0_166] : memref<8x2x32xf32, #tpu.memory_space<vmem>>, vector<1x2x32xf32>
    %660 = vector.shape_cast %659 : vector<1x2x32xf32> to vector<2x32xf32>
    %661 = vector.shape_cast %657 : vector<2x32xf32> to vector<1x2x32xf32>
    tpu.vector_store %arg9[%658, %c0_165, %c0_166], %661 {strides = array<i32>} : memref<8x2x32xf32, #tpu.memory_space<vmem>>, vector<1x2x32xf32>,
    %c7_i32 = arith.constant 7 : i32
    %c8_i32_167 = arith.constant 8 : i32
    %662 = arith.muli %arg1, %c8_i32_167 : i32
    %663 = arith.addi %662, %c7_i32 : i32
    %664 = vector.broadcast %663 : i32 to vector<2x1xi32>
    %665 = arith.cmpi slt, %664, %13 : vector<2x1xi32>
    %666 = arith.index_cast %c7_i32 : i32 to index
    %c0_168 = arith.constant 0 : index
    %c0_169 = arith.constant 0 : index
    %667 = vector.load %arg11[%666, %c0_168, %c0_169] : memref<8x2x128xf32, #tpu.memory_space<vmem>>, vector<1x2x128xf32>
    %668 = vector.shape_cast %667 : vector<1x2x128xf32> to vector<2x128xf32>
    %669 = arith.truncf %608 : vector<2x32xf32> to vector<2x32xbf16>
    %c0_170 = arith.constant 0 : index
    %c0_171 = arith.constant 0 : index
    %670 = vector.load %arg6[%c0_170, %c0_171] : memref<32x128xbf16, #tpu.memory_space<vmem>>, vector<32x128xbf16>
    %cst_172 = arith.constant dense<0.000000e+00> : vector<2x128xf32>
    %671 = tpu.matmul %669, %670, %cst_172 {dimension_numbers = #tpu.dot_dimension_numbers<[1], [0], [0], [1], [0, 0, 1, 1], [], []>} : vector<2x32xbf16>, vector<32x128xbf16>, vector<2x128xf32> -> vector<2x128xf32>
    %672 = arith.addf %668, %671 : vector<2x128xf32>
    %673 = vector.extract_strided_slice %672 {offsets = [0, 0], sizes = [2, 32], strides = [1, 1]} : vector<2x128xf32> to vector<2x32xf32>
    %674 = arith.negf %673 : vector<2x32xf32>
    %675 = math.exp %674 : vector<2x32xf32>
    %cst_173 = arith.constant 1.000000e+00 : f32
    %676 = vector.broadcast %cst_173 : f32 to vector<2x32xf32>
    %677 = arith.addf %676, %675 : vector<2x32xf32>
    %678 = arith.divf %676, %677 : vector<2x32xf32>
    %679 = vector.extract_strided_slice %672 {offsets = [0, 32], sizes = [2, 32], strides = [1, 1]} : vector<2x128xf32> to vector<2x32xf32>
    %680 = arith.negf %679 : vector<2x32xf32>
    %681 = math.exp %680 : vector<2x32xf32>
    %cst_174 = arith.constant 1.000000e+00 : f32
    %682 = vector.broadcast %cst_174 : f32 to vector<2x32xf32>
    %683 = arith.addf %682, %681 : vector<2x32xf32>
    %684 = arith.divf %682, %683 : vector<2x32xf32>
    %685 = vector.extract_strided_slice %672 {offsets = [0, 64], sizes = [2, 32], strides = [1, 1]} : vector<2x128xf32> to vector<2x32xf32>
    %686 = math.tanh %685 : vector<2x32xf32>
    %687 = vector.extract_strided_slice %672 {offsets = [0, 96], sizes = [2, 32], strides = [1, 1]} : vector<2x128xf32> to vector<2x32xf32>
    %688 = arith.negf %687 : vector<2x32xf32>
    %689 = math.exp %688 : vector<2x32xf32>
    %cst_175 = arith.constant 1.000000e+00 : f32
    %690 = vector.broadcast %cst_175 : f32 to vector<2x32xf32>
    %691 = arith.addf %690, %689 : vector<2x32xf32>
    %692 = arith.divf %690, %691 : vector<2x32xf32>
    %693 = arith.mulf %684, %611 : vector<2x32xf32>
    %694 = arith.mulf %678, %686 : vector<2x32xf32>
    %695 = arith.addf %693, %694 : vector<2x32xf32>
    %696 = math.tanh %695 : vector<2x32xf32>
    %697 = arith.mulf %692, %696 : vector<2x32xf32>
    %698 = vector.shape_cast %665 : vector<2x1xi1> to vector<2x1xi1>
    %699 = vector.broadcast %698 : vector<2x1xi1> to vector<2x32xi1>
    %700 = arith.select %699, %697, %608 : vector<2x32xi1>, vector<2x32xf32>
    %701 = vector.shape_cast %665 : vector<2x1xi1> to vector<2x1xi1>
    %702 = vector.broadcast %701 : vector<2x1xi1> to vector<2x32xi1>
    %703 = arith.select %702, %695, %611 : vector<2x32xi1>, vector<2x32xf32>
    %cst_176 = arith.constant 0.000000e+00 : f32
    %704 = vector.shape_cast %665 : vector<2x1xi1> to vector<2x1xi1>
    %705 = vector.broadcast %704 : vector<2x1xi1> to vector<2x32xi1>
    %706 = vector.broadcast %cst_176 : f32 to vector<2x32xf32>
    %707 = arith.select %705, %697, %706 : vector<2x32xi1>, vector<2x32xf32>
    %708 = tpu.concatenate %707, %650 in 1 : vector<2x32xf32>, vector<2x32xf32> -> vector<2x64xf32>
    %709 = arith.truncf %708 : vector<2x64xf32> to vector<2x64xbf16>
    %c0_177 = arith.constant 0 : index
    %c0_178 = arith.constant 0 : index
    %710 = vector.load %arg7[%c0_177, %c0_178] : memref<64x128xbf16, #tpu.memory_space<vmem>>, vector<64x128xbf16>
    %cst_179 = arith.constant dense<0.000000e+00> : vector<2x128xf32>
    %711 = tpu.matmul %709, %710, %cst_179 {dimension_numbers = #tpu.dot_dimension_numbers<[1], [0], [0], [1], [0, 0, 1, 1], [], []>} : vector<2x64xbf16>, vector<64x128xbf16>, vector<2x128xf32> -> vector<2x128xf32>
    %c0_180 = arith.constant 0 : index
    %c0_181 = arith.constant 0 : index
    %712 = vector.load %arg8[%c0_180, %c0_181] : memref<1x128xf32, #tpu.memory_space<vmem>>, vector<1x128xf32>
    %713 = vector.broadcast %712 : vector<1x128xf32> to vector<2x128xf32>
    %714 = arith.addf %711, %713 : vector<2x128xf32>
    %715 = vector.extract_strided_slice %714 {offsets = [0, 0], sizes = [2, 32], strides = [1, 1]} : vector<2x128xf32> to vector<2x32xf32>
    %716 = arith.negf %715 : vector<2x32xf32>
    %717 = math.exp %716 : vector<2x32xf32>
    %cst_182 = arith.constant 1.000000e+00 : f32
    %718 = vector.broadcast %cst_182 : f32 to vector<2x32xf32>
    %719 = arith.addf %718, %717 : vector<2x32xf32>
    %720 = arith.divf %718, %719 : vector<2x32xf32>
    %721 = vector.extract_strided_slice %714 {offsets = [0, 32], sizes = [2, 32], strides = [1, 1]} : vector<2x128xf32> to vector<2x32xf32>
    %722 = arith.negf %721 : vector<2x32xf32>
    %723 = math.exp %722 : vector<2x32xf32>
    %cst_183 = arith.constant 1.000000e+00 : f32
    %724 = vector.broadcast %cst_183 : f32 to vector<2x32xf32>
    %725 = arith.addf %724, %723 : vector<2x32xf32>
    %726 = arith.divf %724, %725 : vector<2x32xf32>
    %727 = vector.extract_strided_slice %714 {offsets = [0, 64], sizes = [2, 32], strides = [1, 1]} : vector<2x128xf32> to vector<2x32xf32>
    %728 = math.tanh %727 : vector<2x32xf32>
    %729 = vector.extract_strided_slice %714 {offsets = [0, 96], sizes = [2, 32], strides = [1, 1]} : vector<2x128xf32> to vector<2x32xf32>
    %730 = arith.negf %729 : vector<2x32xf32>
    %731 = math.exp %730 : vector<2x32xf32>
    %cst_184 = arith.constant 1.000000e+00 : f32
    %732 = vector.broadcast %cst_184 : f32 to vector<2x32xf32>
    %733 = arith.addf %732, %731 : vector<2x32xf32>
    %734 = arith.divf %732, %733 : vector<2x32xf32>
    %735 = arith.mulf %726, %653 : vector<2x32xf32>
    %736 = arith.mulf %720, %728 : vector<2x32xf32>
    %737 = arith.addf %735, %736 : vector<2x32xf32>
    %738 = math.tanh %737 : vector<2x32xf32>
    %739 = arith.mulf %734, %738 : vector<2x32xf32>
    %740 = vector.shape_cast %665 : vector<2x1xi1> to vector<2x1xi1>
    %741 = vector.broadcast %740 : vector<2x1xi1> to vector<2x32xi1>
    %742 = arith.select %741, %739, %650 : vector<2x32xi1>, vector<2x32xf32>
    %743 = vector.shape_cast %665 : vector<2x1xi1> to vector<2x1xi1>
    %744 = vector.broadcast %743 : vector<2x1xi1> to vector<2x32xi1>
    %745 = arith.select %744, %737, %653 : vector<2x32xi1>, vector<2x32xf32>
    %cst_185 = arith.constant 0.000000e+00 : f32
    %746 = vector.shape_cast %665 : vector<2x1xi1> to vector<2x1xi1>
    %747 = vector.broadcast %746 : vector<2x1xi1> to vector<2x32xi1>
    %748 = vector.broadcast %cst_185 : f32 to vector<2x32xf32>
    %749 = arith.select %747, %739, %748 : vector<2x32xi1>, vector<2x32xf32>
    %750 = arith.index_cast %c7_i32 : i32 to index
    %c0_186 = arith.constant 0 : index
    %c0_187 = arith.constant 0 : index
    %751 = vector.load %arg9[%750, %c0_186, %c0_187] : memref<8x2x32xf32, #tpu.memory_space<vmem>>, vector<1x2x32xf32>
    %752 = vector.shape_cast %751 : vector<1x2x32xf32> to vector<2x32xf32>
    %753 = vector.shape_cast %749 : vector<2x32xf32> to vector<1x2x32xf32>
    tpu.vector_store %arg9[%750, %c0_186, %c0_187], %753 {strides = array<i32>} : memref<8x2x32xf32, #tpu.memory_space<vmem>>, vector<1x2x32xf32>,
    %c8_i32_188 = arith.constant 8 : i32
    %c0_189 = arith.constant 0 : index
    %c0_190 = arith.constant 0 : index
    %754 = vector.load %arg12[%c0_189, %c0_190] : memref<2x32xf32, #tpu.memory_space<vmem>>, vector<2x32xf32>
    tpu.vector_store %arg12[%c0_189, %c0_190], %700 {strides = array<i32>} : memref<2x32xf32, #tpu.memory_space<vmem>>, vector<2x32xf32>,
    %c0_191 = arith.constant 0 : index
    %c0_192 = arith.constant 0 : index
    %755 = vector.load %arg13[%c0_191, %c0_192] : memref<2x32xf32, #tpu.memory_space<vmem>>, vector<2x32xf32>
    tpu.vector_store %arg13[%c0_191, %c0_192], %703 {strides = array<i32>} : memref<2x32xf32, #tpu.memory_space<vmem>>, vector<2x32xf32>,
    %c0_193 = arith.constant 0 : index
    %c0_194 = arith.constant 0 : index
    %756 = vector.load %arg14[%c0_193, %c0_194] : memref<2x32xf32, #tpu.memory_space<vmem>>, vector<2x32xf32>
    tpu.vector_store %arg14[%c0_193, %c0_194], %742 {strides = array<i32>} : memref<2x32xf32, #tpu.memory_space<vmem>>, vector<2x32xf32>,
    %c0_195 = arith.constant 0 : index
    %c0_196 = arith.constant 0 : index
    %757 = vector.load %arg15[%c0_195, %c0_196] : memref<2x32xf32, #tpu.memory_space<vmem>>, vector<2x32xf32>
    tpu.vector_store %arg15[%c0_195, %c0_196], %745 {strides = array<i32>} : memref<2x32xf32, #tpu.memory_space<vmem>>, vector<2x32xf32>,
    %c0_i32_197 = arith.constant 0 : i32
    %758 = arith.cmpi eq, %arg1, %c0_i32_197 : i32
    %759 = arith.extui %758 : i1 to i32
    %c0_i32_198 = arith.constant 0 : i32
    %760 = arith.cmpi ne, %759, %c0_i32_198 : i32
    scf.if %760 {
      %c0_199 = arith.constant 0 : index
      %c0_200 = arith.constant 0 : index
      %761 = vector.load %arg14[%c0_199, %c0_200] : memref<2x32xf32, #tpu.memory_space<vmem>>, vector<2x32xf32>
      %c0_201 = arith.constant 0 : index
      %c0_202 = arith.constant 0 : index
      %762 = vector.load %arg10[%c0_201, %c0_202] : memref<2x32xf32, #tpu.memory_space<vmem>>, vector<2x32xf32>
      tpu.vector_store %arg10[%c0_201, %c0_202], %761 {strides = array<i32>} : memref<2x32xf32, #tpu.memory_space<vmem>>, vector<2x32xf32>,
    } else {
    }
    return
  }
  func.func @transform_0(%arg0: i32, %arg1: i32) -> (i32, i32) {
    %c0_i32 = arith.constant 0 : i32
    %c0_i32_0 = arith.constant 0 : i32
    return %arg0, %c0_i32 : i32, i32
  }
  func.func @transform_1(%arg0: i32, %arg1: i32) -> (i32, i32, i32) {
    %c0_i32 = arith.constant 0 : i32
    %c0_i32_0 = arith.constant 0 : i32
    return %arg1, %arg0, %c0_i32 : i32, i32, i32
  }
  func.func @transform_2(%arg0: i32, %arg1: i32) -> (i32, i32) {
    %c0_i32 = arith.constant 0 : i32
    %c0_i32_0 = arith.constant 0 : i32
    %c0_i32_1 = arith.constant 0 : i32
    return %c0_i32, %c0_i32_0 : i32, i32
  }
  func.func @transform_3(%arg0: i32, %arg1: i32) -> (i32, i32) {
    %c0_i32 = arith.constant 0 : i32
    %c0_i32_0 = arith.constant 0 : i32
    %c0_i32_1 = arith.constant 0 : i32
    return %c0_i32, %c0_i32_0 : i32, i32
  }
  func.func @transform_4(%arg0: i32, %arg1: i32) -> (i32, i32) {
    %c0_i32 = arith.constant 0 : i32
    %c0_i32_0 = arith.constant 0 : i32
    %c0_i32_1 = arith.constant 0 : i32
    return %c0_i32, %c0_i32_0 : i32, i32
  }
  func.func @transform_5(%arg0: i32, %arg1: i32) -> (i32, i32) {
    %c0_i32 = arith.constant 0 : i32
    %c0_i32_0 = arith.constant 0 : i32
    %c0_i32_1 = arith.constant 0 : i32
    return %c0_i32, %c0_i32_0 : i32, i32
  }
  func.func @transform_6(%arg0: i32, %arg1: i32) -> (i32, i32) {
    %c0_i32 = arith.constant 0 : i32
    %c0_i32_0 = arith.constant 0 : i32
    %c0_i32_1 = arith.constant 0 : i32
    return %c0_i32, %c0_i32_0 : i32, i32
  }
  func.func @transform_7(%arg0: i32, %arg1: i32) -> (i32, i32, i32) {
    %c0_i32 = arith.constant 0 : i32
    %c0_i32_0 = arith.constant 0 : i32
    return %arg1, %arg0, %c0_i32 : i32, i32, i32
  }
  func.func @transform_8(%arg0: i32, %arg1: i32) -> (i32, i32) {
    %c0_i32 = arith.constant 0 : i32
    %c0_i32_0 = arith.constant 0 : i32
    return %arg0, %c0_i32 : i32, i32
  }
}

</mosaic_0001>

<llo_original>
// kernel: tpu_custom_call.1
$region0: #{tpu_custom_call.1}
  #allocation0 [shape = 'u32[]', space=smem, size = 0x4, offset = 0x4, fixed_abs, tag = 'smem constant byte address 0x4 - core index']
  #allocation1 [shape = 'u32[144,128]{1,0:T(1,128)}', space=vmem, size = 0x12000, scoped, tag = 'internal scratch']
  #allocation2 [shape = 'f32[8,2,128]{2,1,0:T(2,128)}', space=vmem, size = 0x2000, scoped, tag = 'scratch operand']
  #allocation3 [shape = 'f32[2,32]{1,0:T(2,128)}', space=vmem, size = 0x400, scoped, tag = 'scratch operand']
  #allocation4 [shape = 'f32[2,32]{1,0:T(2,128)}', space=vmem, size = 0x400, scoped, tag = 'scratch operand']
  #allocation5 [shape = 'f32[2,32]{1,0:T(2,128)}', space=vmem, size = 0x400, scoped, tag = 'scratch operand']
  #allocation6 [shape = 'f32[2,32]{1,0:T(2,128)}', space=vmem, size = 0x400, scoped, tag = 'scratch operand']
  %s0 = inlined_call_operand.vmem [shape: s32[2,1], index: 0, kind: input, shape index: {}]
  %s1 = inlined_call_operand.hbm [shape: f32[8,2,32], index: 1, kind: input, shape index: {}]
  %s2 = inlined_call_operand.hbm [shape: bf16[32,128], index: 2, kind: input, shape index: {}]
  %s3 = inlined_call_operand.vmem [shape: f32[1,128], index: 3, kind: input, shape index: {}]
  %s4 = inlined_call_operand.vmem [shape: bf16[32,128], index: 4, kind: input, shape index: {}]
  %s5 = inlined_call_operand.hbm [shape: bf16[64,128], index: 5, kind: input, shape index: {}]
  %s6 = inlined_call_operand.vmem [shape: f32[1,128], index: 6, kind: input, shape index: {}]
  %s7 = inlined_call_operand.hbm [shape: f32[8,2,32], index: 7, kind: output, shape index: {0}]
  %s8 = inlined_call_operand.hbm [shape: f32[2,32], index: 8, kind: output, shape index: {1}]
  %9 = xla_tuple %s7, %s8
  %s10 = sld [smem:[#allocation0]]
  $region66: #{tpu_custom_call.1} parent=0
    _
  %s12 = ssub.s32 1, %s10
  %s13 = scalar_select 0, %s12, %s10
  $region1: #{tpu_custom_call.1} parent=0
    #allocation7 [shape = 'u8[8192]{0}', space=vmem, size = 0x2000, scoped, tag = 'input window, operand 1, single buffered']
    #allocation8 [shape = 's32[1]{0}', space=sflag, size = 0x4, scoped, tag = 'scoped memory for tpu_custom_call.1']
    #allocation9 [shape = 's32[1]{0}', space=sflag, size = 0x4, scoped, tag = 'scoped memory for tpu_custom_call.1']
    #allocation10 [shape = 'u8[8192]{0}', space=vmem, size = 0x2000, scoped, tag = 'input window, operand 2, single buffered']
    #allocation11 [shape = 's32[1]{0}', space=sflag, size = 0x4, scoped, tag = 'scoped memory for tpu_custom_call.1']
    #allocation12 [shape = 'u8[16384]{0}', space=vmem, size = 0x4000, scoped, tag = 'input window, operand 5, single buffered']
    #allocation13 [shape = 'u8[8192]{0}', space=vmem, size = 0x2000, scoped, tag = 'output window, operand 0, single buffered']
    #allocation14 [shape = 'u8[1024]{0}', space=vmem, size = 0x400, scoped, tag = 'output window, operand 1, single buffered']
    #allocation15 [shape = 's32[1]{0}', space=sflag, size = 0x4, scoped, tag = 'scoped memory for tpu_custom_call.1']
    %14 = vsyncpa [#allocation8], 0
    %15 = vsyncpa [#allocation11], 0
    %16 = vsyncpa [#allocation9], 0
    %17 = vsyncpa [#allocation15], 0
    // Predicated region
    $region2: #{tpu_custom_call.1} parent=1 // pred_check
      _
    $region3: #{tpu_custom_call.1} parent=1 // pred_check_branch
      %19 = sbr.rel (0) target = $region5
    $region4: #{tpu_custom_call.1} parent=1 // pred_region
      _
    $region5: #{tpu_custom_call.1} parent=1 // pred_fallthru
      _
    // Predicated region
    $region6: #{tpu_custom_call.1} parent=1 // pred_check
      _
    $region7: #{tpu_custom_call.1} parent=1 // pred_check_branch
      %21 = sbr.rel (0) target = $region9
    $region8: #{tpu_custom_call.1} parent=1 // pred_region
      %s23 = ssub.s32 256, 256
      %24 = vsyncadd [#allocation8], %s23
      %s25 = sshll.u32 [#allocation7], 4
      %s26 = int_to_ptr.vmem [resolvable:$true] %s25
      %31 = dma.hbm_to_vmem [thread:$0]  %s1, 256, %s26, [#allocation8], 32, 32, 2
    $region9: #{tpu_custom_call.1} parent=1 // pred_fallthru
      _
    // Predicated region
    $region10: #{tpu_custom_call.1} parent=1 // pred_check
      _
    $region11: #{tpu_custom_call.1} parent=1 // pred_check_branch
      %33 = sbr.rel (0) target = $region13
    $region12: #{tpu_custom_call.1} parent=1 // pred_region
      %s35 = ssub.s32 256, 256
      %36 = vsyncadd [#allocation11], %s35
      %s37 = sshll.u32 [#allocation10], 4
      %s38 = int_to_ptr.vmem [resolvable:$true] %s37
      %43 = dma.hbm_to_vmem [thread:$0]  %s2, 256, %s38, [#allocation11], 64, 64, 4
    $region13: #{tpu_custom_call.1} parent=1 // pred_fallthru
      _
    // Predicated region
    $region14: #{tpu_custom_call.1} parent=1 // pred_check
      _
    $region15: #{tpu_custom_call.1} parent=1 // pred_check_branch
      %45 = sbr.rel (0) target = $region17
    $region16: #{tpu_custom_call.1} parent=1 // pred_region
      _
    $region17: #{tpu_custom_call.1} parent=1 // pred_fallthru
      _
    // Predicated region
    $region18: #{tpu_custom_call.1} parent=1 // pred_check
      _
    $region19: #{tpu_custom_call.1} parent=1 // pred_check_branch
      %47 = sbr.rel (0) target = $region21
    $region20: #{tpu_custom_call.1} parent=1 // pred_region
      _
    $region21: #{tpu_custom_call.1} parent=1 // pred_fallthru
      _
    // Predicated region
    $region22: #{tpu_custom_call.1} parent=1 // pred_check
      _
    $region23: #{tpu_custom_call.1} parent=1 // pred_check_branch
      %49 = sbr.rel (0) target = $region25
    $region24: #{tpu_custom_call.1} parent=1 // pred_region
      %s51 = ssub.s32 512, 512
      %52 = vsyncadd [#allocation11], %s51
      %s53 = sshll.u32 [#allocation12], 4
      %s54 = int_to_ptr.vmem [resolvable:$true] %s53
      %59 = dma.hbm_to_vmem [thread:$0]  %s5, 512, %s54, [#allocation11], 64, 64, 4
    $region25: #{tpu_custom_call.1} parent=1 // pred_fallthru
      _
    // Predicated region
    $region26: #{tpu_custom_call.1} parent=1 // pred_check
      _
    $region27: #{tpu_custom_call.1} parent=1 // pred_check_branch
      %61 = sbr.rel (0) target = $region29
    $region28: #{tpu_custom_call.1} parent=1 // pred_region
      _
    $region29: #{tpu_custom_call.1} parent=1 // pred_fallthru
      _
    // Predicated region
    $region30: #{tpu_custom_call.1} parent=1 // pred_check
      _
    $region31: #{tpu_custom_call.1} parent=1 // pred_check_branch
      %63 = sbr.rel (0) target = $region33
    $region32: #{tpu_custom_call.1} parent=1 // pred_region
      %64 = dma.done [#allocation8], 256
    $region33: #{tpu_custom_call.1} parent=1 // pred_fallthru
      _
    // Predicated region
    $region34: #{tpu_custom_call.1} parent=1 // pred_check
      _
    $region35: #{tpu_custom_call.1} parent=1 // pred_check_branch
      %66 = sbr.rel (0) target = $region37
    $region36: #{tpu_custom_call.1} parent=1 // pred_region
      %67 = dma.done [#allocation11], 256
    $region37: #{tpu_custom_call.1} parent=1 // pred_fallthru
      _
    // Predicated region
    $region38: #{tpu_custom_call.1} parent=1 // pred_check
      _
    $region39: #{tpu_custom_call.1} parent=1 // pred_check_branch
      %69 = sbr.rel (0) target = $region41
    $region40: #{tpu_custom_call.1} parent=1 // pred_region
      %70 = dma.done [#allocation11], 512
    $region41: #{tpu_custom_call.1} parent=1 // pred_fallthru
      _
    %v72 = vld [vmem:[#allocation7] sm:$0x3]
    %v73 = vld [vmem:[#allocation7 + $0x2] sm:$0x3]
    %v74 = vld [vmem:[#allocation7 + $0x4] sm:$0x3]
    %v75 = vld [vmem:[#allocation7 + $0x6] sm:$0x3]
    %v76 = vld [vmem:[#allocation7 + $0x8] sm:$0x3]
    %v77 = vld [vmem:[#allocation7 + $0xa] sm:$0x3]
    %v78 = vld [vmem:[#allocation7 + $0xc] sm:$0x3]
    %v79 = vld [vmem:[#allocation7 + $0xe] sm:$0x3]
    %v88 = vcombine.low %v72, %v73
    %v89 = vcombine.low %v74, %v75
    %v91 = vunpack.c.l.s4 1983009808
    %v92 = vunpack.c.0.s8 %v91
    %v93 = vlaneseq
    %v94 = vshrl.u32 %v93, 7
    %v95 = vsub.s32 %v92, %v94
    %v96 = vrot.slane %v88, %v95
    %v98 = vunpack.c.l.s4 1983009808
    %v99 = vunpack.c.0.s8 %v98
    %v100 = vlaneseq
    %v101 = vshrl.u32 %v100, 7
    %v102 = vsub.s32 %v99, %v101
    %v103 = vrot.slane %v89, %v102
    %v104 = vcombine.low %v96, %v103
    %v105 = vcombine.low %v76, %v77
    %v106 = vcombine.low %v78, %v79
    %v108 = vunpack.c.l.s4 1983009808
    %v109 = vunpack.c.0.s8 %v108
    %v110 = vlaneseq
    %v111 = vshrl.u32 %v110, 7
    %v112 = vsub.s32 %v109, %v111
    %v113 = vrot.slane %v105, %v112
    %v115 = vunpack.c.l.s4 1983009808
    %v116 = vunpack.c.0.s8 %v115
    %v117 = vlaneseq
    %v118 = vshrl.u32 %v117, 7
    %v119 = vsub.s32 %v116, %v118
    %v120 = vrot.slane %v106, %v119
    %v121 = vcombine.low %v113, %v120
    %v124 = vpack.c.bf16 %v121, %v104
    %v125 = vld [vmem:[#allocation10] sm:$0xf]
    %v126 = vld [vmem:[#allocation10 + $0x4] sm:$0xf]
    %v127 = vld [vmem:[#allocation10 + $0x8] sm:$0xf]
    %v128 = vld [vmem:[#allocation10 + $0xc] sm:$0xf]
    %v129 = vld [vmem:[%s3] sm:$0x1]
    %v131 = vlaneseq
    %v132 = vshrl.u32 %v131, 7
    %v133 = vsub.s32 0, %v132
    %v134 = vrot.slane %v129, %v133
    %v140 = vunpack.c.l.b16 %v125
    %v141 = vunpack.c.l.b16 %v126
    %v142 = vunpack.c.l.b16 %v127
    %v143 = vunpack.c.l.b16 %v128
    %v144 = vpack.c.b16 %v141, %v140
    %v145 = vpack.c.b16 %v143, %v142
    %vm148 = vcmask 261120
    %v150 = vsel %vm148, %v124, 0
    %152 = vmatprep.subr.bf16.mxu0 0
    %153 = vmatpush1.bf16.msra.mxu0 %v144
    %154 = vmatprep.subr.bf16.mxu0 0
    %155 = vmatpush1.bf16.msra.mxu0 %v145
    %156 = vmatprep.subr.bf16.mxu0 0
    %157 = vmatpush1.bf16.msra.mxu0 0
    %158 = vmatprep.subr.bf16.mxu0 0
    %159 = vmatpush1.bf16.msra.mxu0 0
    %160 = vmatprep.subr.bf16.mxu0 0
    %161 = vmatpush1.bf16.msra.mxu0 0
    %162 = vmatprep.subr.bf16.mxu0 0
    %163 = vmatpush1.bf16.msra.mxu0 0
    %164 = vmatprep.subr.bf16.mxu0 0
    %165 = vmatpush1.bf16.msra.mxu0 0
    %166 = vmatprep.subr.bf16.mxu0 0
    %167 = vmatpush1.bf16.msra.mxu0 0
    %168 = vmatprep.subr.bf16.mxu0 0
    %169 = vmatpush1.bf16.msra.mxu0 0
    %170 = vmatprep.subr.bf16.mxu0 0
    %171 = vmatpush1.bf16.msra.mxu0 0
    %172 = vmatprep.subr.bf16.mxu0 0
    %173 = vmatpush1.bf16.msra.mxu0 0
    %174 = vmatprep.subr.bf16.mxu0 0
    %175 = vmatpush1.bf16.msra.mxu0 0
    %176 = vmatprep.subr.bf16.mxu0 0
    %177 = vmatpush1.bf16.msra.mxu0 0
    %178 = vmatprep.subr.bf16.mxu0 0
    %179 = vmatpush1.bf16.msra.mxu0 0
    %180 = vmatprep.subr.bf16.mxu0 0
    %181 = vmatpush1.bf16.msra.mxu0 0
    %182 = vmatprep.subr.bf16.mxu0 0
    %183 = vmatpush1.bf16.msra.mxu0 0
    %184 = vmatprep.mubr.bf16.mxu0 0
    %185 = vmatmul.mubr.bf16.gmra.mrb[0].mxu0 %v150
    %v186 = vpop.f32.mrb[0].mxu0
    %v187 = vadd.f32 %v134, %v186
    %v188 = vpop.f32.mrb[0].mxu0
    %v189 = vpop.f32.mrb[0].mxu0
    %v190 = vadd.f32 %v134, %v189
    %v191 = vpop.f32.mrb[0].mxu0
    %192 = vdwg.mxu0
    %v195 = vcombine.high %v187, %v187
    %v197 = vunpack.c.l.s4 1983009808
    %v198 = vunpack.c.0.s8 %v197
    %v199 = vlaneseq
    %v200 = vshrl.u32 %v199, 7
    %v201 = vsub.s32 %v198, %v200
    %v202 = vrot.slane %v187, %v201
    %v204 = vunpack.c.l.s4 1983009808
    %v205 = vunpack.c.0.s8 %v204
    %v206 = vlaneseq
    %v207 = vshrl.u32 %v206, 7
    %v208 = vsub.s32 %v205, %v207
    %v209 = vrot.slane %v195, %v208
    %v210 = vcombine.high %v202, %v202
    %v211 = vcombine.high %v209, %v209
    %v212 = vcombine.high %v190, %v190
    %v214 = vunpack.c.l.s4 1983009808
    %v215 = vunpack.c.0.s8 %v214
    %v216 = vlaneseq
    %v217 = vshrl.u32 %v216, 7
    %v218 = vsub.s32 %v215, %v217
    %v219 = vrot.slane %v190, %v218
    %v221 = vunpack.c.l.s4 1983009808
    %v222 = vunpack.c.0.s8 %v221
    %v223 = vlaneseq
    %v224 = vshrl.u32 %v223, 7
    %v225 = vsub.s32 %v222, %v224
    %v226 = vrot.slane %v212, %v225
    %v227 = vcombine.high %v219, %v219
    %v228 = vcombine.high %v226, %v226
    %237 = vst [vmem:[#allocation2] sm:$0x3] %v202
    %238 = vst [vmem:[#allocation2 + $0x2] sm:$0x3] %v210
    %239 = vst [vmem:[#allocation2 + $0x4] sm:$0x3] %v209
    %240 = vst [vmem:[#allocation2 + $0x6] sm:$0x3] %v211
    %241 = vst [vmem:[#allocation2 + $0x8] sm:$0x3] %v219
    %242 = vst [vmem:[#allocation2 + $0xa] sm:$0x3] %v227
    %243 = vst [vmem:[#allocation2 + $0xc] sm:$0x3] %v226
    %244 = vst [vmem:[#allocation2 + $0xe] sm:$0x3] %v228
    %p245 = scmp.eq.s32.totalorder 0, 0
    // Predicated region
    $region42: #{tpu_custom_call.1} parent=1 // pred_check
      %p246 = pneg %p245
    $region43: #{tpu_custom_call.1} parent=1 // pred_check_branch
      %248 = sbr.rel (%p246) target = $region45
    $region44: #{tpu_custom_call.1} parent=1 // pred_region
      %vm249 = vcmask 254976
      %250 = vst.msk [vmem:[#allocation3] sm:$0x3] %vm249, 0.0
      %251 = vst.msk [vmem:[#allocation4] sm:$0x3] %vm249, 0.0
      %252 = vst.msk [vmem:[#allocation5] sm:$0x3] %vm249, 0.0
      %253 = vst.msk [vmem:[#allocation6] sm:$0x3] %vm249, 0.0
    $region45: #{tpu_custom_call.1} parent=1 // pred_fallthru
      _
    %v254 = vld [vmem:[%s0] sm:$0x3]
    %v255 = vld [vmem:[#allocation3] sm:$0x3]
    %v256 = vld [vmem:[#allocation4] sm:$0x3]
    %v257 = vld [vmem:[#allocation5] sm:$0x3]
    %v258 = vld [vmem:[#allocation6] sm:$0x3]
    %s259 = smul.u32 0, 8
    %v260 = vstv %s259
    %vm261 = vcmp.lt.s32.totalorder %v260, %v254
    %v262 = vld [vmem:[#allocation2] sm:$0x3]
    %v263 = vpack.c.bf16 %v255, %v255
    %v264 = vld [vmem:[%s4] sm:$0xf]
    %v265 = vld [vmem:[%s4 + $0x4] sm:$0xf]
    %v266 = vld [vmem:[%s4 + $0x8] sm:$0xf]
    %v267 = vld [vmem:[%s4 + $0xc] sm:$0xf]
    %v272 = vunpack.c.l.b16 %v264
    %v273 = vunpack.c.l.b16 %v265
    %v274 = vunpack.c.l.b16 %v266
    %v275 = vunpack.c.l.b16 %v267
    %v276 = vpack.c.b16 %v273, %v272
    %v277 = vpack.c.b16 %v275, %v274
    %v281 = vsel %vm148, %v263, 0
    %283 = vmatprep.subr.bf16.mxu0 0
    %284 = vmatpush1.bf16.msra.mxu0 %v276
    %285 = vmatprep.subr.bf16.mxu0 0
    %286 = vmatpush1.bf16.msra.mxu0 %v277
    %287 = vmatprep.subr.bf16.mxu0 0
    %288 = vmatpush1.bf16.msra.mxu0 0
    %289 = vmatprep.subr.bf16.mxu0 0
    %290 = vmatpush1.bf16.msra.mxu0 0
    %291 = vmatprep.subr.bf16.mxu0 0
    %292 = vmatpush1.bf16.msra.mxu0 0
    %293 = vmatprep.subr.bf16.mxu0 0
    %294 = vmatpush1.bf16.msra.mxu0 0
    %295 = vmatprep.subr.bf16.mxu0 0
    %296 = vmatpush1.bf16.msra.mxu0 0
    %297 = vmatprep.subr.bf16.mxu0 0
    %298 = vmatpush1.bf16.msra.mxu0 0
    %299 = vmatprep.subr.bf16.mxu0 0
    %300 = vmatpush1.bf16.msra.mxu0 0
    %301 = vmatprep.subr.bf16.mxu0 0
    %302 = vmatpush1.bf16.msra.mxu0 0
    %303 = vmatprep.subr.bf16.mxu0 0
    %304 = vmatpush1.bf16.msra.mxu0 0
    %305 = vmatprep.subr.bf16.mxu0 0
    %306 = vmatpush1.bf16.msra.mxu0 0
    %307 = vmatprep.subr.bf16.mxu0 0
    %308 = vmatpush1.bf16.msra.mxu0 0
    %309 = vmatprep.subr.bf16.mxu0 0
    %310 = vmatpush1.bf16.msra.mxu0 0
    %311 = vmatprep.subr.bf16.mxu0 0
    %312 = vmatpush1.bf16.msra.mxu0 0
    %313 = vmatprep.subr.bf16.mxu0 0
    %314 = vmatpush1.bf16.msra.mxu0 0
    %315 = vmatprep.mubr.bf16.mxu0 0
    %316 = vmatmul.mubr.bf16.gmra.mrb[0].mxu0 %v281
    %v317 = vpop.f32.mrb[0].mxu0
    %v318 = vadd.f32 0.0, %v317
    %v319 = vpop.f32.mrb[0].mxu0
    %v320 = vpop.f32.mrb[0].mxu0
    %v321 = vpop.f32.mrb[0].mxu0
    %322 = vdwg.mxu0
    %v323 = vadd.f32 %v262, %v318
    %v324 = vxor.u32 %v323, 2147483648
    %v325 = vmul.f32 %v324, 1.442695
    %v326 = vpow.pop %v325
    %v327 = vadd.f32 %v326, 1.0
    %v328 = vrcp.pop %v327
    %v329 = vmul.f32 1.0, %v328
    %v330 = vtanh.pop %v323
    %332 = vrot.lane.b32.xlu0 %v256, 32
    %v333 = vpop.permute.xlu0 %332
    %v335 = vmul.f32 %v329, %v333
    %337 = vrot.lane.b32.xlu0 %v330, 64
    %v338 = vpop.permute.xlu0 %337
    %v340 = vmul.f32 %v329, %v338
    %342 = vrot.lane.b32.xlu0 %v340, 32
    %v343 = vpop.permute.xlu0 %342
    %v345 = vadd.f32 %v335, %v343
    %v346 = vtanh.pop %v345
    %348 = vrot.lane.b32.xlu0 %v346, 64
    %v349 = vpop.permute.xlu0 %348
    %v351 = vmul.f32 %v329, %v349
    %v352 = vsel %vm261, 1, 0
    %353 = vset.pattern.permute.xlu0 0
    %354 = vperm.xlu0 %353, %v352
    %v355 = vpop.permute.xlu0 %354
    %vm356 = vcmp.eq.s32.totalorder %v355, 1
    %358 = vrot.lane.b32.xlu0 %v255, 96
    %v359 = vpop.permute.xlu0 %358
    %v361 = vsel %vm356, %v351, %v359
    %v362 = vsel %vm356, %v345, %v333
    %v363 = vsel %vm356, %v351, 0.0
    %365 = vrot.lane.b32.xlu0 %v363, 32
    %v366 = vpop.permute.xlu0 %365
    %369 = vrot.lane.b32.xlu0 %v257, 32
    %v370 = vpop.permute.xlu0 %369
    %v372 = vsel %vm148, %v366, %v370
    %v373 = vpack.c.bf16 %v372, %v372
    %v374 = vld [vmem:[#allocation12] sm:$0xf]
    %v375 = vld [vmem:[#allocation12 + $0x4] sm:$0xf]
    %v376 = vld [vmem:[#allocation12 + $0x8] sm:$0xf]
    %v377 = vld [vmem:[#allocation12 + $0xc] sm:$0xf]
    %v378 = vld [vmem:[#allocation12 + $0x10] sm:$0xf]
    %v379 = vld [vmem:[#allocation12 + $0x14] sm:$0xf]
    %v380 = vld [vmem:[#allocation12 + $0x18] sm:$0xf]
    %v381 = vld [vmem:[#allocation12 + $0x1c] sm:$0xf]
    %v382 = vld [vmem:[%s6] sm:$0x1]
    %v384 = vlaneseq
    %v385 = vshrl.u32 %v384, 7
    %v386 = vsub.s32 0, %v385
    %v387 = vrot.slane %v382, %v386
    %v397 = vunpack.c.l.b16 %v374
    %v398 = vunpack.c.l.b16 %v375
    %v399 = vunpack.c.l.b16 %v376
    %v400 = vunpack.c.l.b16 %v377
    %v401 = vunpack.c.l.b16 %v378
    %v402 = vunpack.c.l.b16 %v379
    %v403 = vunpack.c.l.b16 %v380
    %v404 = vunpack.c.l.b16 %v381
    %v405 = vpack.c.b16 %v398, %v397
    %v406 = vpack.c.b16 %v400, %v399
    %v407 = vpack.c.b16 %v402, %v401
    %v408 = vpack.c.b16 %v404, %v403
    %vm413 = vcmask 523264
    %v415 = vsel %vm413, %v373, 0
    %417 = vmatprep.subr.bf16.mxu0 0
    %418 = vmatpush1.bf16.msra.mxu0 %v405
    %419 = vmatprep.subr.bf16.mxu0 0
    %420 = vmatpush1.bf16.msra.mxu0 %v406
    %421 = vmatprep.subr.bf16.mxu0 0
    %422 = vmatpush1.bf16.msra.mxu0 %v407
    %423 = vmatprep.subr.bf16.mxu0 0
    %424 = vmatpush1.bf16.msra.mxu0 %v408
    %425 = vmatprep.subr.bf16.mxu0 0
    %426 = vmatpush1.bf16.msra.mxu0 0
    %427 = vmatprep.subr.bf16.mxu0 0
    %428 = vmatpush1.bf16.msra.mxu0 0
    %429 = vmatprep.subr.bf16.mxu0 0
    %430 = vmatpush1.bf16.msra.mxu0 0
    %431 = vmatprep.subr.bf16.mxu0 0
    %432 = vmatpush1.bf16.msra.mxu0 0
    %433 = vmatprep.subr.bf16.mxu0 0
    %434 = vmatpush1.bf16.msra.mxu0 0
    %435 = vmatprep.subr.bf16.mxu0 0
    %436 = vmatpush1.bf16.msra.mxu0 0
    %437 = vmatprep.subr.bf16.mxu0 0
    %438 = vmatpush1.bf16.msra.mxu0 0
    %439 = vmatprep.subr.bf16.mxu0 0
    %440 = vmatpush1.bf16.msra.mxu0 0
    %441 = vmatprep.subr.bf16.mxu0 0
    %442 = vmatpush1.bf16.msra.mxu0 0
    %443 = vmatprep.subr.bf16.mxu0 0
    %444 = vmatpush1.bf16.msra.mxu0 0
    %445 = vmatprep.subr.bf16.mxu0 0
    %446 = vmatpush1.bf16.msra.mxu0 0
    %447 = vmatprep.subr.bf16.mxu0 0
    %448 = vmatpush1.bf16.msra.mxu0 0
    %449 = vmatprep.mubr.bf16.mxu0 0
    %450 = vmatmul.mubr.bf16.gmra.mrb[0].mxu0 %v415
    %v451 = vpop.f32.mrb[0].mxu0
    %v452 = vadd.f32 %v387, %v451
    %v453 = vpop.f32.mrb[0].mxu0
    %v454 = vpop.f32.mrb[0].mxu0
    %v455 = vpop.f32.mrb[0].mxu0
    %456 = vdwg.mxu0
    %v457 = vxor.u32 %v452, 2147483648
    %v458 = vmul.f32 %v457, 1.442695
    %v459 = vpow.pop %v458
    %v460 = vadd.f32 %v459, 1.0
    %v461 = vrcp.pop %v460
    %v462 = vmul.f32 1.0, %v461
    %v463 = vtanh.pop %v452
    %465 = vrot.lane.b32.xlu0 %v258, 32
    %v466 = vpop.permute.xlu0 %465
    %v468 = vmul.f32 %v462, %v466
    %470 = vrot.lane.b32.xlu0 %v463, 64
    %v471 = vpop.permute.xlu0 %470
    %v473 = vmul.f32 %v462, %v471
    %475 = vrot.lane.b32.xlu0 %v473, 32
    %v476 = vpop.permute.xlu0 %475
    %v478 = vadd.f32 %v468, %v476
    %v479 = vtanh.pop %v478
    %481 = vrot.lane.b32.xlu0 %v479, 64
    %v482 = vpop.permute.xlu0 %481
    %v484 = vmul.f32 %v462, %v482
    %485 = vrot.lane.b32.xlu0 %v257, 96
    %v486 = vpop.permute.xlu0 %485
    %v488 = vsel %vm356, %v484, %v486
    %v489 = vsel %vm356, %v478, %v466
    %v490 = vsel %vm356, %v484, 0.0
    %492 = vrot.lane.b32.xlu0 %v490, 32
    %v493 = vpop.permute.xlu0 %492
    %vm495 = vcmask 254976
    %496 = vst.msk [vmem:[#allocation13] sm:$0x3] %vm495, %v493
    %s497 = sadd.s32 %s259, 1
    %v498 = vstv %s497
    %vm499 = vcmp.lt.s32.totalorder %v498, %v254
    %s500 = scalar_lea.vmem [#allocation2], 2
    %v501 = vld [vmem:[%s500] sm:$0x3]
    %v502 = vpack.c.bf16 %v361, %v361
    %v503 = vld [vmem:[%s4] sm:$0xf]
    %v504 = vld [vmem:[%s4 + $0x4] sm:$0xf]
    %v505 = vld [vmem:[%s4 + $0x8] sm:$0xf]
    %v506 = vld [vmem:[%s4 + $0xc] sm:$0xf]
    %508 = vrot.lane.b32.xlu0 %v502, 32
    %v509 = vpop.permute.xlu0 %508
    %v514 = vunpack.c.l.b16 %v503
    %v515 = vunpack.c.l.b16 %v504
    %v516 = vunpack.c.l.b16 %v505
    %v517 = vunpack.c.l.b16 %v506
    %v518 = vpack.c.b16 %v515, %v514
    %v519 = vpack.c.b16 %v517, %v516
    %v523 = vsel %vm148, %v509, 0
    %525 = vmatprep.subr.bf16.mxu0 0
    %526 = vmatpush1.bf16.msra.mxu0 %v518
    %527 = vmatprep.subr.bf16.mxu0 0
    %528 = vmatpush1.bf16.msra.mxu0 %v519
    %529 = vmatprep.subr.bf16.mxu0 0
    %530 = vmatpush1.bf16.msra.mxu0 0
    %531 = vmatprep.subr.bf16.mxu0 0
    %532 = vmatpush1.bf16.msra.mxu0 0
    %533 = vmatprep.subr.bf16.mxu0 0
    %534 = vmatpush1.bf16.msra.mxu0 0
    %535 = vmatprep.subr.bf16.mxu0 0
    %536 = vmatpush1.bf16.msra.mxu0 0
    %537 = vmatprep.subr.bf16.mxu0 0
    %538 = vmatpush1.bf16.msra.mxu0 0
    %539 = vmatprep.subr.bf16.mxu0 0
    %540 = vmatpush1.bf16.msra.mxu0 0
    %541 = vmatprep.subr.bf16.mxu0 0
    %542 = vmatpush1.bf16.msra.mxu0 0
    %543 = vmatprep.subr.bf16.mxu0 0
    %544 = vmatpush1.bf16.msra.mxu0 0
    %545 = vmatprep.subr.bf16.mxu0 0
    %546 = vmatpush1.bf16.msra.mxu0 0
    %547 = vmatprep.subr.bf16.mxu0 0
    %548 = vmatpush1.bf16.msra.mxu0 0
    %549 = vmatprep.subr.bf16.mxu0 0
    %550 = vmatpush1.bf16.msra.mxu0 0
    %551 = vmatprep.subr.bf16.mxu0 0
    %552 = vmatpush1.bf16.msra.mxu0 0
    %553 = vmatprep.subr.bf16.mxu0 0
    %554 = vmatpush1.bf16.msra.mxu0 0
    %555 = vmatprep.subr.bf16.mxu0 0
    %556 = vmatpush1.bf16.msra.mxu0 0
    %557 = vmatprep.mubr.bf16.mxu0 0
    %558 = vmatmul.mubr.bf16.gmra.mrb[0].mxu0 %v523
    %v559 = vpop.f32.mrb[0].mxu0
    %v560 = vadd.f32 0.0, %v559
    %v561 = vpop.f32.mrb[0].mxu0
    %v562 = vpop.f32.mrb[0].mxu0
    %v563 = vpop.f32.mrb[0].mxu0
    %564 = vdwg.mxu0
    %v565 = vadd.f32 %v501, %v560
    %v566 = vxor.u32 %v565, 2147483648
    %v567 = vmul.f32 %v566, 1.442695
    %v568 = vpow.pop %v567
    %v569 = vadd.f32 %v568, 1.0
    %v570 = vrcp.pop %v569
    %v571 = vmul.f32 1.0, %v570
    %v572 = vtanh.pop %v565
    %v573 = vmul.f32 %v571, %v362
    %575 = vrot.lane.b32.xlu0 %v572, 64
    %v576 = vpop.permute.xlu0 %575
    %v578 = vmul.f32 %v571, %v576
    %580 = vrot.lane.b32.xlu0 %v578, 32
    %v581 = vpop.permute.xlu0 %580
    %v583 = vadd.f32 %v573, %v581
    %v584 = vtanh.pop %v583
    %586 = vrot.lane.b32.xlu0 %v584, 64
    %v587 = vpop.permute.xlu0 %586
    %v589 = vmul.f32 %v571, %v587
    %v590 = vsel %vm499, 1, 0
    %591 = vset.pattern.permute.xlu0 0
    %592 = vperm.xlu0 %591, %v590
    %v593 = vpop.permute.xlu0 %592
    %vm594 = vcmp.eq.s32.totalorder %v593, 1
    %v595 = vsel %vm594, %v589, %v361
    %v596 = vsel %vm594, %v583, %v362
    %v597 = vsel %vm594, %v589, 0.0
    %599 = vrot.lane.b32.xlu0 %v597, 32
    %v600 = vpop.permute.xlu0 %599
    %603 = vrot.lane.b32.xlu0 %v488, 64
    %v604 = vpop.permute.xlu0 %603
    %v606 = vsel %vm148, %v600, %v604
    %v607 = vpack.c.bf16 %v606, %v606
    %v608 = vld [vmem:[#allocation12] sm:$0xf]
    %v609 = vld [vmem:[#allocation12 + $0x4] sm:$0xf]
    %v610 = vld [vmem:[#allocation12 + $0x8] sm:$0xf]
    %v611 = vld [vmem:[#allocation12 + $0xc] sm:$0xf]
    %v612 = vld [vmem:[#allocation12 + $0x10] sm:$0xf]
    %v613 = vld [vmem:[#allocation12 + $0x14] sm:$0xf]
    %v614 = vld [vmem:[#allocation12 + $0x18] sm:$0xf]
    %v615 = vld [vmem:[#allocation12 + $0x1c] sm:$0xf]
    %v616 = vld [vmem:[%s6] sm:$0x1]
    %v618 = vlaneseq
    %v619 = vshrl.u32 %v618, 7
    %v620 = vsub.s32 0, %v619
    %v621 = vrot.slane %v616, %v620
    %v631 = vunpack.c.l.b16 %v608
    %v632 = vunpack.c.l.b16 %v609
    %v633 = vunpack.c.l.b16 %v610
    %v634 = vunpack.c.l.b16 %v611
    %v635 = vunpack.c.l.b16 %v612
    %v636 = vunpack.c.l.b16 %v613
    %v637 = vunpack.c.l.b16 %v614
    %v638 = vunpack.c.l.b16 %v615
    %v639 = vpack.c.b16 %v632, %v631
    %v640 = vpack.c.b16 %v634, %v633
    %v641 = vpack.c.b16 %v636, %v635
    %v642 = vpack.c.b16 %v638, %v637
    %v648 = vsel %vm413, %v607, 0
    %650 = vmatprep.subr.bf16.mxu0 0
    %651 = vmatpush1.bf16.msra.mxu0 %v639
    %652 = vmatprep.subr.bf16.mxu0 0
    %653 = vmatpush1.bf16.msra.mxu0 %v640
    %654 = vmatprep.subr.bf16.mxu0 0
    %655 = vmatpush1.bf16.msra.mxu0 %v641
    %656 = vmatprep.subr.bf16.mxu0 0
    %657 = vmatpush1.bf16.msra.mxu0 %v642
    %658 = vmatprep.subr.bf16.mxu0 0
    %659 = vmatpush1.bf16.msra.mxu0 0
    %660 = vmatprep.subr.bf16.mxu0 0
    %661 = vmatpush1.bf16.msra.mxu0 0
    %662 = vmatprep.subr.bf16.mxu0 0
    %663 = vmatpush1.bf16.msra.mxu0 0
    %664 = vmatprep.subr.bf16.mxu0 0
    %665 = vmatpush1.bf16.msra.mxu0 0
    %666 = vmatprep.subr.bf16.mxu0 0
    %667 = vmatpush1.bf16.msra.mxu0 0
    %668 = vmatprep.subr.bf16.mxu0 0
    %669 = vmatpush1.bf16.msra.mxu0 0
    %670 = vmatprep.subr.bf16.mxu0 0
    %671 = vmatpush1.bf16.msra.mxu0 0
    %672 = vmatprep.subr.bf16.mxu0 0
    %673 = vmatpush1.bf16.msra.mxu0 0
    %674 = vmatprep.subr.bf16.mxu0 0
    %675 = vmatpush1.bf16.msra.mxu0 0
    %676 = vmatprep.subr.bf16.mxu0 0
    %677 = vmatpush1.bf16.msra.mxu0 0
    %678 = vmatprep.subr.bf16.mxu0 0
    %679 = vmatpush1.bf16.msra.mxu0 0
    %680 = vmatprep.subr.bf16.mxu0 0
    %681 = vmatpush1.bf16.msra.mxu0 0
    %682 = vmatprep.mubr.bf16.mxu0 0
    %683 = vmatmul.mubr.bf16.gmra.mrb[0].mxu0 %v648
    %v684 = vpop.f32.mrb[0].mxu0
    %v685 = vadd.f32 %v621, %v684
    %v686 = vpop.f32.mrb[0].mxu0
    %v687 = vpop.f32.mrb[0].mxu0
    %v688 = vpop.f32.mrb[0].mxu0
    %689 = vdwg.mxu0
    %v690 = vxor.u32 %v685, 2147483648
    %v691 = vmul.f32 %v690, 1.442695
    %v692 = vpow.pop %v691
    %v693 = vadd.f32 %v692, 1.0
    %v694 = vrcp.pop %v693
    %v695 = vmul.f32 1.0, %v694
    %v696 = vtanh.pop %v685
    %v697 = vmul.f32 %v695, %v489
    %699 = vrot.lane.b32.xlu0 %v696, 64
    %v700 = vpop.permute.xlu0 %699
    %v702 = vmul.f32 %v695, %v700
    %704 = vrot.lane.b32.xlu0 %v702, 32
    %v705 = vpop.permute.xlu0 %704
    %v707 = vadd.f32 %v697, %v705
    %v708 = vtanh.pop %v707
    %710 = vrot.lane.b32.xlu0 %v708, 64
    %v711 = vpop.permute.xlu0 %710
    %v713 = vmul.f32 %v695, %v711
    %v714 = vsel %vm594, %v713, %v488
    %v715 = vsel %vm594, %v707, %v489
    %v716 = vsel %vm594, %v713, 0.0
    %718 = vrot.lane.b32.xlu0 %v716, 32
    %v719 = vpop.permute.xlu0 %718
    %s721 = scalar_lea.vmem [#allocation13], 2
    %722 = vst.msk [vmem:[%s721] sm:$0x3] %vm495, %v719
    %s723 = sadd.s32 %s259, 2
    %v724 = vstv %s723
    %vm725 = vcmp.lt.s32.totalorder %v724, %v254
    %s726 = scalar_lea.vmem [#allocation2], 4
    %v727 = vld [vmem:[%s726] sm:$0x3]
    %v728 = vpack.c.bf16 %v595, %v595
    %v729 = vld [vmem:[%s4] sm:$0xf]
    %v730 = vld [vmem:[%s4 + $0x4] sm:$0xf]
    %v731 = vld [vmem:[%s4 + $0x8] sm:$0xf]
    %v732 = vld [vmem:[%s4 + $0xc] sm:$0xf]
    %734 = vrot.lane.b32.xlu0 %v728, 32
    %v735 = vpop.permute.xlu0 %734
    %v740 = vunpack.c.l.b16 %v729
    %v741 = vunpack.c.l.b16 %v730
    %v742 = vunpack.c.l.b16 %v731
    %v743 = vunpack.c.l.b16 %v732
    %v744 = vpack.c.b16 %v741, %v740
    %v745 = vpack.c.b16 %v743, %v742
    %v749 = vsel %vm148, %v735, 0
    %751 = vmatprep.subr.bf16.mxu0 0
    %752 = vmatpush1.bf16.msra.mxu0 %v744
    %753 = vmatprep.subr.bf16.mxu0 0
    %754 = vmatpush1.bf16.msra.mxu0 %v745
    %755 = vmatprep.subr.bf16.mxu0 0
    %756 = vmatpush1.bf16.msra.mxu0 0
    %757 = vmatprep.subr.bf16.mxu0 0
    %758 = vmatpush1.bf16.msra.mxu0 0
    %759 = vmatprep.subr.bf16.mxu0 0
    %760 = vmatpush1.bf16.msra.mxu0 0
    %761 = vmatprep.subr.bf16.mxu0 0
    %762 = vmatpush1.bf16.msra.mxu0 0
    %763 = vmatprep.subr.bf16.mxu0 0
    %764 = vmatpush1.bf16.msra.mxu0 0
    %765 = vmatprep.subr.bf16.mxu0 0
    %766 = vmatpush1.bf16.msra.mxu0 0
    %767 = vmatprep.subr.bf16.mxu0 0
    %768 = vmatpush1.bf16.msra.mxu0 0
    %769 = vmatprep.subr.bf16.mxu0 0
    %770 = vmatpush1.bf16.msra.mxu0 0
    %771 = vmatprep.subr.bf16.mxu0 0
    %772 = vmatpush1.bf16.msra.mxu0 0
    %773 = vmatprep.subr.bf16.mxu0 0
    %774 = vmatpush1.bf16.msra.mxu0 0
    %775 = vmatprep.subr.bf16.mxu0 0
    %776 = vmatpush1.bf16.msra.mxu0 0
    %777 = vmatprep.subr.bf16.mxu0 0
    %778 = vmatpush1.bf16.msra.mxu0 0
    %779 = vmatprep.subr.bf16.mxu0 0
    %780 = vmatpush1.bf16.msra.mxu0 0
    %781 = vmatprep.subr.bf16.mxu0 0
    %782 = vmatpush1.bf16.msra.mxu0 0
    %783 = vmatprep.mubr.bf16.mxu0 0
    %784 = vmatmul.mubr.bf16.gmra.mrb[0].mxu0 %v749
    %v785 = vpop.f32.mrb[0].mxu0
    %v786 = vadd.f32 0.0, %v785
    %v787 = vpop.f32.mrb[0].mxu0
    %v788 = vpop.f32.mrb[0].mxu0
    %v789 = vpop.f32.mrb[0].mxu0
    %790 = vdwg.mxu0
    %v791 = vadd.f32 %v727, %v786
    %v792 = vxor.u32 %v791, 2147483648
    %v793 = vmul.f32 %v792, 1.442695
    %v794 = vpow.pop %v793
    %v795 = vadd.f32 %v794, 1.0
    %v796 = vrcp.pop %v795
    %v797 = vmul.f32 1.0, %v796
    %v798 = vtanh.pop %v791
    %v799 = vmul.f32 %v797, %v596
    %801 = vrot.lane.b32.xlu0 %v798, 64
    %v802 = vpop.permute.xlu0 %801
    %v804 = vmul.f32 %v797, %v802
    %806 = vrot.lane.b32.xlu0 %v804, 32
    %v807 = vpop.permute.xlu0 %806
    %v809 = vadd.f32 %v799, %v807
    %v810 = vtanh.pop %v809
    %812 = vrot.lane.b32.xlu0 %v810, 64
    %v813 = vpop.permute.xlu0 %812
    %v815 = vmul.f32 %v797, %v813
    %v816 = vsel %vm725, 1, 0
    %817 = vset.pattern.permute.xlu0 0
    %818 = vperm.xlu0 %817, %v816
    %v819 = vpop.permute.xlu0 %818
    %vm820 = vcmp.eq.s32.totalorder %v819, 1
    %v821 = vsel %vm820, %v815, %v595
    %v822 = vsel %vm820, %v809, %v596
    %v823 = vsel %vm820, %v815, 0.0
    %825 = vrot.lane.b32.xlu0 %v823, 32
    %v826 = vpop.permute.xlu0 %825
    %829 = vrot.lane.b32.xlu0 %v714, 64
    %v830 = vpop.permute.xlu0 %829
    %v832 = vsel %vm148, %v826, %v830
    %v833 = vpack.c.bf16 %v832, %v832
    %v834 = vld [vmem:[#allocation12] sm:$0xf]
    %v835 = vld [vmem:[#allocation12 + $0x4] sm:$0xf]
    %v836 = vld [vmem:[#allocation12 + $0x8] sm:$0xf]
    %v837 = vld [vmem:[#allocation12 + $0xc] sm:$0xf]
    %v838 = vld [vmem:[#allocation12 + $0x10] sm:$0xf]
    %v839 = vld [vmem:[#allocation12 + $0x14] sm:$0xf]
    %v840 = vld [vmem:[#allocation12 + $0x18] sm:$0xf]
    %v841 = vld [vmem:[#allocation12 + $0x1c] sm:$0xf]
    %v842 = vld [vmem:[%s6] sm:$0x1]
    %v844 = vlaneseq
    %v845 = vshrl.u32 %v844, 7
    %v846 = vsub.s32 0, %v845
    %v847 = vrot.slane %v842, %v846
    %v857 = vunpack.c.l.b16 %v834
    %v858 = vunpack.c.l.b16 %v835
    %v859 = vunpack.c.l.b16 %v836
    %v860 = vunpack.c.l.b16 %v837
    %v861 = vunpack.c.l.b16 %v838
    %v862 = vunpack.c.l.b16 %v839
    %v863 = vunpack.c.l.b16 %v840
    %v864 = vunpack.c.l.b16 %v841
    %v865 = vpack.c.b16 %v858, %v857
    %v866 = vpack.c.b16 %v860, %v859
    %v867 = vpack.c.b16 %v862, %v861
    %v868 = vpack.c.b16 %v864, %v863
    %v874 = vsel %vm413, %v833, 0
    %876 = vmatprep.subr.bf16.mxu0 0
    %877 = vmatpush1.bf16.msra.mxu0 %v865
    %878 = vmatprep.subr.bf16.mxu0 0
    %879 = vmatpush1.bf16.msra.mxu0 %v866
    %880 = vmatprep.subr.bf16.mxu0 0
    %881 = vmatpush1.bf16.msra.mxu0 %v867
    %882 = vmatprep.subr.bf16.mxu0 0
    %883 = vmatpush1.bf16.msra.mxu0 %v868
    %884 = vmatprep.subr.bf16.mxu0 0
    %885 = vmatpush1.bf16.msra.mxu0 0
    %886 = vmatprep.subr.bf16.mxu0 0
    %887 = vmatpush1.bf16.msra.mxu0 0
    %888 = vmatprep.subr.bf16.mxu0 0
    %889 = vmatpush1.bf16.msra.mxu0 0
    %890 = vmatprep.subr.bf16.mxu0 0
    %891 = vmatpush1.bf16.msra.mxu0 0
    %892 = vmatprep.subr.bf16.mxu0 0
    %893 = vmatpush1.bf16.msra.mxu0 0
    %894 = vmatprep.subr.bf16.mxu0 0
    %895 = vmatpush1.bf16.msra.mxu0 0
    %896 = vmatprep.subr.bf16.mxu0 0
    %897 = vmatpush1.bf16.msra.mxu0 0
    %898 = vmatprep.subr.bf16.mxu0 0
    %899 = vmatpush1.bf16.msra.mxu0 0
    %900 = vmatprep.subr.bf16.mxu0 0
    %901 = vmatpush1.bf16.msra.mxu0 0
    %902 = vmatprep.subr.bf16.mxu0 0
    %903 = vmatpush1.bf16.msra.mxu0 0
    %904 = vmatprep.subr.bf16.mxu0 0
    %905 = vmatpush1.bf16.msra.mxu0 0
    %906 = vmatprep.subr.bf16.mxu0 0
    %907 = vmatpush1.bf16.msra.mxu0 0
    %908 = vmatprep.mubr.bf16.mxu0 0
    %909 = vmatmul.mubr.bf16.gmra.mrb[0].mxu0 %v874
    %v910 = vpop.f32.mrb[0].mxu0
    %v911 = vadd.f32 %v847, %v910
    %v912 = vpop.f32.mrb[0].mxu0
    %v913 = vpop.f32.mrb[0].mxu0
    %v914 = vpop.f32.mrb[0].mxu0
    %915 = vdwg.mxu0
    %v916 = vxor.u32 %v911, 2147483648
    %v917 = vmul.f32 %v916, 1.442695
    %v918 = vpow.pop %v917
    %v919 = vadd.f32 %v918, 1.0
    %v920 = vrcp.pop %v919
    %v921 = vmul.f32 1.0, %v920
    %v922 = vtanh.pop %v911
    %v923 = vmul.f32 %v921, %v715
    %925 = vrot.lane.b32.xlu0 %v922, 64
    %v926 = vpop.permute.xlu0 %925
    %v928 = vmul.f32 %v921, %v926
    %930 = vrot.lane.b32.xlu0 %v928, 32
    %v931 = vpop.permute.xlu0 %930
    %v933 = vadd.f32 %v923, %v931
    %v934 = vtanh.pop %v933
    %936 = vrot.lane.b32.xlu0 %v934, 64
    %v937 = vpop.permute.xlu0 %936
    %v939 = vmul.f32 %v921, %v937
    %v940 = vsel %vm820, %v939, %v714
    %v941 = vsel %vm820, %v933, %v715
    %v942 = vsel %vm820, %v939, 0.0
    %944 = vrot.lane.b32.xlu0 %v942, 32
    %v945 = vpop.permute.xlu0 %944
    %s947 = scalar_lea.vmem [#allocation13], 4
    %948 = vst.msk [vmem:[%s947] sm:$0x3] %vm495, %v945
    %s949 = sadd.s32 %s259, 3
    %v950 = vstv %s949
    %vm951 = vcmp.lt.s32.totalorder %v950, %v254
    %s952 = scalar_lea.vmem [#allocation2], 6
    %v953 = vld [vmem:[%s952] sm:$0x3]
    %v954 = vpack.c.bf16 %v821, %v821
    %v955 = vld [vmem:[%s4] sm:$0xf]
    %v956 = vld [vmem:[%s4 + $0x4] sm:$0xf]
    %v957 = vld [vmem:[%s4 + $0x8] sm:$0xf]
    %v958 = vld [vmem:[%s4 + $0xc] sm:$0xf]
    %960 = vrot.lane.b32.xlu0 %v954, 32
    %v961 = vpop.permute.xlu0 %960
    %v966 = vunpack.c.l.b16 %v955
    %v967 = vunpack.c.l.b16 %v956
    %v968 = vunpack.c.l.b16 %v957
    %v969 = vunpack.c.l.b16 %v958
    %v970 = vpack.c.b16 %v967, %v966
    %v971 = vpack.c.b16 %v969, %v968
    %v975 = vsel %vm148, %v961, 0
    %977 = vmatprep.subr.bf16.mxu0 0
    %978 = vmatpush1.bf16.msra.mxu0 %v970
    %979 = vmatprep.subr.bf16.mxu0 0
    %980 = vmatpush1.bf16.msra.mxu0 %v971
    %981 = vmatprep.subr.bf16.mxu0 0
    %982 = vmatpush1.bf16.msra.mxu0 0
    %983 = vmatprep.subr.bf16.mxu0 0
    %984 = vmatpush1.bf16.msra.mxu0 0
    %985 = vmatprep.subr.bf16.mxu0 0
    %986 = vmatpush1.bf16.msra.mxu0 0
    %987 = vmatprep.subr.bf16.mxu0 0
    %988 = vmatpush1.bf16.msra.mxu0 0
    %989 = vmatprep.subr.bf16.mxu0 0
    %990 = vmatpush1.bf16.msra.mxu0 0
    %991 = vmatprep.subr.bf16.mxu0 0
    %992 = vmatpush1.bf16.msra.mxu0 0
    %993 = vmatprep.subr.bf16.mxu0 0
    %994 = vmatpush1.bf16.msra.mxu0 0
    %995 = vmatprep.subr.bf16.mxu0 0
    %996 = vmatpush1.bf16.msra.mxu0 0
    %997 = vmatprep.subr.bf16.mxu0 0
    %998 = vmatpush1.bf16.msra.mxu0 0
    %999 = vmatprep.subr.bf16.mxu0 0
    %1000 = vmatpush1.bf16.msra.mxu0 0
    %1001 = vmatprep.subr.bf16.mxu0 0
    %1002 = vmatpush1.bf16.msra.mxu0 0
    %1003 = vmatprep.subr.bf16.mxu0 0
    %1004 = vmatpush1.bf16.msra.mxu0 0
    %1005 = vmatprep.subr.bf16.mxu0 0
    %1006 = vmatpush1.bf16.msra.mxu0 0
    %1007 = vmatprep.subr.bf16.mxu0 0
    %1008 = vmatpush1.bf16.msra.mxu0 0
    %1009 = vmatprep.mubr.bf16.mxu0 0
    %1010 = vmatmul.mubr.bf16.gmra.mrb[0].mxu0 %v975
    %v1011 = vpop.f32.mrb[0].mxu0
    %v1012 = vadd.f32 0.0, %v1011
    %v1013 = vpop.f32.mrb[0].mxu0
    %v1014 = vpop.f32.mrb[0].mxu0
    %v1015 = vpop.f32.mrb[0].mxu0
    %1016 = vdwg.mxu0
    %v1017 = vadd.f32 %v953, %v1012
    %v1018 = vxor.u32 %v1017, 2147483648
    %v1019 = vmul.f32 %v1018, 1.442695
    %v1020 = vpow.pop %v1019
    %v1021 = vadd.f32 %v1020, 1.0
    %v1022 = vrcp.pop %v1021
    %v1023 = vmul.f32 1.0, %v1022
    %v1024 = vtanh.pop %v1017
    %v1025 = vmul.f32 %v1023, %v822
    %1027 = vrot.lane.b32.xlu0 %v1024, 64
    %v1028 = vpop.permute.xlu0 %1027
    %v1030 = vmul.f32 %v1023, %v1028
    %1032 = vrot.lane.b32.xlu0 %v1030, 32
    %v1033 = vpop.permute.xlu0 %1032
    %v1035 = vadd.f32 %v1025, %v1033
    %v1036 = vtanh.pop %v1035
    %1038 = vrot.lane.b32.xlu0 %v1036, 64
    %v1039 = vpop.permute.xlu0 %1038
    %v1041 = vmul.f32 %v1023, %v1039
    %v1042 = vsel %vm951, 1, 0
    %1043 = vset.pattern.permute.xlu0 0
    %1044 = vperm.xlu0 %1043, %v1042
    %v1045 = vpop.permute.xlu0 %1044
    %vm1046 = vcmp.eq.s32.totalorder %v1045, 1
    %v1047 = vsel %vm1046, %v1041, %v821
    %v1048 = vsel %vm1046, %v1035, %v822
    %v1049 = vsel %vm1046, %v1041, 0.0
    %1051 = vrot.lane.b32.xlu0 %v1049, 32
    %v1052 = vpop.permute.xlu0 %1051
    %1055 = vrot.lane.b32.xlu0 %v940, 64
    %v1056 = vpop.permute.xlu0 %1055
    %v1058 = vsel %vm148, %v1052, %v1056
    %v1059 = vpack.c.bf16 %v1058, %v1058
    %v1060 = vld [vmem:[#allocation12] sm:$0xf]
    %v1061 = vld [vmem:[#allocation12 + $0x4] sm:$0xf]
    %v1062 = vld [vmem:[#allocation12 + $0x8] sm:$0xf]
    %v1063 = vld [vmem:[#allocation12 + $0xc] sm:$0xf]
    %v1064 = vld [vmem:[#allocation12 + $0x10] sm:$0xf]
    %v1065 = vld [vmem:[#allocation12 + $0x14] sm:$0xf]
    %v1066 = vld [vmem:[#allocation12 + $0x18] sm:$0xf]
    %v1067 = vld [vmem:[#allocation12 + $0x1c] sm:$0xf]
    %v1068 = vld [vmem:[%s6] sm:$0x1]
    %v1070 = vlaneseq
    %v1071 = vshrl.u32 %v1070, 7
    %v1072 = vsub.s32 0, %v1071
    %v1073 = vrot.slane %v1068, %v1072
    %v1083 = vunpack.c.l.b16 %v1060
    %v1084 = vunpack.c.l.b16 %v1061
    %v1085 = vunpack.c.l.b16 %v1062
    %v1086 = vunpack.c.l.b16 %v1063
    %v1087 = vunpack.c.l.b16 %v1064
    %v1088 = vunpack.c.l.b16 %v1065
    %v1089 = vunpack.c.l.b16 %v1066
    %v1090 = vunpack.c.l.b16 %v1067
    %v1091 = vpack.c.b16 %v1084, %v1083
    %v1092 = vpack.c.b16 %v1086, %v1085
    %v1093 = vpack.c.b16 %v1088, %v1087
    %v1094 = vpack.c.b16 %v1090, %v1089
    %v1100 = vsel %vm413, %v1059, 0
    %1102 = vmatprep.subr.bf16.mxu0 0
    %1103 = vmatpush1.bf16.msra.mxu0 %v1091
    %1104 = vmatprep.subr.bf16.mxu0 0
    %1105 = vmatpush1.bf16.msra.mxu0 %v1092
    %1106 = vmatprep.subr.bf16.mxu0 0
    %1107 = vmatpush1.bf16.msra.mxu0 %v1093
    %1108 = vmatprep.subr.bf16.mxu0 0
    %1109 = vmatpush1.bf16.msra.mxu0 %v1094
    %1110 = vmatprep.subr.bf16.mxu0 0
    %1111 = vmatpush1.bf16.msra.mxu0 0
    %1112 = vmatprep.subr.bf16.mxu0 0
    %1113 = vmatpush1.bf16.msra.mxu0 0
    %1114 = vmatprep.subr.bf16.mxu0 0
    %1115 = vmatpush1.bf16.msra.mxu0 0
    %1116 = vmatprep.subr.bf16.mxu0 0
    %1117 = vmatpush1.bf16.msra.mxu0 0
    %1118 = vmatprep.subr.bf16.mxu0 0
    %1119 = vmatpush1.bf16.msra.mxu0 0
    %1120 = vmatprep.subr.bf16.mxu0 0
    %1121 = vmatpush1.bf16.msra.mxu0 0
    %1122 = vmatprep.subr.bf16.mxu0 0
    %1123 = vmatpush1.bf16.msra.mxu0 0
    %1124 = vmatprep.subr.bf16.mxu0 0
    %1125 = vmatpush1.bf16.msra.mxu0 0
    %1126 = vmatprep.subr.bf16.mxu0 0
    %1127 = vmatpush1.bf16.msra.mxu0 0
    %1128 = vmatprep.subr.bf16.mxu0 0
    %1129 = vmatpush1.bf16.msra.mxu0 0
    %1130 = vmatprep.subr.bf16.mxu0 0
    %1131 = vmatpush1.bf16.msra.mxu0 0
    %1132 = vmatprep.subr.bf16.mxu0 0
    %1133 = vmatpush1.bf16.msra.mxu0 0
    %1134 = vmatprep.mubr.bf16.mxu0 0
    %1135 = vmatmul.mubr.bf16.gmra.mrb[0].mxu0 %v1100
    %v1136 = vpop.f32.mrb[0].mxu0
    %v1137 = vadd.f32 %v1073, %v1136
    %v1138 = vpop.f32.mrb[0].mxu0
    %v1139 = vpop.f32.mrb[0].mxu0
    %v1140 = vpop.f32.mrb[0].mxu0
    %1141 = vdwg.mxu0
    %v1142 = vxor.u32 %v1137, 2147483648
    %v1143 = vmul.f32 %v1142, 1.442695
    %v1144 = vpow.pop %v1143
    %v1145 = vadd.f32 %v1144, 1.0
    %v1146 = vrcp.pop %v1145
    %v1147 = vmul.f32 1.0, %v1146
    %v1148 = vtanh.pop %v1137
    %v1149 = vmul.f32 %v1147, %v941
    %1151 = vrot.lane.b32.xlu0 %v1148, 64
    %v1152 = vpop.permute.xlu0 %1151
    %v1154 = vmul.f32 %v1147, %v1152
    %1156 = vrot.lane.b32.xlu0 %v1154, 32
    %v1157 = vpop.permute.xlu0 %1156
    %v1159 = vadd.f32 %v1149, %v1157
    %v1160 = vtanh.pop %v1159
    %1162 = vrot.lane.b32.xlu0 %v1160, 64
    %v1163 = vpop.permute.xlu0 %1162
    %v1165 = vmul.f32 %v1147, %v1163
    %v1166 = vsel %vm1046, %v1165, %v940
    %v1167 = vsel %vm1046, %v1159, %v941
    %v1168 = vsel %vm1046, %v1165, 0.0
    %1170 = vrot.lane.b32.xlu0 %v1168, 32
    %v1171 = vpop.permute.xlu0 %1170
    %s1173 = scalar_lea.vmem [#allocation13], 6
    %1174 = vst.msk [vmem:[%s1173] sm:$0x3] %vm495, %v1171
    %s1175 = sadd.s32 %s259, 4
    %v1176 = vstv %s1175
    %vm1177 = vcmp.lt.s32.totalorder %v1176, %v254
    %s1178 = scalar_lea.vmem [#allocation2], 8
    %v1179 = vld [vmem:[%s1178] sm:$0x3]
    %v1180 = vpack.c.bf16 %v1047, %v1047
    %v1181 = vld [vmem:[%s4] sm:$0xf]
    %v1182 = vld [vmem:[%s4 + $0x4] sm:$0xf]
    %v1183 = vld [vmem:[%s4 + $0x8] sm:$0xf]
    %v1184 = vld [vmem:[%s4 + $0xc] sm:$0xf]
    %1186 = vrot.lane.b32.xlu0 %v1180, 32
    %v1187 = vpop.permute.xlu0 %1186
    %v1192 = vunpack.c.l.b16 %v1181
    %v1193 = vunpack.c.l.b16 %v1182
    %v1194 = vunpack.c.l.b16 %v1183
    %v1195 = vunpack.c.l.b16 %v1184
    %v1196 = vpack.c.b16 %v1193, %v1192
    %v1197 = vpack.c.b16 %v1195, %v1194
    %v1201 = vsel %vm148, %v1187, 0
    %1203 = vmatprep.subr.bf16.mxu0 0
    %1204 = vmatpush1.bf16.msra.mxu0 %v1196
    %1205 = vmatprep.subr.bf16.mxu0 0
    %1206 = vmatpush1.bf16.msra.mxu0 %v1197
    %1207 = vmatprep.subr.bf16.mxu0 0
    %1208 = vmatpush1.bf16.msra.mxu0 0
    %1209 = vmatprep.subr.bf16.mxu0 0
    %1210 = vmatpush1.bf16.msra.mxu0 0
    %1211 = vmatprep.subr.bf16.mxu0 0
    %1212 = vmatpush1.bf16.msra.mxu0 0
    %1213 = vmatprep.subr.bf16.mxu0 0
    %1214 = vmatpush1.bf16.msra.mxu0 0
    %1215 = vmatprep.subr.bf16.mxu0 0
    %1216 = vmatpush1.bf16.msra.mxu0 0
    %1217 = vmatprep.subr.bf16.mxu0 0
    %1218 = vmatpush1.bf16.msra.mxu0 0
    %1219 = vmatprep.subr.bf16.mxu0 0
    %1220 = vmatpush1.bf16.msra.mxu0 0
    %1221 = vmatprep.subr.bf16.mxu0 0
    %1222 = vmatpush1.bf16.msra.mxu0 0
    %1223 = vmatprep.subr.bf16.mxu0 0
    %1224 = vmatpush1.bf16.msra.mxu0 0
    %1225 = vmatprep.subr.bf16.mxu0 0
    %1226 = vmatpush1.bf16.msra.mxu0 0
    %1227 = vmatprep.subr.bf16.mxu0 0
    %1228 = vmatpush1.bf16.msra.mxu0 0
    %1229 = vmatprep.subr.bf16.mxu0 0
    %1230 = vmatpush1.bf16.msra.mxu0 0
    %1231 = vmatprep.subr.bf16.mxu0 0
    %1232 = vmatpush1.bf16.msra.mxu0 0
    %1233 = vmatprep.subr.bf16.mxu0 0
    %1234 = vmatpush1.bf16.msra.mxu0 0
    %1235 = vmatprep.mubr.bf16.mxu0 0
    %1236 = vmatmul.mubr.bf16.gmra.mrb[0].mxu0 %v1201
    %v1237 = vpop.f32.mrb[0].mxu0
    %v1238 = vadd.f32 0.0, %v1237
    %v1239 = vpop.f32.mrb[0].mxu0
    %v1240 = vpop.f32.mrb[0].mxu0
    %v1241 = vpop.f32.mrb[0].mxu0
    %1242 = vdwg.mxu0
    %v1243 = vadd.f32 %v1179, %v1238
    %v1244 = vxor.u32 %v1243, 2147483648
    %v1245 = vmul.f32 %v1244, 1.442695
    %v1246 = vpow.pop %v1245
    %v1247 = vadd.f32 %v1246, 1.0
    %v1248 = vrcp.pop %v1247
    %v1249 = vmul.f32 1.0, %v1248
    %v1250 = vtanh.pop %v1243
    %v1251 = vmul.f32 %v1249, %v1048
    %1253 = vrot.lane.b32.xlu0 %v1250, 64
    %v1254 = vpop.permute.xlu0 %1253
    %v1256 = vmul.f32 %v1249, %v1254
    %1258 = vrot.lane.b32.xlu0 %v1256, 32
    %v1259 = vpop.permute.xlu0 %1258
    %v1261 = vadd.f32 %v1251, %v1259
    %v1262 = vtanh.pop %v1261
    %1264 = vrot.lane.b32.xlu0 %v1262, 64
    %v1265 = vpop.permute.xlu0 %1264
    %v1267 = vmul.f32 %v1249, %v1265
    %v1268 = vsel %vm1177, 1, 0
    %1269 = vset.pattern.permute.xlu0 0
    %1270 = vperm.xlu0 %1269, %v1268
    %v1271 = vpop.permute.xlu0 %1270
    %vm1272 = vcmp.eq.s32.totalorder %v1271, 1
    %v1273 = vsel %vm1272, %v1267, %v1047
    %v1274 = vsel %vm1272, %v1261, %v1048
    %v1275 = vsel %vm1272, %v1267, 0.0
    %1277 = vrot.lane.b32.xlu0 %v1275, 32
    %v1278 = vpop.permute.xlu0 %1277
    %1281 = vrot.lane.b32.xlu0 %v1166, 64
    %v1282 = vpop.permute.xlu0 %1281
    %v1284 = vsel %vm148, %v1278, %v1282
    %v1285 = vpack.c.bf16 %v1284, %v1284
    %v1286 = vld [vmem:[#allocation12] sm:$0xf]
    %v1287 = vld [vmem:[#allocation12 + $0x4] sm:$0xf]
    %v1288 = vld [vmem:[#allocation12 + $0x8] sm:$0xf]
    %v1289 = vld [vmem:[#allocation12 + $0xc] sm:$0xf]
    %v1290 = vld [vmem:[#allocation12 + $0x10] sm:$0xf]
    %v1291 = vld [vmem:[#allocation12 + $0x14] sm:$0xf]
    %v1292 = vld [vmem:[#allocation12 + $0x18] sm:$0xf]
    %v1293 = vld [vmem:[#allocation12 + $0x1c] sm:$0xf]
    %v1294 = vld [vmem:[%s6] sm:$0x1]
    %v1296 = vlaneseq
    %v1297 = vshrl.u32 %v1296, 7
    %v1298 = vsub.s32 0, %v1297
    %v1299 = vrot.slane %v1294, %v1298
    %v1309 = vunpack.c.l.b16 %v1286
    %v1310 = vunpack.c.l.b16 %v1287
    %v1311 = vunpack.c.l.b16 %v1288
    %v1312 = vunpack.c.l.b16 %v1289
    %v1313 = vunpack.c.l.b16 %v1290
    %v1314 = vunpack.c.l.b16 %v1291
    %v1315 = vunpack.c.l.b16 %v1292
    %v1316 = vunpack.c.l.b16 %v1293
    %v1317 = vpack.c.b16 %v1310, %v1309
    %v1318 = vpack.c.b16 %v1312, %v1311
    %v1319 = vpack.c.b16 %v1314, %v1313
    %v1320 = vpack.c.b16 %v1316, %v1315
    %v1326 = vsel %vm413, %v1285, 0
    %1328 = vmatprep.subr.bf16.mxu0 0
    %1329 = vmatpush1.bf16.msra.mxu0 %v1317
    %1330 = vmatprep.subr.bf16.mxu0 0
    %1331 = vmatpush1.bf16.msra.mxu0 %v1318
    %1332 = vmatprep.subr.bf16.mxu0 0
    %1333 = vmatpush1.bf16.msra.mxu0 %v1319
    %1334 = vmatprep.subr.bf16.mxu0 0
    %1335 = vmatpush1.bf16.msra.mxu0 %v1320
    %1336 = vmatprep.subr.bf16.mxu0 0
    %1337 = vmatpush1.bf16.msra.mxu0 0
    %1338 = vmatprep.subr.bf16.mxu0 0
    %1339 = vmatpush1.bf16.msra.mxu0 0
    %1340 = vmatprep.subr.bf16.mxu0 0
    %1341 = vmatpush1.bf16.msra.mxu0 0
    %1342 = vmatprep.subr.bf16.mxu0 0
    %1343 = vmatpush1.bf16.msra.mxu0 0
    %1344 = vmatprep.subr.bf16.mxu0 0
    %1345 = vmatpush1.bf16.msra.mxu0 0
    %1346 = vmatprep.subr.bf16.mxu0 0
    %1347 = vmatpush1.bf16.msra.mxu0 0
    %1348 = vmatprep.subr.bf16.mxu0 0
    %1349 = vmatpush1.bf16.msra.mxu0 0
    %1350 = vmatprep.subr.bf16.mxu0 0
    %1351 = vmatpush1.bf16.msra.mxu0 0
    %1352 = vmatprep.subr.bf16.mxu0 0
    %1353 = vmatpush1.bf16.msra.mxu0 0
    %1354 = vmatprep.subr.bf16.mxu0 0
    %1355 = vmatpush1.bf16.msra.mxu0 0
    %1356 = vmatprep.subr.bf16.mxu0 0
    %1357 = vmatpush1.bf16.msra.mxu0 0
    %1358 = vmatprep.subr.bf16.mxu0 0
    %1359 = vmatpush1.bf16.msra.mxu0 0
    %1360 = vmatprep.mubr.bf16.mxu0 0
    %1361 = vmatmul.mubr.bf16.gmra.mrb[0].mxu0 %v1326
    %v1362 = vpop.f32.mrb[0].mxu0
    %v1363 = vadd.f32 %v1299, %v1362
    %v1364 = vpop.f32.mrb[0].mxu0
    %v1365 = vpop.f32.mrb[0].mxu0
    %v1366 = vpop.f32.mrb[0].mxu0
    %1367 = vdwg.mxu0
    %v1368 = vxor.u32 %v1363, 2147483648
    %v1369 = vmul.f32 %v1368, 1.442695
    %v1370 = vpow.pop %v1369
    %v1371 = vadd.f32 %v1370, 1.0
    %v1372 = vrcp.pop %v1371
    %v1373 = vmul.f32 1.0, %v1372
    %v1374 = vtanh.pop %v1363
    %v1375 = vmul.f32 %v1373, %v1167
    %1377 = vrot.lane.b32.xlu0 %v1374, 64
    %v1378 = vpop.permute.xlu0 %1377
    %v1380 = vmul.f32 %v1373, %v1378
    %1382 = vrot.lane.b32.xlu0 %v1380, 32
    %v1383 = vpop.permute.xlu0 %1382
    %v1385 = vadd.f32 %v1375, %v1383
    %v1386 = vtanh.pop %v1385
    %1388 = vrot.lane.b32.xlu0 %v1386, 64
    %v1389 = vpop.permute.xlu0 %1388
    %v1391 = vmul.f32 %v1373, %v1389
    %v1392 = vsel %vm1272, %v1391, %v1166
    %v1393 = vsel %vm1272, %v1385, %v1167
    %v1394 = vsel %vm1272, %v1391, 0.0
    %1396 = vrot.lane.b32.xlu0 %v1394, 32
    %v1397 = vpop.permute.xlu0 %1396
    %s1399 = scalar_lea.vmem [#allocation13], 8
    %1400 = vst.msk [vmem:[%s1399] sm:$0x3] %vm495, %v1397
    %s1401 = sadd.s32 %s259, 5
    %v1402 = vstv %s1401
    %vm1403 = vcmp.lt.s32.totalorder %v1402, %v254
    %s1404 = scalar_lea.vmem [#allocation2], 10
    %v1405 = vld [vmem:[%s1404] sm:$0x3]
    %v1406 = vpack.c.bf16 %v1273, %v1273
    %v1407 = vld [vmem:[%s4] sm:$0xf]
    %v1408 = vld [vmem:[%s4 + $0x4] sm:$0xf]
    %v1409 = vld [vmem:[%s4 + $0x8] sm:$0xf]
    %v1410 = vld [vmem:[%s4 + $0xc] sm:$0xf]
    %1412 = vrot.lane.b32.xlu0 %v1406, 32
    %v1413 = vpop.permute.xlu0 %1412
    %v1418 = vunpack.c.l.b16 %v1407
    %v1419 = vunpack.c.l.b16 %v1408
    %v1420 = vunpack.c.l.b16 %v1409
    %v1421 = vunpack.c.l.b16 %v1410
    %v1422 = vpack.c.b16 %v1419, %v1418
    %v1423 = vpack.c.b16 %v1421, %v1420
    %v1427 = vsel %vm148, %v1413, 0
    %1429 = vmatprep.subr.bf16.mxu0 0
    %1430 = vmatpush1.bf16.msra.mxu0 %v1422
    %1431 = vmatprep.subr.bf16.mxu0 0
    %1432 = vmatpush1.bf16.msra.mxu0 %v1423
    %1433 = vmatprep.subr.bf16.mxu0 0
    %1434 = vmatpush1.bf16.msra.mxu0 0
    %1435 = vmatprep.subr.bf16.mxu0 0
    %1436 = vmatpush1.bf16.msra.mxu0 0
    %1437 = vmatprep.subr.bf16.mxu0 0
    %1438 = vmatpush1.bf16.msra.mxu0 0
    %1439 = vmatprep.subr.bf16.mxu0 0
    %1440 = vmatpush1.bf16.msra.mxu0 0
    %1441 = vmatprep.subr.bf16.mxu0 0
    %1442 = vmatpush1.bf16.msra.mxu0 0
    %1443 = vmatprep.subr.bf16.mxu0 0
    %1444 = vmatpush1.bf16.msra.mxu0 0
    %1445 = vmatprep.subr.bf16.mxu0 0
    %1446 = vmatpush1.bf16.msra.mxu0 0
    %1447 = vmatprep.subr.bf16.mxu0 0
    %1448 = vmatpush1.bf16.msra.mxu0 0
    %1449 = vmatprep.subr.bf16.mxu0 0
    %1450 = vmatpush1.bf16.msra.mxu0 0
    %1451 = vmatprep.subr.bf16.mxu0 0
    %1452 = vmatpush1.bf16.msra.mxu0 0
    %1453 = vmatprep.subr.bf16.mxu0 0
    %1454 = vmatpush1.bf16.msra.mxu0 0
    %1455 = vmatprep.subr.bf16.mxu0 0
    %1456 = vmatpush1.bf16.msra.mxu0 0
    %1457 = vmatprep.subr.bf16.mxu0 0
    %1458 = vmatpush1.bf16.msra.mxu0 0
    %1459 = vmatprep.subr.bf16.mxu0 0
    %1460 = vmatpush1.bf16.msra.mxu0 0
    %1461 = vmatprep.mubr.bf16.mxu0 0
    %1462 = vmatmul.mubr.bf16.gmra.mrb[0].mxu0 %v1427
    %v1463 = vpop.f32.mrb[0].mxu0
    %v1464 = vadd.f32 0.0, %v1463
    %v1465 = vpop.f32.mrb[0].mxu0
    %v1466 = vpop.f32.mrb[0].mxu0
    %v1467 = vpop.f32.mrb[0].mxu0
    %1468 = vdwg.mxu0
    %v1469 = vadd.f32 %v1405, %v1464
    %v1470 = vxor.u32 %v1469, 2147483648
    %v1471 = vmul.f32 %v1470, 1.442695
    %v1472 = vpow.pop %v1471
    %v1473 = vadd.f32 %v1472, 1.0
    %v1474 = vrcp.pop %v1473
    %v1475 = vmul.f32 1.0, %v1474
    %v1476 = vtanh.pop %v1469
    %v1477 = vmul.f32 %v1475, %v1274
    %1479 = vrot.lane.b32.xlu0 %v1476, 64
    %v1480 = vpop.permute.xlu0 %1479
    %v1482 = vmul.f32 %v1475, %v1480
    %1484 = vrot.lane.b32.xlu0 %v1482, 32
    %v1485 = vpop.permute.xlu0 %1484
    %v1487 = vadd.f32 %v1477, %v1485
    %v1488 = vtanh.pop %v1487
    %1490 = vrot.lane.b32.xlu0 %v1488, 64
    %v1491 = vpop.permute.xlu0 %1490
    %v1493 = vmul.f32 %v1475, %v1491
    %v1494 = vsel %vm1403, 1, 0
    %1495 = vset.pattern.permute.xlu0 0
    %1496 = vperm.xlu0 %1495, %v1494
    %v1497 = vpop.permute.xlu0 %1496
    %vm1498 = vcmp.eq.s32.totalorder %v1497, 1
    %v1499 = vsel %vm1498, %v1493, %v1273
    %v1500 = vsel %vm1498, %v1487, %v1274
    %v1501 = vsel %vm1498, %v1493, 0.0
    %1503 = vrot.lane.b32.xlu0 %v1501, 32
    %v1504 = vpop.permute.xlu0 %1503
    %1507 = vrot.lane.b32.xlu0 %v1392, 64
    %v1508 = vpop.permute.xlu0 %1507
    %v1510 = vsel %vm148, %v1504, %v1508
    %v1511 = vpack.c.bf16 %v1510, %v1510
    %v1512 = vld [vmem:[#allocation12] sm:$0xf]
    %v1513 = vld [vmem:[#allocation12 + $0x4] sm:$0xf]
    %v1514 = vld [vmem:[#allocation12 + $0x8] sm:$0xf]
    %v1515 = vld [vmem:[#allocation12 + $0xc] sm:$0xf]
    %v1516 = vld [vmem:[#allocation12 + $0x10] sm:$0xf]
    %v1517 = vld [vmem:[#allocation12 + $0x14] sm:$0xf]
    %v1518 = vld [vmem:[#allocation12 + $0x18] sm:$0xf]
    %v1519 = vld [vmem:[#allocation12 + $0x1c] sm:$0xf]
    %v1520 = vld [vmem:[%s6] sm:$0x1]
    %v1522 = vlaneseq
    %v1523 = vshrl.u32 %v1522, 7
    %v1524 = vsub.s32 0, %v1523
    %v1525 = vrot.slane %v1520, %v1524
    %v1535 = vunpack.c.l.b16 %v1512
    %v1536 = vunpack.c.l.b16 %v1513
    %v1537 = vunpack.c.l.b16 %v1514
    %v1538 = vunpack.c.l.b16 %v1515
    %v1539 = vunpack.c.l.b16 %v1516
    %v1540 = vunpack.c.l.b16 %v1517
    %v1541 = vunpack.c.l.b16 %v1518
    %v1542 = vunpack.c.l.b16 %v1519
    %v1543 = vpack.c.b16 %v1536, %v1535
    %v1544 = vpack.c.b16 %v1538, %v1537
    %v1545 = vpack.c.b16 %v1540, %v1539
    %v1546 = vpack.c.b16 %v1542, %v1541
    %v1552 = vsel %vm413, %v1511, 0
    %1554 = vmatprep.subr.bf16.mxu0 0
    %1555 = vmatpush1.bf16.msra.mxu0 %v1543
    %1556 = vmatprep.subr.bf16.mxu0 0
    %1557 = vmatpush1.bf16.msra.mxu0 %v1544
    %1558 = vmatprep.subr.bf16.mxu0 0
    %1559 = vmatpush1.bf16.msra.mxu0 %v1545
    %1560 = vmatprep.subr.bf16.mxu0 0
    %1561 = vmatpush1.bf16.msra.mxu0 %v1546
    %1562 = vmatprep.subr.bf16.mxu0 0
    %1563 = vmatpush1.bf16.msra.mxu0 0
    %1564 = vmatprep.subr.bf16.mxu0 0
    %1565 = vmatpush1.bf16.msra.mxu0 0
    %1566 = vmatprep.subr.bf16.mxu0 0
    %1567 = vmatpush1.bf16.msra.mxu0 0
    %1568 = vmatprep.subr.bf16.mxu0 0
    %1569 = vmatpush1.bf16.msra.mxu0 0
    %1570 = vmatprep.subr.bf16.mxu0 0
    %1571 = vmatpush1.bf16.msra.mxu0 0
    %1572 = vmatprep.subr.bf16.mxu0 0
    %1573 = vmatpush1.bf16.msra.mxu0 0
    %1574 = vmatprep.subr.bf16.mxu0 0
    %1575 = vmatpush1.bf16.msra.mxu0 0
    %1576 = vmatprep.subr.bf16.mxu0 0
    %1577 = vmatpush1.bf16.msra.mxu0 0
    %1578 = vmatprep.subr.bf16.mxu0 0
    %1579 = vmatpush1.bf16.msra.mxu0 0
    %1580 = vmatprep.subr.bf16.mxu0 0
    %1581 = vmatpush1.bf16.msra.mxu0 0
    %1582 = vmatprep.subr.bf16.mxu0 0
    %1583 = vmatpush1.bf16.msra.mxu0 0
    %1584 = vmatprep.subr.bf16.mxu0 0
    %1585 = vmatpush1.bf16.msra.mxu0 0
    %1586 = vmatprep.mubr.bf16.mxu0 0
    %1587 = vmatmul.mubr.bf16.gmra.mrb[0].mxu0 %v1552
    %v1588 = vpop.f32.mrb[0].mxu0
    %v1589 = vadd.f32 %v1525, %v1588
    %v1590 = vpop.f32.mrb[0].mxu0
    %v1591 = vpop.f32.mrb[0].mxu0
    %v1592 = vpop.f32.mrb[0].mxu0
    %1593 = vdwg.mxu0
    %v1594 = vxor.u32 %v1589, 2147483648
    %v1595 = vmul.f32 %v1594, 1.442695
    %v1596 = vpow.pop %v1595
    %v1597 = vadd.f32 %v1596, 1.0
    %v1598 = vrcp.pop %v1597
    %v1599 = vmul.f32 1.0, %v1598
    %v1600 = vtanh.pop %v1589
    %v1601 = vmul.f32 %v1599, %v1393
    %1603 = vrot.lane.b32.xlu0 %v1600, 64
    %v1604 = vpop.permute.xlu0 %1603
    %v1606 = vmul.f32 %v1599, %v1604
    %1608 = vrot.lane.b32.xlu0 %v1606, 32
    %v1609 = vpop.permute.xlu0 %1608
    %v1611 = vadd.f32 %v1601, %v1609
    %v1612 = vtanh.pop %v1611
    %1614 = vrot.lane.b32.xlu0 %v1612, 64
    %v1615 = vpop.permute.xlu0 %1614
    %v1617 = vmul.f32 %v1599, %v1615
    %v1618 = vsel %vm1498, %v1617, %v1392
    %v1619 = vsel %vm1498, %v1611, %v1393
    %v1620 = vsel %vm1498, %v1617, 0.0
    %1622 = vrot.lane.b32.xlu0 %v1620, 32
    %v1623 = vpop.permute.xlu0 %1622
    %s1625 = scalar_lea.vmem [#allocation13], 10
    %1626 = vst.msk [vmem:[%s1625] sm:$0x3] %vm495, %v1623
    %s1627 = sadd.s32 %s259, 6
    %v1628 = vstv %s1627
    %vm1629 = vcmp.lt.s32.totalorder %v1628, %v254
    %s1630 = scalar_lea.vmem [#allocation2], 12
    %v1631 = vld [vmem:[%s1630] sm:$0x3]
    %v1632 = vpack.c.bf16 %v1499, %v1499
    %v1633 = vld [vmem:[%s4] sm:$0xf]
    %v1634 = vld [vmem:[%s4 + $0x4] sm:$0xf]
    %v1635 = vld [vmem:[%s4 + $0x8] sm:$0xf]
    %v1636 = vld [vmem:[%s4 + $0xc] sm:$0xf]
    %1638 = vrot.lane.b32.xlu0 %v1632, 32
    %v1639 = vpop.permute.xlu0 %1638
    %v1644 = vunpack.c.l.b16 %v1633
    %v1645 = vunpack.c.l.b16 %v1634
    %v1646 = vunpack.c.l.b16 %v1635
    %v1647 = vunpack.c.l.b16 %v1636
    %v1648 = vpack.c.b16 %v1645, %v1644
    %v1649 = vpack.c.b16 %v1647, %v1646
    %v1653 = vsel %vm148, %v1639, 0
    %1655 = vmatprep.subr.bf16.mxu0 0
    %1656 = vmatpush1.bf16.msra.mxu0 %v1648
    %1657 = vmatprep.subr.bf16.mxu0 0
    %1658 = vmatpush1.bf16.msra.mxu0 %v1649
    %1659 = vmatprep.subr.bf16.mxu0 0
    %1660 = vmatpush1.bf16.msra.mxu0 0
    %1661 = vmatprep.subr.bf16.mxu0 0
    %1662 = vmatpush1.bf16.msra.mxu0 0
    %1663 = vmatprep.subr.bf16.mxu0 0
    %1664 = vmatpush1.bf16.msra.mxu0 0
    %1665 = vmatprep.subr.bf16.mxu0 0
    %1666 = vmatpush1.bf16.msra.mxu0 0
    %1667 = vmatprep.subr.bf16.mxu0 0
    %1668 = vmatpush1.bf16.msra.mxu0 0
    %1669 = vmatprep.subr.bf16.mxu0 0
    %1670 = vmatpush1.bf16.msra.mxu0 0
    %1671 = vmatprep.subr.bf16.mxu0 0
    %1672 = vmatpush1.bf16.msra.mxu0 0
    %1673 = vmatprep.subr.bf16.mxu0 0
    %1674 = vmatpush1.bf16.msra.mxu0 0
    %1675 = vmatprep.subr.bf16.mxu0 0
    %1676 = vmatpush1.bf16.msra.mxu0 0
    %1677 = vmatprep.subr.bf16.mxu0 0
    %1678 = vmatpush1.bf16.msra.mxu0 0
    %1679 = vmatprep.subr.bf16.mxu0 0
    %1680 = vmatpush1.bf16.msra.mxu0 0
    %1681 = vmatprep.subr.bf16.mxu0 0
    %1682 = vmatpush1.bf16.msra.mxu0 0
    %1683 = vmatprep.subr.bf16.mxu0 0
    %1684 = vmatpush1.bf16.msra.mxu0 0
    %1685 = vmatprep.subr.bf16.mxu0 0
    %1686 = vmatpush1.bf16.msra.mxu0 0
    %1687 = vmatprep.mubr.bf16.mxu0 0
    %1688 = vmatmul.mubr.bf16.gmra.mrb[0].mxu0 %v1653
    %v1689 = vpop.f32.mrb[0].mxu0
    %v1690 = vadd.f32 0.0, %v1689
    %v1691 = vpop.f32.mrb[0].mxu0
    %v1692 = vpop.f32.mrb[0].mxu0
    %v1693 = vpop.f32.mrb[0].mxu0
    %1694 = vdwg.mxu0
    %v1695 = vadd.f32 %v1631, %v1690
    %v1696 = vxor.u32 %v1695, 2147483648
    %v1697 = vmul.f32 %v1696, 1.442695
    %v1698 = vpow.pop %v1697
    %v1699 = vadd.f32 %v1698, 1.0
    %v1700 = vrcp.pop %v1699
    %v1701 = vmul.f32 1.0, %v1700
    %v1702 = vtanh.pop %v1695
    %v1703 = vmul.f32 %v1701, %v1500
    %1705 = vrot.lane.b32.xlu0 %v1702, 64
    %v1706 = vpop.permute.xlu0 %1705
    %v1708 = vmul.f32 %v1701, %v1706
    %1710 = vrot.lane.b32.xlu0 %v1708, 32
    %v1711 = vpop.permute.xlu0 %1710
    %v1713 = vadd.f32 %v1703, %v1711
    %v1714 = vtanh.pop %v1713
    %1716 = vrot.lane.b32.xlu0 %v1714, 64
    %v1717 = vpop.permute.xlu0 %1716
    %v1719 = vmul.f32 %v1701, %v1717
    %v1720 = vsel %vm1629, 1, 0
    %1721 = vset.pattern.permute.xlu0 0
    %1722 = vperm.xlu0 %1721, %v1720
    %v1723 = vpop.permute.xlu0 %1722
    %vm1724 = vcmp.eq.s32.totalorder %v1723, 1
    %v1725 = vsel %vm1724, %v1719, %v1499
    %v1726 = vsel %vm1724, %v1713, %v1500
    %v1727 = vsel %vm1724, %v1719, 0.0
    %1729 = vrot.lane.b32.xlu0 %v1727, 32
    %v1730 = vpop.permute.xlu0 %1729
    %1733 = vrot.lane.b32.xlu0 %v1618, 64
    %v1734 = vpop.permute.xlu0 %1733
    %v1736 = vsel %vm148, %v1730, %v1734
    %v1737 = vpack.c.bf16 %v1736, %v1736
    %v1738 = vld [vmem:[#allocation12] sm:$0xf]
    %v1739 = vld [vmem:[#allocation12 + $0x4] sm:$0xf]
    %v1740 = vld [vmem:[#allocation12 + $0x8] sm:$0xf]
    %v1741 = vld [vmem:[#allocation12 + $0xc] sm:$0xf]
    %v1742 = vld [vmem:[#allocation12 + $0x10] sm:$0xf]
    %v1743 = vld [vmem:[#allocation12 + $0x14] sm:$0xf]
    %v1744 = vld [vmem:[#allocation12 + $0x18] sm:$0xf]
    %v1745 = vld [vmem:[#allocation12 + $0x1c] sm:$0xf]
    %v1746 = vld [vmem:[%s6] sm:$0x1]
    %v1748 = vlaneseq
    %v1749 = vshrl.u32 %v1748, 7
    %v1750 = vsub.s32 0, %v1749
    %v1751 = vrot.slane %v1746, %v1750
    %v1761 = vunpack.c.l.b16 %v1738
    %v1762 = vunpack.c.l.b16 %v1739
    %v1763 = vunpack.c.l.b16 %v1740
    %v1764 = vunpack.c.l.b16 %v1741
    %v1765 = vunpack.c.l.b16 %v1742
    %v1766 = vunpack.c.l.b16 %v1743
    %v1767 = vunpack.c.l.b16 %v1744
    %v1768 = vunpack.c.l.b16 %v1745
    %v1769 = vpack.c.b16 %v1762, %v1761
    %v1770 = vpack.c.b16 %v1764, %v1763
    %v1771 = vpack.c.b16 %v1766, %v1765
    %v1772 = vpack.c.b16 %v1768, %v1767
    %v1778 = vsel %vm413, %v1737, 0
    %1780 = vmatprep.subr.bf16.mxu0 0
    %1781 = vmatpush1.bf16.msra.mxu0 %v1769
    %1782 = vmatprep.subr.bf16.mxu0 0
    %1783 = vmatpush1.bf16.msra.mxu0 %v1770
    %1784 = vmatprep.subr.bf16.mxu0 0
    %1785 = vmatpush1.bf16.msra.mxu0 %v1771
    %1786 = vmatprep.subr.bf16.mxu0 0
    %1787 = vmatpush1.bf16.msra.mxu0 %v1772
    %1788 = vmatprep.subr.bf16.mxu0 0
    %1789 = vmatpush1.bf16.msra.mxu0 0
    %1790 = vmatprep.subr.bf16.mxu0 0
    %1791 = vmatpush1.bf16.msra.mxu0 0
    %1792 = vmatprep.subr.bf16.mxu0 0
    %1793 = vmatpush1.bf16.msra.mxu0 0
    %1794 = vmatprep.subr.bf16.mxu0 0
    %1795 = vmatpush1.bf16.msra.mxu0 0
    %1796 = vmatprep.subr.bf16.mxu0 0
    %1797 = vmatpush1.bf16.msra.mxu0 0
    %1798 = vmatprep.subr.bf16.mxu0 0
    %1799 = vmatpush1.bf16.msra.mxu0 0
    %1800 = vmatprep.subr.bf16.mxu0 0
    %1801 = vmatpush1.bf16.msra.mxu0 0
    %1802 = vmatprep.subr.bf16.mxu0 0
    %1803 = vmatpush1.bf16.msra.mxu0 0
    %1804 = vmatprep.subr.bf16.mxu0 0
    %1805 = vmatpush1.bf16.msra.mxu0 0
    %1806 = vmatprep.subr.bf16.mxu0 0
    %1807 = vmatpush1.bf16.msra.mxu0 0
    %1808 = vmatprep.subr.bf16.mxu0 0
    %1809 = vmatpush1.bf16.msra.mxu0 0
    %1810 = vmatprep.subr.bf16.mxu0 0
    %1811 = vmatpush1.bf16.msra.mxu0 0
    %1812 = vmatprep.mubr.bf16.mxu0 0
    %1813 = vmatmul.mubr.bf16.gmra.mrb[0].mxu0 %v1778
    %v1814 = vpop.f32.mrb[0].mxu0
    %v1815 = vadd.f32 %v1751, %v1814
    %v1816 = vpop.f32.mrb[0].mxu0
    %v1817 = vpop.f32.mrb[0].mxu0
    %v1818 = vpop.f32.mrb[0].mxu0
    %1819 = vdwg.mxu0
    %v1820 = vxor.u32 %v1815, 2147483648
    %v1821 = vmul.f32 %v1820, 1.442695
    %v1822 = vpow.pop %v1821
    %v1823 = vadd.f32 %v1822, 1.0
    %v1824 = vrcp.pop %v1823
    %v1825 = vmul.f32 1.0, %v1824
    %v1826 = vtanh.pop %v1815
    %v1827 = vmul.f32 %v1825, %v1619
    %1829 = vrot.lane.b32.xlu0 %v1826, 64
    %v1830 = vpop.permute.xlu0 %1829
    %v1832 = vmul.f32 %v1825, %v1830
    %1834 = vrot.lane.b32.xlu0 %v1832, 32
    %v1835 = vpop.permute.xlu0 %1834
    %v1837 = vadd.f32 %v1827, %v1835
    %v1838 = vtanh.pop %v1837
    %1840 = vrot.lane.b32.xlu0 %v1838, 64
    %v1841 = vpop.permute.xlu0 %1840
    %v1843 = vmul.f32 %v1825, %v1841
    %v1844 = vsel %vm1724, %v1843, %v1618
    %v1845 = vsel %vm1724, %v1837, %v1619
    %v1846 = vsel %vm1724, %v1843, 0.0
    %1848 = vrot.lane.b32.xlu0 %v1846, 32
    %v1849 = vpop.permute.xlu0 %1848
    %s1851 = scalar_lea.vmem [#allocation13], 12
    %1852 = vst.msk [vmem:[%s1851] sm:$0x3] %vm495, %v1849
    %s1853 = sadd.s32 %s259, 7
    %v1854 = vstv %s1853
    %vm1855 = vcmp.lt.s32.totalorder %v1854, %v254
    %s1856 = scalar_lea.vmem [#allocation2], 14
    %v1857 = vld [vmem:[%s1856] sm:$0x3]
    %v1858 = vpack.c.bf16 %v1725, %v1725
    %v1859 = vld [vmem:[%s4] sm:$0xf]
    %v1860 = vld [vmem:[%s4 + $0x4] sm:$0xf]
    %v1861 = vld [vmem:[%s4 + $0x8] sm:$0xf]
    %v1862 = vld [vmem:[%s4 + $0xc] sm:$0xf]
    %1864 = vrot.lane.b32.xlu0 %v1858, 32
    %v1865 = vpop.permute.xlu0 %1864
    %v1870 = vunpack.c.l.b16 %v1859
    %v1871 = vunpack.c.l.b16 %v1860
    %v1872 = vunpack.c.l.b16 %v1861
    %v1873 = vunpack.c.l.b16 %v1862
    %v1874 = vpack.c.b16 %v1871, %v1870
    %v1875 = vpack.c.b16 %v1873, %v1872
    %v1879 = vsel %vm148, %v1865, 0
    %1881 = vmatprep.subr.bf16.mxu0 0
    %1882 = vmatpush1.bf16.msra.mxu0 %v1874
    %1883 = vmatprep.subr.bf16.mxu0 0
    %1884 = vmatpush1.bf16.msra.mxu0 %v1875
    %1885 = vmatprep.subr.bf16.mxu0 0
    %1886 = vmatpush1.bf16.msra.mxu0 0
    %1887 = vmatprep.subr.bf16.mxu0 0
    %1888 = vmatpush1.bf16.msra.mxu0 0
    %1889 = vmatprep.subr.bf16.mxu0 0
    %1890 = vmatpush1.bf16.msra.mxu0 0
    %1891 = vmatprep.subr.bf16.mxu0 0
    %1892 = vmatpush1.bf16.msra.mxu0 0
    %1893 = vmatprep.subr.bf16.mxu0 0
    %1894 = vmatpush1.bf16.msra.mxu0 0
    %1895 = vmatprep.subr.bf16.mxu0 0
    %1896 = vmatpush1.bf16.msra.mxu0 0
    %1897 = vmatprep.subr.bf16.mxu0 0
    %1898 = vmatpush1.bf16.msra.mxu0 0
    %1899 = vmatprep.subr.bf16.mxu0 0
    %1900 = vmatpush1.bf16.msra.mxu0 0
    %1901 = vmatprep.subr.bf16.mxu0 0
    %1902 = vmatpush1.bf16.msra.mxu0 0
    %1903 = vmatprep.subr.bf16.mxu0 0
    %1904 = vmatpush1.bf16.msra.mxu0 0
    %1905 = vmatprep.subr.bf16.mxu0 0
    %1906 = vmatpush1.bf16.msra.mxu0 0
    %1907 = vmatprep.subr.bf16.mxu0 0
    %1908 = vmatpush1.bf16.msra.mxu0 0
    %1909 = vmatprep.subr.bf16.mxu0 0
    %1910 = vmatpush1.bf16.msra.mxu0 0
    %1911 = vmatprep.subr.bf16.mxu0 0
    %1912 = vmatpush1.bf16.msra.mxu0 0
    %1913 = vmatprep.mubr.bf16.mxu0 0
    %1914 = vmatmul.mubr.bf16.gmra.mrb[0].mxu0 %v1879
    %v1915 = vpop.f32.mrb[0].mxu0
    %v1916 = vadd.f32 0.0, %v1915
    %v1917 = vpop.f32.mrb[0].mxu0
    %v1918 = vpop.f32.mrb[0].mxu0
    %v1919 = vpop.f32.mrb[0].mxu0
    %1920 = vdwg.mxu0
    %v1921 = vadd.f32 %v1857, %v1916
    %v1922 = vxor.u32 %v1921, 2147483648
    %v1923 = vmul.f32 %v1922, 1.442695
    %v1924 = vpow.pop %v1923
    %v1925 = vadd.f32 %v1924, 1.0
    %v1926 = vrcp.pop %v1925
    %v1927 = vmul.f32 1.0, %v1926
    %v1928 = vtanh.pop %v1921
    %v1929 = vmul.f32 %v1927, %v1726
    %1931 = vrot.lane.b32.xlu0 %v1928, 64
    %v1932 = vpop.permute.xlu0 %1931
    %v1934 = vmul.f32 %v1927, %v1932
    %1936 = vrot.lane.b32.xlu0 %v1934, 32
    %v1937 = vpop.permute.xlu0 %1936
    %v1939 = vadd.f32 %v1929, %v1937
    %v1940 = vtanh.pop %v1939
    %1942 = vrot.lane.b32.xlu0 %v1940, 64
    %v1943 = vpop.permute.xlu0 %1942
    %v1945 = vmul.f32 %v1927, %v1943
    %v1946 = vsel %vm1855, 1, 0
    %1947 = vset.pattern.permute.xlu0 0
    %1948 = vperm.xlu0 %1947, %v1946
    %v1949 = vpop.permute.xlu0 %1948
    %vm1950 = vcmp.eq.s32.totalorder %v1949, 1
    %v1951 = vsel %vm1950, %v1945, %v1725
    %v1952 = vsel %vm1950, %v1939, %v1726
    %v1953 = vsel %vm1950, %v1945, 0.0
    %1955 = vrot.lane.b32.xlu0 %v1953, 32
    %v1956 = vpop.permute.xlu0 %1955
    %1959 = vrot.lane.b32.xlu0 %v1844, 64
    %v1960 = vpop.permute.xlu0 %1959
    %v1962 = vsel %vm148, %v1956, %v1960
    %v1963 = vpack.c.bf16 %v1962, %v1962
    %v1964 = vld [vmem:[#allocation12] sm:$0xf]
    %v1965 = vld [vmem:[#allocation12 + $0x4] sm:$0xf]
    %v1966 = vld [vmem:[#allocation12 + $0x8] sm:$0xf]
    %v1967 = vld [vmem:[#allocation12 + $0xc] sm:$0xf]
    %v1968 = vld [vmem:[#allocation12 + $0x10] sm:$0xf]
    %v1969 = vld [vmem:[#allocation12 + $0x14] sm:$0xf]
    %v1970 = vld [vmem:[#allocation12 + $0x18] sm:$0xf]
    %v1971 = vld [vmem:[#allocation12 + $0x1c] sm:$0xf]
    %v1972 = vld [vmem:[%s6] sm:$0x1]
    %v1974 = vlaneseq
    %v1975 = vshrl.u32 %v1974, 7
    %v1976 = vsub.s32 0, %v1975
    %v1977 = vrot.slane %v1972, %v1976
    %v1987 = vunpack.c.l.b16 %v1964
    %v1988 = vunpack.c.l.b16 %v1965
    %v1989 = vunpack.c.l.b16 %v1966
    %v1990 = vunpack.c.l.b16 %v1967
    %v1991 = vunpack.c.l.b16 %v1968
    %v1992 = vunpack.c.l.b16 %v1969
    %v1993 = vunpack.c.l.b16 %v1970
    %v1994 = vunpack.c.l.b16 %v1971
    %v1995 = vpack.c.b16 %v1988, %v1987
    %v1996 = vpack.c.b16 %v1990, %v1989
    %v1997 = vpack.c.b16 %v1992, %v1991
    %v1998 = vpack.c.b16 %v1994, %v1993
    %v2004 = vsel %vm413, %v1963, 0
    %2006 = vmatprep.subr.bf16.mxu0 0
    %2007 = vmatpush1.bf16.msra.mxu0 %v1995
    %2008 = vmatprep.subr.bf16.mxu0 0
    %2009 = vmatpush1.bf16.msra.mxu0 %v1996
    %2010 = vmatprep.subr.bf16.mxu0 0
    %2011 = vmatpush1.bf16.msra.mxu0 %v1997
    %2012 = vmatprep.subr.bf16.mxu0 0
    %2013 = vmatpush1.bf16.msra.mxu0 %v1998
    %2014 = vmatprep.subr.bf16.mxu0 0
    %2015 = vmatpush1.bf16.msra.mxu0 0
    %2016 = vmatprep.subr.bf16.mxu0 0
    %2017 = vmatpush1.bf16.msra.mxu0 0
    %2018 = vmatprep.subr.bf16.mxu0 0
    %2019 = vmatpush1.bf16.msra.mxu0 0
    %2020 = vmatprep.subr.bf16.mxu0 0
    %2021 = vmatpush1.bf16.msra.mxu0 0
    %2022 = vmatprep.subr.bf16.mxu0 0
    %2023 = vmatpush1.bf16.msra.mxu0 0
    %2024 = vmatprep.subr.bf16.mxu0 0
    %2025 = vmatpush1.bf16.msra.mxu0 0
    %2026 = vmatprep.subr.bf16.mxu0 0
    %2027 = vmatpush1.bf16.msra.mxu0 0
    %2028 = vmatprep.subr.bf16.mxu0 0
    %2029 = vmatpush1.bf16.msra.mxu0 0
    %2030 = vmatprep.subr.bf16.mxu0 0
    %2031 = vmatpush1.bf16.msra.mxu0 0
    %2032 = vmatprep.subr.bf16.mxu0 0
    %2033 = vmatpush1.bf16.msra.mxu0 0
    %2034 = vmatprep.subr.bf16.mxu0 0
    %2035 = vmatpush1.bf16.msra.mxu0 0
    %2036 = vmatprep.subr.bf16.mxu0 0
    %2037 = vmatpush1.bf16.msra.mxu0 0
    %2038 = vmatprep.mubr.bf16.mxu0 0
    %2039 = vmatmul.mubr.bf16.gmra.mrb[0].mxu0 %v2004
    %v2040 = vpop.f32.mrb[0].mxu0
    %v2041 = vadd.f32 %v1977, %v2040
    %v2042 = vpop.f32.mrb[0].mxu0
    %v2043 = vpop.f32.mrb[0].mxu0
    %v2044 = vpop.f32.mrb[0].mxu0
    %2045 = vdwg.mxu0
    %v2046 = vxor.u32 %v2041, 2147483648
    %v2047 = vmul.f32 %v2046, 1.442695
    %v2048 = vpow.pop %v2047
    %v2049 = vadd.f32 %v2048, 1.0
    %v2050 = vrcp.pop %v2049
    %v2051 = vmul.f32 1.0, %v2050
    %v2052 = vtanh.pop %v2041
    %v2053 = vmul.f32 %v2051, %v1845
    %2055 = vrot.lane.b32.xlu0 %v2052, 64
    %v2056 = vpop.permute.xlu0 %2055
    %v2058 = vmul.f32 %v2051, %v2056
    %2060 = vrot.lane.b32.xlu0 %v2058, 32
    %v2061 = vpop.permute.xlu0 %2060
    %v2063 = vadd.f32 %v2053, %v2061
    %v2064 = vtanh.pop %v2063
    %2066 = vrot.lane.b32.xlu0 %v2064, 64
    %v2067 = vpop.permute.xlu0 %2066
    %v2069 = vmul.f32 %v2051, %v2067
    %v2070 = vsel %vm1950, %v2069, %v1844
    %v2071 = vsel %vm1950, %v2063, %v1845
    %v2072 = vsel %vm1950, %v2069, 0.0
    %2074 = vrot.lane.b32.xlu0 %v2072, 32
    %v2075 = vpop.permute.xlu0 %2074
    %s2077 = scalar_lea.vmem [#allocation13], 14
    %2078 = vst.msk [vmem:[%s2077] sm:$0x3] %vm495, %v2075
    %2080 = vrot.lane.b32.xlu0 %v1951, 32
    %v2081 = vpop.permute.xlu0 %2080
    %2083 = vst.msk [vmem:[#allocation3] sm:$0x3] %vm495, %v2081
    %2085 = vrot.lane.b32.xlu0 %v1952, 96
    %v2086 = vpop.permute.xlu0 %2085
    %2088 = vst.msk [vmem:[#allocation4] sm:$0x3] %vm495, %v2086
    %2090 = vrot.lane.b32.xlu0 %v2070, 32
    %v2091 = vpop.permute.xlu0 %2090
    %2093 = vst.msk [vmem:[#allocation5] sm:$0x3] %vm495, %v2091
    %2095 = vrot.lane.b32.xlu0 %v2071, 96
    %v2096 = vpop.permute.xlu0 %2095
    %2098 = vst.msk [vmem:[#allocation6] sm:$0x3] %vm495, %v2096
    // Predicated region
    $region46: #{tpu_custom_call.1} parent=1 // pred_check
      %p2099 = pneg %p245
    $region47: #{tpu_custom_call.1} parent=1 // pred_check_branch
      %2101 = sbr.rel (%p2099) target = $region49
    $region48: #{tpu_custom_call.1} parent=1 // pred_region
      %v2102 = vld [vmem:[#allocation5] sm:$0x3]
      %2103 = vst.msk [vmem:[#allocation14] sm:$0x3] %vm495, %v2102
    $region49: #{tpu_custom_call.1} parent=1 // pred_fallthru
      _
    // Predicated region
    $region50: #{tpu_custom_call.1} parent=1 // pred_check
      _
    $region51: #{tpu_custom_call.1} parent=1 // pred_check_branch
      %2105 = sbr.rel (0) target = $region53
    $region52: #{tpu_custom_call.1} parent=1 // pred_region
      %s2107 = ssub.s32 256, 256
      %2108 = vsyncadd [#allocation9], %s2107
      %s2109 = sshll.u32 [#allocation13], 4
      %s2110 = int_to_ptr.vmem [resolvable:$true] %s2109
      %2115 = dma.vmem_to_hbm [thread:$0]  %s2110, 256, %s7, [#allocation9], 32, 32, 2
    $region53: #{tpu_custom_call.1} parent=1 // pred_fallthru
      _
    // Predicated region
    $region54: #{tpu_custom_call.1} parent=1 // pred_check
      _
    $region55: #{tpu_custom_call.1} parent=1 // pred_check_branch
      %2117 = sbr.rel (0) target = $region57
    $region56: #{tpu_custom_call.1} parent=1 // pred_region
      %s2119 = ssub.s32 32, 32
      %2120 = vsyncadd [#allocation15], %s2119
      %s2122 = sshll.u32 [#allocation14], 4
      %s2123 = int_to_ptr.vmem [resolvable:$true] %s2122
      %2125 = dma.vmem_to_hbm [thread:$0]  %s2123, 32, %s8, [#allocation15]
    $region57: #{tpu_custom_call.1} parent=1 // pred_fallthru
      _
    // Predicated region
    $region58: #{tpu_custom_call.1} parent=1 // pred_check
      _
    $region59: #{tpu_custom_call.1} parent=1 // pred_check_branch
      %2127 = sbr.rel (0) target = $region61
    $region60: #{tpu_custom_call.1} parent=1 // pred_region
      %2128 = dma.done [#allocation9], 256
    $region61: #{tpu_custom_call.1} parent=1 // pred_fallthru
      _
    // Predicated region
    $region62: #{tpu_custom_call.1} parent=1 // pred_check
      _
    $region63: #{tpu_custom_call.1} parent=1 // pred_check_branch
      %2130 = sbr.rel (0) target = $region65
    $region64: #{tpu_custom_call.1} parent=1 // pred_region
      %2131 = dma.done [#allocation15], 32
    $region65: #{tpu_custom_call.1} parent=1 // pred_fallthru
      _
    %2132 = vsyncpa [#allocation8], 1
    %2133 = vsyncpa [#allocation11], 1
    %2134 = vsyncpa [#allocation9], 1
    %2135 = vsyncpa [#allocation15], 1

</llo_original>
